<compile_context>
chip_gen: v7x
topology: tpu7x:2x2x1
jax: 0.10.0
libtpu: 0.0.40
codegen_flags: <defaults>
</compile_context>

<pallas_src>
import functools

import jax
import jax.numpy as jnp
from jax.experimental import pallas as pl
from jax.experimental.pallas import tpu as pltpu


def _round_up(x, m):
    return (x + m - 1) // m * m


def _cdiv(a, b):
    return (a + b - 1) // b


def _contrastive_kernel(temp_ref, dims_ref, a_ref, b_ref, out_ref,
                        m_sc, l_sc, t_sc):
    # temp_ref : SMEM (1,)  f32   raw learnable temperature parameter
    # dims_ref : SMEM (3,)  i32   [label_offset, n_valid_rows, n_valid_cols]
    # a_ref/b_ref : VMEM (TM, TC) logits tiles (any float dtype; cast to f32 here)
    # out_ref  : VMEM (1, 8, 128) lane-dense per-row-tile partial sum of (lse - target)
    # m_sc/l_sc/t_sc : VMEM (2, TM, 1) f32 running max / sum-exp / target accumulators
    i = pl.program_id(0)          # row tile   ("parallel", megacore-shardable)
    j = pl.program_id(1)          # class tile (innermost reduction, "arbitrary")
    nj = pl.num_programs(1)
    tm, tc = a_ref.shape

    temp = jnp.clip(jnp.exp(temp_ref[0]), 1.0, 100.0)
    offset = dims_ref[0]
    n_valid = dims_ref[1]
    c_valid = dims_ref[2]

    @pl.when(j == 0)
    def _init():
        m_sc[...] = jnp.full_like(m_sc, -jnp.inf)
        l_sc[...] = jnp.zeros_like(l_sc)
        t_sc[...] = jnp.zeros_like(t_sc)

    tile_lo = j * tc
    tile_hi = tile_lo + tc
    # Only the class tile that overhangs the valid column range pays for masking.
    has_col_overhang = tile_hi > c_valid
    # Only the class tile that can contain col == row + offset pays for the gather.
    diag_lo = i * tm + offset
    diag_hi = diag_lo + tm
    on_diag = jnp.logical_and(diag_lo < tile_hi, diag_hi > tile_lo)

    cols = tile_lo + jax.lax.broadcasted_iota(jnp.int32, (1, tc), 1)   # (1, tc)

    def online_lse_update(idx, z):
        m_prev = m_sc[idx]                                             # (TM, 1)
        m_new = jnp.maximum(m_prev, jnp.max(z, axis=-1, keepdims=True))
        alpha = jnp.exp(m_prev - m_new)
        l_sc[idx] = alpha * l_sc[idx] + jnp.sum(jnp.exp(z - m_new),
                                                axis=-1, keepdims=True)
        m_sc[idx] = m_new

    def gather_target(idx, z):
        rows = i * tm + jax.lax.broadcasted_iota(jnp.int32, (tm, 1), 0)  # (TM, 1)
        hit = cols == rows + offset                                      # (TM, TC)
        t_sc[idx] = t_sc[idx] + jnp.sum(jnp.where(hit, z, 0.0),
                                        axis=-1, keepdims=True)

    def process(idx, x_ref):
        # Each input is processed fully before the other -> only one full-tile f32
        # temporary is live at a time (halves peak vreg/VMEM pressure).
        z = x_ref[...].astype(jnp.float32) * temp

        @pl.when(has_col_overhang)
        def _overhang_tile():
            # jnp.where (vector select) does NOT propagate garbage/NaN from the
            # unselected branch, so unpadded boundary blocks are safe.
            zm = jnp.where(cols < c_valid, z, -jnp.inf)
            online_lse_update(idx, zm)

            @pl.when(on_diag)
            def _():
                gather_target(idx, zm)

        @pl.when(jnp.logical_not(has_col_overhang))
        def _interior_tile():
            online_lse_update(idx, z)

            @pl.when(on_diag)
            def _():
                gather_target(idx, z)

    process(0, a_ref)
    process(1, b_ref)

    # Output block is resident across the class axis and written exactly once here;
    # any refactor must preserve that invariant (out_specs index is independent of j).
    @pl.when(j == nj - 1)
    def _finalize():
        lse_a = m_sc[0] + jnp.log(l_sc[0])
        lse_b = m_sc[1] + jnp.log(l_sc[1])
        per_row = (lse_a - t_sc[0]) + (lse_b - t_sc[1])                 # (TM, 1)
        row_ids = i * tm + jax.lax.broadcasted_iota(jnp.int32, (tm, 1), 0)
        per_row = jnp.where(row_ids < n_valid, per_row, 0.0)            # drop ragged rows
        out_ref[...] = jnp.zeros_like(out_ref) + jnp.sum(per_row)       # lane-dense store


@functools.partial(jax.jit,
                   static_argnames=("local_rank", "block_rows", "block_cols"))
def contrastive_loss(logits_per_a, logits_per_b, temp_param, local_rank=0,
                     block_rows=512, block_cols=1024):
    """(CE(temp*a, labels) + CE(temp*b, labels)) / 2 with temp = clamp(exp(param),1,100)."""
    n, c = logits_per_a.shape
    assert logits_per_b.shape == (n, c)
    # PyTorch CrossEntropy would error if a label falls outside the class range;
    # fail loudly instead of silently returning mean(lse)/2.
    if n * local_rank + n > c:
        raise ValueError("labels arange(n) + n*local_rank exceed the class dimension")

    itemsize = jnp.dtype(logits_per_a.dtype).itemsize
    row_align = max(8, 32 // itemsize)        # keep packed sublanes whole for bf16/int8
    block_rows = max(row_align, _round_up(block_rows, row_align))
    block_cols = max(128, _round_up(block_cols, 128))

    # Row tile: aim for >= 2 row tiles so the "parallel" axis shards across both
    # v7x TensorCores; aligned to row_align (or equal to the full dim for tiny n).
    if n <= block_rows:
        tm = _round_up(_cdiv(n, 2), row_align) if n >= 2 * row_align else n
    else:
        tm = block_rows
    # Column tile: whole class dim if it fits in one tile, else a 128-multiple tile.
    tc = c if c <= block_cols else block_cols

    gm = _cdiv(n, tm)
    gc = _cdiv(c, tc)

    temp_arr = jnp.asarray(temp_param, jnp.float32).reshape(1)
    dims_arr = jnp.array([n * local_rank, n, c], dtype=jnp.int32)

    cost = pl.CostEstimate(
        flops=10 * n * c,                      # scale/mask/reduce work, a + b
        transcendentals=2 * n * c,             # exp over every element, a + b
        bytes_accessed=2 * n * c * itemsize + gm * 8 * 128 * 4,
    )

    # Per-step VMEM budget: 2 inputs x 2 pipeline buffers x tile + ~3 full-tile f32
    # temporaries; clamp to [32 MiB default, 64 MiB] (v7x physical VMEM is 64 MiB).
    vmem_est = 2 * 2 * tm * tc * itemsize + 3 * tm * tc * 4 + (1 << 20)
    vmem_limit = int(min(64 << 20, max(32 << 20, vmem_est)))

    partials = pl.pallas_call(
        _contrastive_kernel,
        out_shape=jax.ShapeDtypeStruct((gm, 8, 128), jnp.float32),
        grid=(gm, gc),
        in_specs=[
            pl.BlockSpec(memory_space=pltpu.SMEM),              # temperature param
            pl.BlockSpec(memory_space=pltpu.SMEM),              # [offset, n, c]
            pl.BlockSpec((tm, tc), lambda i, j: (i, j)),        # logits_per_a tile
            pl.BlockSpec((tm, tc), lambda i, j: (i, j)),        # logits_per_b tile
        ],
        out_specs=pl.BlockSpec((1, 8, 128), lambda i, j: (i, 0, 0)),
        scratch_shapes=[
            pltpu.VMEM((2, tm, 1), jnp.float32),   # running max      (a, b)
            pltpu.VMEM((2, tm, 1), jnp.float32),   # running sum-exp  (a, b)
            pltpu.VMEM((2, tm, 1), jnp.float32),   # target (diag) accumulator (a, b)
        ],
        compiler_params=pltpu.CompilerParams(
            dimension_semantics=("parallel", "arbitrary"),
            vmem_limit_bytes=vmem_limit),
        cost_estimate=cost,
    )(temp_arr, dims_arr, logits_per_a, logits_per_b)

    # Tiny final reduction in plain JAX (partials are per-row-tile sums of lse-target).
    return jnp.sum(partials[:, 0, 0]) / (2.0 * n)


def _reference_loss(logits_per_a, logits_per_b, temp_param, local_rank=0):
    # Pure-JAX reference mirroring the PyTorch module.
    n = logits_per_a.shape[0]
    temp = jnp.clip(jnp.exp(jnp.float32(temp_param)), 1.0, 100.0)
    labels = jnp.arange(n) + n * local_rank

    def ce(x):
        z = x.astype(jnp.float32) * temp
        logp = jax.nn.log_softmax(z, axis=-1)
        return -jnp.mean(logp[jnp.arange(n), labels])

    return (ce(logits_per_a) + ce(logits_per_b)) / 2.0


if __name__ == "__main__":
    key = jax.random.PRNGKey(0)
    k_a, k_b, k_c, k_d, k_e, k_f = jax.random.split(key, 6)
    temp_param = jnp.float32(3.9)   # module default init

    # 1) 256x256 f32 with explicit 128x128 tiles -> 2x2 grid: exercises streaming LSE,
    #    init/accumulate/finalize across class tiles and the "parallel" row axis.
    n1 = c1 = 256
    a1 = jax.random.normal(k_a, (n1, c1), dtype=jnp.float32)
    b1 = jax.random.normal(k_b, (n1, c1), dtype=jnp.float32)
    loss1 = jax.block_until_ready(
        contrastive_loss(a1, b1, temp_param, local_rank=0,
                         block_rows=128, block_cols=128))
    ref1 = _reference_loss(a1, b1, temp_param, local_rank=0)
    assert jnp.allclose(loss1, ref1, rtol=1e-4, atol=1e-4), (loss1, ref1)

    # 2) Ragged 200x200 bf16 with default tiles: no wrapper jnp.pad, two row tiles
    #    (last one overhangs -> finalize row-drop), one full-width class tile,
    #    halved HBM traffic (all math still f32 in-kernel).
    n2 = c2 = 200
    a2 = jax.random.normal(k_c, (n2, c2), jnp.float32).astype(jnp.bfloat16)
    b2 = jax.random.normal(k_d, (n2, c2), jnp.float32).astype(jnp.bfloat16)
    loss2 = jax.block_until_ready(contrastive_loss(a2, b2, temp_param, local_rank=0))
    ref2 = _reference_loss(a2, b2, temp_param, local_rank=0)
    assert jnp.allclose(loss2, ref2, rtol=2e-2, atol=2e-2), (loss2, ref2)

    # 3) Multi-rank label offset + ragged class dim (64x200, local_rank=2, labels 128..191)
    #    with 128-wide class tiles: exercises the gated column-overhang mask and the
    #    diagonal gather landing inside the overhanging tile.
    n3, c3 = 64, 200
    a3 = jax.random.normal(k_e, (n3, c3), dtype=jnp.float32)
    b3 = jax.random.normal(k_f, (n3, c3), dtype=jnp.float32)
    loss3 = jax.block_until_ready(
        contrastive_loss(a3, b3, temp_param, local_rank=2, block_cols=128))
    ref3 = _reference_loss(a3, b3, temp_param, local_rank=2)
    assert jnp.allclose(loss3, ref3, rtol=1e-4, atol=1e-4), (loss3, ref3)

    print("KERNEL_OK")
</pallas_src>

<mosaic_0001>
module attributes {stable_mosaic.version = 11 : i64} {
  func.func @_contrastive_kernel(%arg0: i32, %arg1: i32, %arg2: memref<1xf32, #tpu.memory_space<smem>>, %arg3: memref<3xi32, #tpu.memory_space<smem>>, %arg4: memref<128x128xf32, #tpu.memory_space<vmem>>, %arg5: memref<128x128xf32, #tpu.memory_space<vmem>>, %arg6: memref<1x8x128xf32, #tpu.memory_space<vmem>>, %arg7: memref<2x128x1xf32, #tpu.memory_space<vmem>>, %arg8: memref<2x128x1xf32, #tpu.memory_space<vmem>>, %arg9: memref<2x128x1xf32, #tpu.memory_space<vmem>>) attributes {dimension_semantics = [#tpu.dimension_semantics<parallel>, #tpu.dimension_semantics<arbitrary>], iteration_bounds = array<i64: 2, 2>, scalar_prefetch = 0 : i64, scratch_operands = 3 : i64, tpu.core_type = #tpu.core_type<tc>, window_params = [{transform_indices = @transform_0, window_bounds = array<i64: 1>}, {transform_indices = @transform_1, window_bounds = array<i64: 3>}, {transform_indices = @transform_2, window_bounds = array<i64: 128, 128>}, {transform_indices = @transform_3, window_bounds = array<i64: 128, 128>}, {transform_indices = @transform_4, window_bounds = array<i64: 1, 8, 128>}]} {
    %c0 = arith.constant 0 : index
    %0 = memref.load %arg2[%c0] : memref<1xf32, #tpu.memory_space<smem>>
    %1 = math.exp %0 : f32
    %cst = arith.constant 1.000000e+00 : f32
    %cst_0 = arith.constant 1.000000e+02 : f32
    %2 = arith.maximumf %cst, %1 : f32
    %3 = arith.minimumf %cst_0, %2 : f32
    %c0_1 = arith.constant 0 : index
    %4 = memref.load %arg3[%c0_1] : memref<3xi32, #tpu.memory_space<smem>>
    %c1 = arith.constant 1 : index
    %5 = memref.load %arg3[%c1] : memref<3xi32, #tpu.memory_space<smem>>
    %c2 = arith.constant 2 : index
    %6 = memref.load %arg3[%c2] : memref<3xi32, #tpu.memory_space<smem>>
    %c0_i32 = arith.constant 0 : i32
    %7 = arith.cmpi eq, %arg1, %c0_i32 : i32
    %8 = arith.extui %7 : i1 to i32
    %c0_i32_2 = arith.constant 0 : i32
    %9 = arith.cmpi ne, %8, %c0_i32_2 : i32
    scf.if %9 {
      %cst_16 = arith.constant 0xFF800000 : f32
      %41 = vector.broadcast %cst_16 : f32 to vector<2x128x1xf32>
      %c0_17 = arith.constant 0 : index
      %c0_18 = arith.constant 0 : index
      %c0_19 = arith.constant 0 : index
      %42 = vector.load %arg7[%c0_17, %c0_18, %c0_19] : memref<2x128x1xf32, #tpu.memory_space<vmem>>, vector<2x128x1xf32>
      tpu.vector_store %arg7[%c0_17, %c0_18, %c0_19], %41 {strides = array<i32>} : memref<2x128x1xf32, #tpu.memory_space<vmem>>, vector<2x128x1xf32>,
      %cst_20 = arith.constant 0.000000e+00 : f32
      %43 = vector.broadcast %cst_20 : f32 to vector<2x128x1xf32>
      %c0_21 = arith.constant 0 : index
      %c0_22 = arith.constant 0 : index
      %c0_23 = arith.constant 0 : index
      %44 = vector.load %arg8[%c0_21, %c0_22, %c0_23] : memref<2x128x1xf32, #tpu.memory_space<vmem>>, vector<2x128x1xf32>
      tpu.vector_store %arg8[%c0_21, %c0_22, %c0_23], %43 {strides = array<i32>} : memref<2x128x1xf32, #tpu.memory_space<vmem>>, vector<2x128x1xf32>,
      %cst_24 = arith.constant 0.000000e+00 : f32
      %45 = vector.broadcast %cst_24 : f32 to vector<2x128x1xf32>
      %c0_25 = arith.constant 0 : index
      %c0_26 = arith.constant 0 : index
      %c0_27 = arith.constant 0 : index
      %46 = vector.load %arg9[%c0_25, %c0_26, %c0_27] : memref<2x128x1xf32, #tpu.memory_space<vmem>>, vector<2x128x1xf32>
      tpu.vector_store %arg9[%c0_25, %c0_26, %c0_27], %45 {strides = array<i32>} : memref<2x128x1xf32, #tpu.memory_space<vmem>>, vector<2x128x1xf32>,
    } else {
    }
    %c128_i32 = arith.constant 128 : i32
    %10 = arith.muli %arg1, %c128_i32 : i32
    %c128_i32_3 = arith.constant 128 : i32
    %11 = arith.addi %10, %c128_i32_3 : i32
    %12 = arith.cmpi sgt, %11, %6 : i32
    %c128_i32_4 = arith.constant 128 : i32
    %13 = arith.muli %arg0, %c128_i32_4 : i32
    %14 = arith.addi %13, %4 : i32
    %c128_i32_5 = arith.constant 128 : i32
    %15 = arith.addi %14, %c128_i32_5 : i32
    %16 = arith.cmpi slt, %14, %11 : i32
    %17 = arith.cmpi sgt, %15, %10 : i32
    %18 = arith.andi %16, %17 : i1
    %19 = tpu.iota {dimensions = array<i32: 1>} : vector<1x128xi32>
    %20 = vector.broadcast %10 : i32 to vector<1x128xi32>
    %21 = arith.addi %20, %19 : vector<1x128xi32>
    %c0_6 = arith.constant 0 : index
    %c0_7 = arith.constant 0 : index
    %22 = vector.load %arg4[%c0_6, %c0_7] : memref<128x128xf32, #tpu.memory_space<vmem>>, vector<128x128xf32>
    %23 = vector.broadcast %3 : f32 to vector<128x128xf32>
    %24 = arith.mulf %22, %23 : vector<128x128xf32>
    %25 = arith.extui %12 : i1 to i32
    %c0_i32_8 = arith.constant 0 : i32
    %26 = arith.cmpi ne, %25, %c0_i32_8 : i32
    scf.if %26 {
      %41 = vector.broadcast %6 : i32 to vector<1x128xi32>
      %42 = arith.cmpi slt, %21, %41 : vector<1x128xi32>
      %cst_16 = arith.constant 0xFF800000 : f32
      %43 = vector.shape_cast %42 : vector<1x128xi1> to vector<1x128xi1>
      %44 = vector.broadcast %43 : vector<1x128xi1> to vector<128x128xi1>
      %45 = vector.broadcast %cst_16 : f32 to vector<128x128xf32>
      %46 = arith.select %44, %24, %45 : vector<128x128xi1>, vector<128x128xf32>
      %c0_17 = arith.constant 0 : index
      %c0_18 = arith.constant 0 : index
      %c0_19 = arith.constant 0 : index
      %47 = vector.load %arg7[%c0_17, %c0_18, %c0_19] : memref<2x128x1xf32, #tpu.memory_space<vmem>>, vector<1x128x1xf32>
      %48 = vector.shape_cast %47 : vector<1x128x1xf32> to vector<128x1xf32>
      %cst_20 = arith.constant dense<0xFF800000> : vector<128xf32>
      %49 = vector.multi_reduction <maximumf>, %46, %cst_20 [1] : vector<128x128xf32> to vector<128xf32>
      %50 = vector.shape_cast %49 : vector<128xf32> to vector<128x1xf32>
      %51 = arith.maximumf %48, %50 : vector<128x1xf32>
      %52 = arith.subf %48, %51 : vector<128x1xf32>
      %53 = math.exp %52 : vector<128x1xf32>
      %c0_21 = arith.constant 0 : index
      %c0_22 = arith.constant 0 : index
      %c0_23 = arith.constant 0 : index
      %54 = vector.load %arg8[%c0_21, %c0_22, %c0_23] : memref<2x128x1xf32, #tpu.memory_space<vmem>>, vector<1x128x1xf32>
      %55 = vector.shape_cast %54 : vector<1x128x1xf32> to vector<128x1xf32>
      %56 = arith.mulf %53, %55 : vector<128x1xf32>
      %57 = vector.broadcast %51 : vector<128x1xf32> to vector<128x128xf32>
      %58 = arith.subf %46, %57 : vector<128x128xf32>
      %59 = math.exp %58 : vector<128x128xf32>
      %cst_24 = arith.constant dense<0.000000e+00> : vector<128xf32>
      %60 = vector.multi_reduction <add>, %59, %cst_24 [1] : vector<128x128xf32> to vector<128xf32>
      %61 = vector.shape_cast %60 : vector<128xf32> to vector<128x1xf32>
      %62 = arith.addf %56, %61 : vector<128x1xf32>
      %c0_25 = arith.constant 0 : index
      %c0_26 = arith.constant 0 : index
      %c0_27 = arith.constant 0 : index
      %63 = vector.load %arg8[%c0_25, %c0_26, %c0_27] : memref<2x128x1xf32, #tpu.memory_space<vmem>>, vector<1x128x1xf32>
      %64 = vector.shape_cast %63 : vector<1x128x1xf32> to vector<128x1xf32>
      %65 = vector.shape_cast %62 : vector<128x1xf32> to vector<1x128x1xf32>
      tpu.vector_store %arg8[%c0_25, %c0_26, %c0_27], %65 {strides = array<i32>} : memref<2x128x1xf32, #tpu.memory_space<vmem>>, vector<1x128x1xf32>,
      %c0_28 = arith.constant 0 : index
      %c0_29 = arith.constant 0 : index
      %c0_30 = arith.constant 0 : index
      %66 = vector.load %arg7[%c0_28, %c0_29, %c0_30] : memref<2x128x1xf32, #tpu.memory_space<vmem>>, vector<1x128x1xf32>
      %67 = vector.shape_cast %66 : vector<1x128x1xf32> to vector<128x1xf32>
      %68 = vector.shape_cast %51 : vector<128x1xf32> to vector<1x128x1xf32>
      tpu.vector_store %arg7[%c0_28, %c0_29, %c0_30], %68 {strides = array<i32>} : memref<2x128x1xf32, #tpu.memory_space<vmem>>, vector<1x128x1xf32>,
      %69 = arith.extui %18 : i1 to i32
      %c0_i32_31 = arith.constant 0 : i32
      %70 = arith.cmpi ne, %69, %c0_i32_31 : i32
      scf.if %70 {
        %c128_i32_32 = arith.constant 128 : i32
        %71 = arith.muli %arg0, %c128_i32_32 : i32
        %72 = tpu.iota {dimensions = array<i32: 0>} : vector<128x1xi32>
        %73 = vector.broadcast %71 : i32 to vector<128x1xi32>
        %74 = arith.addi %73, %72 : vector<128x1xi32>
        %75 = vector.broadcast %4 : i32 to vector<128x1xi32>
        %76 = arith.addi %74, %75 : vector<128x1xi32>
        %77 = vector.broadcast %21 : vector<1x128xi32> to vector<128x128xi32>
        %78 = vector.broadcast %76 : vector<128x1xi32> to vector<128x128xi32>
        %79 = arith.cmpi eq, %77, %78 : vector<128x128xi32>
        %c0_33 = arith.constant 0 : index
        %c0_34 = arith.constant 0 : index
        %c0_35 = arith.constant 0 : index
        %80 = vector.load %arg9[%c0_33, %c0_34, %c0_35] : memref<2x128x1xf32, #tpu.memory_space<vmem>>, vector<1x128x1xf32>
        %81 = vector.shape_cast %80 : vector<1x128x1xf32> to vector<128x1xf32>
        %cst_36 = arith.constant 0.000000e+00 : f32
        %82 = vector.broadcast %cst_36 : f32 to vector<128x128xf32>
        %83 = arith.select %79, %46, %82 : vector<128x128xi1>, vector<128x128xf32>
        %cst_37 = arith.constant dense<0.000000e+00> : vector<128xf32>
        %84 = vector.multi_reduction <add>, %83, %cst_37 [1] : vector<128x128xf32> to vector<128xf32>
        %85 = vector.shape_cast %84 : vector<128xf32> to vector<128x1xf32>
        %86 = arith.addf %81, %85 : vector<128x1xf32>
        %c0_38 = arith.constant 0 : index
        %c0_39 = arith.constant 0 : index
        %c0_40 = arith.constant 0 : index
        %87 = vector.load %arg9[%c0_38, %c0_39, %c0_40] : memref<2x128x1xf32, #tpu.memory_space<vmem>>, vector<1x128x1xf32>
        %88 = vector.shape_cast %87 : vector<1x128x1xf32> to vector<128x1xf32>
        %89 = vector.shape_cast %86 : vector<128x1xf32> to vector<1x128x1xf32>
        tpu.vector_store %arg9[%c0_38, %c0_39, %c0_40], %89 {strides = array<i32>} : memref<2x128x1xf32, #tpu.memory_space<vmem>>, vector<1x128x1xf32>,
      } else {
      }
    } else {
    }
    %true = arith.constant true
    %27 = arith.xori %12, %true : i1
    %28 = arith.extui %27 : i1 to i32
    %c0_i32_9 = arith.constant 0 : i32
    %29 = arith.cmpi ne, %28, %c0_i32_9 : i32
    scf.if %29 {
      %c0_16 = arith.constant 0 : index
      %c0_17 = arith.constant 0 : index
      %c0_18 = arith.constant 0 : index
      %41 = vector.load %arg7[%c0_16, %c0_17, %c0_18] : memref<2x128x1xf32, #tpu.memory_space<vmem>>, vector<1x128x1xf32>
      %42 = vector.shape_cast %41 : vector<1x128x1xf32> to vector<128x1xf32>
      %cst_19 = arith.constant dense<0xFF800000> : vector<128xf32>
      %43 = vector.multi_reduction <maximumf>, %24, %cst_19 [1] : vector<128x128xf32> to vector<128xf32>
      %44 = vector.shape_cast %43 : vector<128xf32> to vector<128x1xf32>
      %45 = arith.maximumf %42, %44 : vector<128x1xf32>
      %46 = arith.subf %42, %45 : vector<128x1xf32>
      %47 = math.exp %46 : vector<128x1xf32>
      %c0_20 = arith.constant 0 : index
      %c0_21 = arith.constant 0 : index
      %c0_22 = arith.constant 0 : index
      %48 = vector.load %arg8[%c0_20, %c0_21, %c0_22] : memref<2x128x1xf32, #tpu.memory_space<vmem>>, vector<1x128x1xf32>
      %49 = vector.shape_cast %48 : vector<1x128x1xf32> to vector<128x1xf32>
      %50 = arith.mulf %47, %49 : vector<128x1xf32>
      %51 = vector.broadcast %45 : vector<128x1xf32> to vector<128x128xf32>
      %52 = arith.subf %24, %51 : vector<128x128xf32>
      %53 = math.exp %52 : vector<128x128xf32>
      %cst_23 = arith.constant dense<0.000000e+00> : vector<128xf32>
      %54 = vector.multi_reduction <add>, %53, %cst_23 [1] : vector<128x128xf32> to vector<128xf32>
      %55 = vector.shape_cast %54 : vector<128xf32> to vector<128x1xf32>
      %56 = arith.addf %50, %55 : vector<128x1xf32>
      %c0_24 = arith.constant 0 : index
      %c0_25 = arith.constant 0 : index
      %c0_26 = arith.constant 0 : index
      %57 = vector.load %arg8[%c0_24, %c0_25, %c0_26] : memref<2x128x1xf32, #tpu.memory_space<vmem>>, vector<1x128x1xf32>
      %58 = vector.shape_cast %57 : vector<1x128x1xf32> to vector<128x1xf32>
      %59 = vector.shape_cast %56 : vector<128x1xf32> to vector<1x128x1xf32>
      tpu.vector_store %arg8[%c0_24, %c0_25, %c0_26], %59 {strides = array<i32>} : memref<2x128x1xf32, #tpu.memory_space<vmem>>, vector<1x128x1xf32>,
      %c0_27 = arith.constant 0 : index
      %c0_28 = arith.constant 0 : index
      %c0_29 = arith.constant 0 : index
      %60 = vector.load %arg7[%c0_27, %c0_28, %c0_29] : memref<2x128x1xf32, #tpu.memory_space<vmem>>, vector<1x128x1xf32>
      %61 = vector.shape_cast %60 : vector<1x128x1xf32> to vector<128x1xf32>
      %62 = vector.shape_cast %45 : vector<128x1xf32> to vector<1x128x1xf32>
      tpu.vector_store %arg7[%c0_27, %c0_28, %c0_29], %62 {strides = array<i32>} : memref<2x128x1xf32, #tpu.memory_space<vmem>>, vector<1x128x1xf32>,
      %63 = arith.extui %18 : i1 to i32
      %c0_i32_30 = arith.constant 0 : i32
      %64 = arith.cmpi ne, %63, %c0_i32_30 : i32
      scf.if %64 {
        %c128_i32_31 = arith.constant 128 : i32
        %65 = arith.muli %arg0, %c128_i32_31 : i32
        %66 = tpu.iota {dimensions = array<i32: 0>} : vector<128x1xi32>
        %67 = vector.broadcast %65 : i32 to vector<128x1xi32>
        %68 = arith.addi %67, %66 : vector<128x1xi32>
        %69 = vector.broadcast %4 : i32 to vector<128x1xi32>
        %70 = arith.addi %68, %69 : vector<128x1xi32>
        %71 = vector.broadcast %21 : vector<1x128xi32> to vector<128x128xi32>
        %72 = vector.broadcast %70 : vector<128x1xi32> to vector<128x128xi32>
        %73 = arith.cmpi eq, %71, %72 : vector<128x128xi32>
        %c0_32 = arith.constant 0 : index
        %c0_33 = arith.constant 0 : index
        %c0_34 = arith.constant 0 : index
        %74 = vector.load %arg9[%c0_32, %c0_33, %c0_34] : memref<2x128x1xf32, #tpu.memory_space<vmem>>, vector<1x128x1xf32>
        %75 = vector.shape_cast %74 : vector<1x128x1xf32> to vector<128x1xf32>
        %cst_35 = arith.constant 0.000000e+00 : f32
        %76 = vector.broadcast %cst_35 : f32 to vector<128x128xf32>
        %77 = arith.select %73, %24, %76 : vector<128x128xi1>, vector<128x128xf32>
        %cst_36 = arith.constant dense<0.000000e+00> : vector<128xf32>
        %78 = vector.multi_reduction <add>, %77, %cst_36 [1] : vector<128x128xf32> to vector<128xf32>
        %79 = vector.shape_cast %78 : vector<128xf32> to vector<128x1xf32>
        %80 = arith.addf %75, %79 : vector<128x1xf32>
        %c0_37 = arith.constant 0 : index
        %c0_38 = arith.constant 0 : index
        %c0_39 = arith.constant 0 : index
        %81 = vector.load %arg9[%c0_37, %c0_38, %c0_39] : memref<2x128x1xf32, #tpu.memory_space<vmem>>, vector<1x128x1xf32>
        %82 = vector.shape_cast %81 : vector<1x128x1xf32> to vector<128x1xf32>
        %83 = vector.shape_cast %80 : vector<128x1xf32> to vector<1x128x1xf32>
        tpu.vector_store %arg9[%c0_37, %c0_38, %c0_39], %83 {strides = array<i32>} : memref<2x128x1xf32, #tpu.memory_space<vmem>>, vector<1x128x1xf32>,
      } else {
      }
    } else {
    }
    %c0_10 = arith.constant 0 : index
    %c0_11 = arith.constant 0 : index
    %30 = vector.load %arg5[%c0_10, %c0_11] : memref<128x128xf32, #tpu.memory_space<vmem>>, vector<128x128xf32>
    %31 = vector.broadcast %3 : f32 to vector<128x128xf32>
    %32 = arith.mulf %30, %31 : vector<128x128xf32>
    %33 = arith.extui %12 : i1 to i32
    %c0_i32_12 = arith.constant 0 : i32
    %34 = arith.cmpi ne, %33, %c0_i32_12 : i32
    scf.if %34 {
      %41 = vector.broadcast %6 : i32 to vector<1x128xi32>
      %42 = arith.cmpi slt, %21, %41 : vector<1x128xi32>
      %cst_16 = arith.constant 0xFF800000 : f32
      %43 = vector.shape_cast %42 : vector<1x128xi1> to vector<1x128xi1>
      %44 = vector.broadcast %43 : vector<1x128xi1> to vector<128x128xi1>
      %45 = vector.broadcast %cst_16 : f32 to vector<128x128xf32>
      %46 = arith.select %44, %32, %45 : vector<128x128xi1>, vector<128x128xf32>
      %c1_17 = arith.constant 1 : index
      %c0_18 = arith.constant 0 : index
      %c0_19 = arith.constant 0 : index
      %47 = vector.load %arg7[%c1_17, %c0_18, %c0_19] : memref<2x128x1xf32, #tpu.memory_space<vmem>>, vector<1x128x1xf32>
      %48 = vector.shape_cast %47 : vector<1x128x1xf32> to vector<128x1xf32>
      %cst_20 = arith.constant dense<0xFF800000> : vector<128xf32>
      %49 = vector.multi_reduction <maximumf>, %46, %cst_20 [1] : vector<128x128xf32> to vector<128xf32>
      %50 = vector.shape_cast %49 : vector<128xf32> to vector<128x1xf32>
      %51 = arith.maximumf %48, %50 : vector<128x1xf32>
      %52 = arith.subf %48, %51 : vector<128x1xf32>
      %53 = math.exp %52 : vector<128x1xf32>
      %c1_21 = arith.constant 1 : index
      %c0_22 = arith.constant 0 : index
      %c0_23 = arith.constant 0 : index
      %54 = vector.load %arg8[%c1_21, %c0_22, %c0_23] : memref<2x128x1xf32, #tpu.memory_space<vmem>>, vector<1x128x1xf32>
      %55 = vector.shape_cast %54 : vector<1x128x1xf32> to vector<128x1xf32>
      %56 = arith.mulf %53, %55 : vector<128x1xf32>
      %57 = vector.broadcast %51 : vector<128x1xf32> to vector<128x128xf32>
      %58 = arith.subf %46, %57 : vector<128x128xf32>
      %59 = math.exp %58 : vector<128x128xf32>
      %cst_24 = arith.constant dense<0.000000e+00> : vector<128xf32>
      %60 = vector.multi_reduction <add>, %59, %cst_24 [1] : vector<128x128xf32> to vector<128xf32>
      %61 = vector.shape_cast %60 : vector<128xf32> to vector<128x1xf32>
      %62 = arith.addf %56, %61 : vector<128x1xf32>
      %c1_25 = arith.constant 1 : index
      %c0_26 = arith.constant 0 : index
      %c0_27 = arith.constant 0 : index
      %63 = vector.load %arg8[%c1_25, %c0_26, %c0_27] : memref<2x128x1xf32, #tpu.memory_space<vmem>>, vector<1x128x1xf32>
      %64 = vector.shape_cast %63 : vector<1x128x1xf32> to vector<128x1xf32>
      %65 = vector.shape_cast %62 : vector<128x1xf32> to vector<1x128x1xf32>
      tpu.vector_store %arg8[%c1_25, %c0_26, %c0_27], %65 {strides = array<i32>} : memref<2x128x1xf32, #tpu.memory_space<vmem>>, vector<1x128x1xf32>,
      %c1_28 = arith.constant 1 : index
      %c0_29 = arith.constant 0 : index
      %c0_30 = arith.constant 0 : index
      %66 = vector.load %arg7[%c1_28, %c0_29, %c0_30] : memref<2x128x1xf32, #tpu.memory_space<vmem>>, vector<1x128x1xf32>
      %67 = vector.shape_cast %66 : vector<1x128x1xf32> to vector<128x1xf32>
      %68 = vector.shape_cast %51 : vector<128x1xf32> to vector<1x128x1xf32>
      tpu.vector_store %arg7[%c1_28, %c0_29, %c0_30], %68 {strides = array<i32>} : memref<2x128x1xf32, #tpu.memory_space<vmem>>, vector<1x128x1xf32>,
      %69 = arith.extui %18 : i1 to i32
      %c0_i32_31 = arith.constant 0 : i32
      %70 = arith.cmpi ne, %69, %c0_i32_31 : i32
      scf.if %70 {
        %c128_i32_32 = arith.constant 128 : i32
        %71 = arith.muli %arg0, %c128_i32_32 : i32
        %72 = tpu.iota {dimensions = array<i32: 0>} : vector<128x1xi32>
        %73 = vector.broadcast %71 : i32 to vector<128x1xi32>
        %74 = arith.addi %73, %72 : vector<128x1xi32>
        %75 = vector.broadcast %4 : i32 to vector<128x1xi32>
        %76 = arith.addi %74, %75 : vector<128x1xi32>
        %77 = vector.broadcast %21 : vector<1x128xi32> to vector<128x128xi32>
        %78 = vector.broadcast %76 : vector<128x1xi32> to vector<128x128xi32>
        %79 = arith.cmpi eq, %77, %78 : vector<128x128xi32>
        %c1_33 = arith.constant 1 : index
        %c0_34 = arith.constant 0 : index
        %c0_35 = arith.constant 0 : index
        %80 = vector.load %arg9[%c1_33, %c0_34, %c0_35] : memref<2x128x1xf32, #tpu.memory_space<vmem>>, vector<1x128x1xf32>
        %81 = vector.shape_cast %80 : vector<1x128x1xf32> to vector<128x1xf32>
        %cst_36 = arith.constant 0.000000e+00 : f32
        %82 = vector.broadcast %cst_36 : f32 to vector<128x128xf32>
        %83 = arith.select %79, %46, %82 : vector<128x128xi1>, vector<128x128xf32>
        %cst_37 = arith.constant dense<0.000000e+00> : vector<128xf32>
        %84 = vector.multi_reduction <add>, %83, %cst_37 [1] : vector<128x128xf32> to vector<128xf32>
        %85 = vector.shape_cast %84 : vector<128xf32> to vector<128x1xf32>
        %86 = arith.addf %81, %85 : vector<128x1xf32>
        %c1_38 = arith.constant 1 : index
        %c0_39 = arith.constant 0 : index
        %c0_40 = arith.constant 0 : index
        %87 = vector.load %arg9[%c1_38, %c0_39, %c0_40] : memref<2x128x1xf32, #tpu.memory_space<vmem>>, vector<1x128x1xf32>
        %88 = vector.shape_cast %87 : vector<1x128x1xf32> to vector<128x1xf32>
        %89 = vector.shape_cast %86 : vector<128x1xf32> to vector<1x128x1xf32>
        tpu.vector_store %arg9[%c1_38, %c0_39, %c0_40], %89 {strides = array<i32>} : memref<2x128x1xf32, #tpu.memory_space<vmem>>, vector<1x128x1xf32>,
      } else {
      }
    } else {
    }
    %true_13 = arith.constant true
    %35 = arith.xori %12, %true_13 : i1
    %36 = arith.extui %35 : i1 to i32
    %c0_i32_14 = arith.constant 0 : i32
    %37 = arith.cmpi ne, %36, %c0_i32_14 : i32
    scf.if %37 {
      %c1_16 = arith.constant 1 : index
      %c0_17 = arith.constant 0 : index
      %c0_18 = arith.constant 0 : index
      %41 = vector.load %arg7[%c1_16, %c0_17, %c0_18] : memref<2x128x1xf32, #tpu.memory_space<vmem>>, vector<1x128x1xf32>
      %42 = vector.shape_cast %41 : vector<1x128x1xf32> to vector<128x1xf32>
      %cst_19 = arith.constant dense<0xFF800000> : vector<128xf32>
      %43 = vector.multi_reduction <maximumf>, %32, %cst_19 [1] : vector<128x128xf32> to vector<128xf32>
      %44 = vector.shape_cast %43 : vector<128xf32> to vector<128x1xf32>
      %45 = arith.maximumf %42, %44 : vector<128x1xf32>
      %46 = arith.subf %42, %45 : vector<128x1xf32>
      %47 = math.exp %46 : vector<128x1xf32>
      %c1_20 = arith.constant 1 : index
      %c0_21 = arith.constant 0 : index
      %c0_22 = arith.constant 0 : index
      %48 = vector.load %arg8[%c1_20, %c0_21, %c0_22] : memref<2x128x1xf32, #tpu.memory_space<vmem>>, vector<1x128x1xf32>
      %49 = vector.shape_cast %48 : vector<1x128x1xf32> to vector<128x1xf32>
      %50 = arith.mulf %47, %49 : vector<128x1xf32>
      %51 = vector.broadcast %45 : vector<128x1xf32> to vector<128x128xf32>
      %52 = arith.subf %32, %51 : vector<128x128xf32>
      %53 = math.exp %52 : vector<128x128xf32>
      %cst_23 = arith.constant dense<0.000000e+00> : vector<128xf32>
      %54 = vector.multi_reduction <add>, %53, %cst_23 [1] : vector<128x128xf32> to vector<128xf32>
      %55 = vector.shape_cast %54 : vector<128xf32> to vector<128x1xf32>
      %56 = arith.addf %50, %55 : vector<128x1xf32>
      %c1_24 = arith.constant 1 : index
      %c0_25 = arith.constant 0 : index
      %c0_26 = arith.constant 0 : index
      %57 = vector.load %arg8[%c1_24, %c0_25, %c0_26] : memref<2x128x1xf32, #tpu.memory_space<vmem>>, vector<1x128x1xf32>
      %58 = vector.shape_cast %57 : vector<1x128x1xf32> to vector<128x1xf32>
      %59 = vector.shape_cast %56 : vector<128x1xf32> to vector<1x128x1xf32>
      tpu.vector_store %arg8[%c1_24, %c0_25, %c0_26], %59 {strides = array<i32>} : memref<2x128x1xf32, #tpu.memory_space<vmem>>, vector<1x128x1xf32>,
      %c1_27 = arith.constant 1 : index
      %c0_28 = arith.constant 0 : index
      %c0_29 = arith.constant 0 : index
      %60 = vector.load %arg7[%c1_27, %c0_28, %c0_29] : memref<2x128x1xf32, #tpu.memory_space<vmem>>, vector<1x128x1xf32>
      %61 = vector.shape_cast %60 : vector<1x128x1xf32> to vector<128x1xf32>
      %62 = vector.shape_cast %45 : vector<128x1xf32> to vector<1x128x1xf32>
      tpu.vector_store %arg7[%c1_27, %c0_28, %c0_29], %62 {strides = array<i32>} : memref<2x128x1xf32, #tpu.memory_space<vmem>>, vector<1x128x1xf32>,
      %63 = arith.extui %18 : i1 to i32
      %c0_i32_30 = arith.constant 0 : i32
      %64 = arith.cmpi ne, %63, %c0_i32_30 : i32
      scf.if %64 {
        %c128_i32_31 = arith.constant 128 : i32
        %65 = arith.muli %arg0, %c128_i32_31 : i32
        %66 = tpu.iota {dimensions = array<i32: 0>} : vector<128x1xi32>
        %67 = vector.broadcast %65 : i32 to vector<128x1xi32>
        %68 = arith.addi %67, %66 : vector<128x1xi32>
        %69 = vector.broadcast %4 : i32 to vector<128x1xi32>
        %70 = arith.addi %68, %69 : vector<128x1xi32>
        %71 = vector.broadcast %21 : vector<1x128xi32> to vector<128x128xi32>
        %72 = vector.broadcast %70 : vector<128x1xi32> to vector<128x128xi32>
        %73 = arith.cmpi eq, %71, %72 : vector<128x128xi32>
        %c1_32 = arith.constant 1 : index
        %c0_33 = arith.constant 0 : index
        %c0_34 = arith.constant 0 : index
        %74 = vector.load %arg9[%c1_32, %c0_33, %c0_34] : memref<2x128x1xf32, #tpu.memory_space<vmem>>, vector<1x128x1xf32>
        %75 = vector.shape_cast %74 : vector<1x128x1xf32> to vector<128x1xf32>
        %cst_35 = arith.constant 0.000000e+00 : f32
        %76 = vector.broadcast %cst_35 : f32 to vector<128x128xf32>
        %77 = arith.select %73, %32, %76 : vector<128x128xi1>, vector<128x128xf32>
        %cst_36 = arith.constant dense<0.000000e+00> : vector<128xf32>
        %78 = vector.multi_reduction <add>, %77, %cst_36 [1] : vector<128x128xf32> to vector<128xf32>
        %79 = vector.shape_cast %78 : vector<128xf32> to vector<128x1xf32>
        %80 = arith.addf %75, %79 : vector<128x1xf32>
        %c1_37 = arith.constant 1 : index
        %c0_38 = arith.constant 0 : index
        %c0_39 = arith.constant 0 : index
        %81 = vector.load %arg9[%c1_37, %c0_38, %c0_39] : memref<2x128x1xf32, #tpu.memory_space<vmem>>, vector<1x128x1xf32>
        %82 = vector.shape_cast %81 : vector<1x128x1xf32> to vector<128x1xf32>
        %83 = vector.shape_cast %80 : vector<128x1xf32> to vector<1x128x1xf32>
        tpu.vector_store %arg9[%c1_37, %c0_38, %c0_39], %83 {strides = array<i32>} : memref<2x128x1xf32, #tpu.memory_space<vmem>>, vector<1x128x1xf32>,
      } else {
      }
    } else {
    }
    %c1_i32 = arith.constant 1 : i32
    %38 = arith.cmpi eq, %arg1, %c1_i32 : i32
    %39 = arith.extui %38 : i1 to i32
    %c0_i32_15 = arith.constant 0 : i32
    %40 = arith.cmpi ne, %39, %c0_i32_15 : i32
    scf.if %40 {
      %c0_16 = arith.constant 0 : index
      %c0_17 = arith.constant 0 : index
      %c0_18 = arith.constant 0 : index
      %41 = vector.load %arg7[%c0_16, %c0_17, %c0_18] : memref<2x128x1xf32, #tpu.memory_space<vmem>>, vector<1x128x1xf32>
      %42 = vector.shape_cast %41 : vector<1x128x1xf32> to vector<128x1xf32>
      %c0_19 = arith.constant 0 : index
      %c0_20 = arith.constant 0 : index
      %c0_21 = arith.constant 0 : index
      %43 = vector.load %arg8[%c0_19, %c0_20, %c0_21] : memref<2x128x1xf32, #tpu.memory_space<vmem>>, vector<1x128x1xf32>
      %44 = vector.shape_cast %43 : vector<1x128x1xf32> to vector<128x1xf32>
      %45 = math.log %44 : vector<128x1xf32>
      %46 = arith.addf %42, %45 : vector<128x1xf32>
      %c1_22 = arith.constant 1 : index
      %c0_23 = arith.constant 0 : index
      %c0_24 = arith.constant 0 : index
      %47 = vector.load %arg7[%c1_22, %c0_23, %c0_24] : memref<2x128x1xf32, #tpu.memory_space<vmem>>, vector<1x128x1xf32>
      %48 = vector.shape_cast %47 : vector<1x128x1xf32> to vector<128x1xf32>
      %c1_25 = arith.constant 1 : index
      %c0_26 = arith.constant 0 : index
      %c0_27 = arith.constant 0 : index
      %49 = vector.load %arg8[%c1_25, %c0_26, %c0_27] : memref<2x128x1xf32, #tpu.memory_space<vmem>>, vector<1x128x1xf32>
      %50 = vector.shape_cast %49 : vector<1x128x1xf32> to vector<128x1xf32>
      %51 = math.log %50 : vector<128x1xf32>
      %52 = arith.addf %48, %51 : vector<128x1xf32>
      %c0_28 = arith.constant 0 : index
      %c0_29 = arith.constant 0 : index
      %c0_30 = arith.constant 0 : index
      %53 = vector.load %arg9[%c0_28, %c0_29, %c0_30] : memref<2x128x1xf32, #tpu.memory_space<vmem>>, vector<1x128x1xf32>
      %54 = vector.shape_cast %53 : vector<1x128x1xf32> to vector<128x1xf32>
      %55 = arith.subf %46, %54 : vector<128x1xf32>
      %c1_31 = arith.constant 1 : index
      %c0_32 = arith.constant 0 : index
      %c0_33 = arith.constant 0 : index
      %56 = vector.load %arg9[%c1_31, %c0_32, %c0_33] : memref<2x128x1xf32, #tpu.memory_space<vmem>>, vector<1x128x1xf32>
      %57 = vector.shape_cast %56 : vector<1x128x1xf32> to vector<128x1xf32>
      %58 = arith.subf %52, %57 : vector<128x1xf32>
      %59 = arith.addf %55, %58 : vector<128x1xf32>
      %c128_i32_34 = arith.constant 128 : i32
      %60 = arith.muli %arg0, %c128_i32_34 : i32
      %61 = tpu.iota {dimensions = array<i32: 0>} : vector<128x1xi32>
      %62 = vector.broadcast %60 : i32 to vector<128x1xi32>
      %63 = arith.addi %62, %61 : vector<128x1xi32>
      %64 = vector.broadcast %5 : i32 to vector<128x1xi32>
      %65 = arith.cmpi slt, %63, %64 : vector<128x1xi32>
      %cst_35 = arith.constant 0.000000e+00 : f32
      %66 = vector.broadcast %cst_35 : f32 to vector<128x1xf32>
      %67 = arith.select %65, %59, %66 : vector<128x1xi1>, vector<128x1xf32>
      %cst_36 = arith.constant 0.000000e+00 : f32
      %68 = vector.broadcast %cst_36 : f32 to vector<1x8x128xf32>
      %69 = vector.shape_cast %67 : vector<128x1xf32> to vector<1x128x1xf32>
      %cst_37 = arith.constant dense<0.000000e+00> : vector<1xf32>
      %70 = vector.multi_reduction <add>, %69, %cst_37 [1, 2] : vector<1x128x1xf32> to vector<1xf32>
      %71 = vector.shape_cast %70 : vector<1xf32> to vector<1x1x1xf32>
      %72 = vector.extract %71[0, 0, 0] : f32 from vector<1x1x1xf32>
      %73 = vector.broadcast %72 : f32 to vector<1x8x128xf32>
      %74 = arith.addf %68, %73 : vector<1x8x128xf32>
      %c0_38 = arith.constant 0 : index
      %c0_39 = arith.constant 0 : index
      %c0_40 = arith.constant 0 : index
      %75 = vector.load %arg6[%c0_38, %c0_39, %c0_40] : memref<1x8x128xf32, #tpu.memory_space<vmem>>, vector<1x8x128xf32>
      tpu.vector_store %arg6[%c0_38, %c0_39, %c0_40], %74 {strides = array<i32>} : memref<1x8x128xf32, #tpu.memory_space<vmem>>, vector<1x8x128xf32>,
    } else {
    }
    return
  }
  func.func @transform_0(%arg0: i32, %arg1: i32) -> i32 {
    %c0_i32 = arith.constant 0 : i32
    %c0_i32_0 = arith.constant 0 : i32
    return %c0_i32 : i32
  }
  func.func @transform_1(%arg0: i32, %arg1: i32) -> i32 {
    %c0_i32 = arith.constant 0 : i32
    %c0_i32_0 = arith.constant 0 : i32
    return %c0_i32 : i32
  }
  func.func @transform_2(%arg0: i32, %arg1: i32) -> (i32, i32) {
    %c0_i32 = arith.constant 0 : i32
    return %arg0, %arg1 : i32, i32
  }
  func.func @transform_3(%arg0: i32, %arg1: i32) -> (i32, i32) {
    %c0_i32 = arith.constant 0 : i32
    return %arg0, %arg1 : i32, i32
  }
  func.func @transform_4(%arg0: i32, %arg1: i32) -> (i32, i32, i32) {
    %c0_i32 = arith.constant 0 : i32
    %c0_i32_0 = arith.constant 0 : i32
    %c0_i32_1 = arith.constant 0 : i32
    return %arg0, %c0_i32, %c0_i32_0 : i32, i32, i32
  }
}

</mosaic_0001>

<llo_original>
// kernel: contrastive_loss.1
$region0: #{contrastive_loss.1}
  #allocation0 [shape = 'u32[]', space=smem, size = 0x4, offset = 0x4, fixed_abs, tag = 'smem constant byte address 0x4 - core index']
  #allocation1 [shape = 'u32[144,128]{1,0:T(1,128)}', space=vmem, size = 0x12000, scoped, tag = 'internal scratch']
  #allocation2 [shape = 'f32[2,128,1]{2,1,0:T(8,128)}', space=vmem, size = 0x20000, scoped, tag = 'scratch operand']
  #allocation3 [shape = 'f32[2,128,1]{2,1,0:T(8,128)}', space=vmem, size = 0x20000, scoped, tag = 'scratch operand']
  #allocation4 [shape = 'f32[2,128,1]{2,1,0:T(8,128)}', space=vmem, size = 0x20000, scoped, tag = 'scratch operand']
  #allocation5 [shape = 'f32[1]{0:T(128)S(6)}', space=smem, size = 0x200, scoped, tag = 'scoped memory for contrastive_loss.1']
  %s0 = inlined_call_operand.<no memory space> [shape: f32[1], index: 0, kind: input, shape index: {}]
  %s1 = inlined_call_operand.vmem [shape: s32[3], index: 1, kind: input, shape index: {}]
  %s2 = inlined_call_operand.hbm [shape: f32[256,256], index: 2, kind: input, shape index: {}]
  %s3 = inlined_call_operand.hbm [shape: f32[256,256], index: 3, kind: input, shape index: {}]
  %s4 = inlined_call_operand.vmem [shape: f32[2,8,128], index: 4, kind: output, shape index: {}]
  %s5 = sld [smem:[#allocation0]]
  $region101: #{contrastive_loss.1} parent=0
    _
  %s7 = ssub.s32 1, %s5
  %s8 = scalar_select 0, %s7, %s5
  %9 = sst [smem:[#allocation5]] %s0
  $region1: #{contrastive_loss.1} parent=0
    #allocation6 [shape = 'u8[512]{0}', space=smem, size = 0x200, scoped, tag = 'input window, operand 1, single buffered']
    #allocation7 [shape = 's32[2]{0}', space=sflag, size = 0x8, scoped, tag = 'scoped memory for contrastive_loss.1']
    #allocation8 [shape = 's32[2]{0}', space=sflag, size = 0x8, scoped, tag = 'scoped memory for contrastive_loss.1']
    #allocation9 [shape = 'u8[131072]{0}', space=vmem, size = 0x20000, scoped, tag = 'input window, operand 2']
    #allocation10 [shape = 'u8[131072]{0}', space=vmem, size = 0x20000, scoped, tag = 'input window, operand 3']
    #allocation11 [shape = 's32[2]{0}', space=sflag, size = 0x8, scoped, tag = 'scoped memory for contrastive_loss.1']
    %10 = vsyncpa [#allocation8], 0
    %11 = vsyncpa [#allocation7], 0
    %s12 = scalar_lea.sflag [#allocation7], 1
    %13 = vsyncpa %s12, 0
    %14 = vsyncpa [#allocation11], 0
    %s15 = scalar_lea.sflag [#allocation11], 1
    %16 = vsyncpa %s15, 0
    loop: start=0, step=1, limit=6
    $region2: #{contrastive_loss.1} parent=1 // loop_pre_header
      _
    $region3: #{contrastive_loss.1} parent=1 // loop_header
      %s18 = sphi 0, %s22
      %p19 = scmp.ge.s32.totalorder %s18, 6
      %s25 = sphi 0, %s37
      %s26 = sphi 0, %s33
      %s27 = sphi 0, %s25
      %s28 = sphi 0, %s26
      %s29 = sphi 0, %s27
      %s30 = sphi 0, %s28
      %s38 = sphi 0, %s38
      %s40 = sphi 0, %s38
      %s41 = sphi 0, %s40
      %s55 = sphi 0, %s41
      %s59 = sphi 0, %s59
      %s61 = sphi 0, %s59
      %s62 = sphi 0, %s61
      %s76 = sphi 0, %s62
      %s84 = sphi 0, %s86
      %s87 = sphi 0, %s84
      %s88 = sphi 0, %s87
      %s104 = sphi 0, %s88
      %s112 = sphi 0, %s114
      %s115 = sphi 0, %s112
      %s116 = sphi 0, %s115
      %s132 = sphi 0, %s116
      %s138 = sphi 0, %s140
      %s141 = sphi 0, %s138
      %s142 = sphi 0, %s141
      %s158 = sphi 0, %s142
    $region4: #{contrastive_loss.1} parent=1 // loop_header_branch
      %21 = sbr.rel (%p19) target = $region8
    $region5: #{contrastive_loss.1} parent=1 // loop_body
      %s23 = ssub.s32 %s18, 1
      %s24 = ssub.s32 %s18, 2
      %s31 = sadd.s32 1, %s26
      %p32 = scmp.ge.s32.totalorder %s31, 2
      %s33 = scalar_select %p32, 0, %s31
      %s34 = sadd.s32 1, %s25
      %s35 = scalar_select %p32, %s34, %s25
      %p36 = scmp.ge.s32.totalorder %s35, 2
      %s37 = scalar_select %p36, 0, %s35
      %s39 = sadd.s32 %s38, 1
      %p42 = scmp.eq.s32.totalorder %s18, 3
      %p43 = scmp.ne.s32.totalorder %s38, %s40
      %p44 = scmp.eq.s32.totalorder %s18, 0
      %p45 = por %p43, %p44
      %p46 = scmp.ne.s32.totalorder %s38, %s40
      %p47 = scmp.eq.s32.totalorder %s23, 3
      %p48 = por %p46, %p47
      %p49 = scmp.ne.s32.totalorder %s40, %s41
      %p50 = scmp.eq.s32.totalorder %s23, 0
      %p51 = por %p49, %p50
      %p52 = scmp.ne.s32.totalorder %s40, %s41
      %p53 = scmp.eq.s32.totalorder %s24, 3
      %p54 = por %p52, %p53
      %p56 = scmp.ne.s32.totalorder %s41, %s55
      %p57 = scmp.eq.s32.totalorder %s24, 0
      %p58 = por %p56, %p57
      %s60 = sadd.s32 %s59, 1
      %p63 = scmp.eq.s32.totalorder %s18, 3
      %p64 = scmp.ne.s32.totalorder %s59, %s61
      %p65 = scmp.eq.s32.totalorder %s18, 0
      %p66 = por %p64, %p65
      %p67 = scmp.ne.s32.totalorder %s59, %s61
      %p68 = scmp.eq.s32.totalorder %s23, 3
      %p69 = por %p67, %p68
      %p70 = scmp.ne.s32.totalorder %s61, %s62
      %p71 = scmp.eq.s32.totalorder %s23, 0
      %p72 = por %p70, %p71
      %p73 = scmp.ne.s32.totalorder %s61, %s62
      %p74 = scmp.eq.s32.totalorder %s24, 3
      %p75 = por %p73, %p74
      %p77 = scmp.ne.s32.totalorder %s62, %s76
      %p78 = scmp.eq.s32.totalorder %s24, 0
      %p79 = por %p77, %p78
      %s80 = ssub.s32 %s25, %s37
      %s81 = ssub.s32 %s26, %s33
      %s82 = sor.u32 %s80, %s81
      %p83 = scmp.eq.s32.totalorder %s82, 0
      %s85 = sadd.s32 %s84, 1
      %s86 = scalar_select %p83, %s84, %s85
      %p89 = pneg %p83
      %p90 = scmp.eq.s32.totalorder %s18, 3
      %p91 = por %p89, %p90
      %p92 = scmp.ne.s32.totalorder %s84, %s87
      %p93 = scmp.eq.s32.totalorder %s18, 0
      %p94 = por %p92, %p93
      %p95 = scmp.ne.s32.totalorder %s84, %s87
      %p96 = scmp.eq.s32.totalorder %s23, 3
      %p97 = por %p95, %p96
      %p98 = scmp.ne.s32.totalorder %s87, %s88
      %p99 = scmp.eq.s32.totalorder %s23, 0
      %p100 = por %p98, %p99
      %p101 = scmp.ne.s32.totalorder %s87, %s88
      %p102 = scmp.eq.s32.totalorder %s24, 3
      %p103 = por %p101, %p102
      %p105 = scmp.ne.s32.totalorder %s88, %s104
      %p106 = scmp.eq.s32.totalorder %s24, 0
      %p107 = por %p105, %p106
      %s108 = ssub.s32 %s25, %s37
      %s109 = ssub.s32 %s26, %s33
      %s110 = sor.u32 %s108, %s109
      %p111 = scmp.eq.s32.totalorder %s110, 0
      %s113 = sadd.s32 %s112, 1
      %s114 = scalar_select %p111, %s112, %s113
      %p117 = pneg %p111
      %p118 = scmp.eq.s32.totalorder %s18, 3
      %p119 = por %p117, %p118
      %p120 = scmp.ne.s32.totalorder %s112, %s115
      %p121 = scmp.eq.s32.totalorder %s18, 0
      %p122 = por %p120, %p121
      %p123 = scmp.ne.s32.totalorder %s112, %s115
      %p124 = scmp.eq.s32.totalorder %s23, 3
      %p125 = por %p123, %p124
      %p126 = scmp.ne.s32.totalorder %s115, %s116
      %p127 = scmp.eq.s32.totalorder %s23, 0
      %p128 = por %p126, %p127
      %p129 = scmp.ne.s32.totalorder %s115, %s116
      %p130 = scmp.eq.s32.totalorder %s24, 3
      %p131 = por %p129, %p130
      %p133 = scmp.ne.s32.totalorder %s116, %s132
      %p134 = scmp.eq.s32.totalorder %s24, 0
      %p135 = por %p133, %p134
      %s136 = ssub.s32 %s25, %s37
      %p137 = scmp.eq.s32.totalorder %s136, 0
      %s139 = sadd.s32 %s138, 1
      %s140 = scalar_select %p137, %s138, %s139
      %p143 = pneg %p137
      %p144 = scmp.eq.s32.totalorder %s18, 3
      %p145 = por %p143, %p144
      %p146 = scmp.ne.s32.totalorder %s138, %s141
      %p147 = scmp.eq.s32.totalorder %s18, 0
      %p148 = por %p146, %p147
      %p149 = scmp.ne.s32.totalorder %s138, %s141
      %p150 = scmp.eq.s32.totalorder %s23, 3
      %p151 = por %p149, %p150
      %p152 = scmp.ne.s32.totalorder %s141, %s142
      %p153 = scmp.eq.s32.totalorder %s23, 0
      %p154 = por %p152, %p153
      %p155 = scmp.ne.s32.totalorder %s141, %s142
      %p156 = scmp.eq.s32.totalorder %s24, 3
      %p157 = por %p155, %p156
      %p159 = scmp.ne.s32.totalorder %s142, %s158
      %p160 = scmp.eq.s32.totalorder %s24, 0
      %p161 = por %p159, %p160
      %p162 = scmp.le.s32.totalorder 1, %s18
      %p163 = scmp.lt.s32.totalorder %s18, 5
      %p164 = pnand %p162, %p163
      %p165 = pneg %p164
      // Predicated region
      $region9: #{contrastive_loss.1} parent=5 // pred_check
        _
      $region10: #{contrastive_loss.1} parent=5 // pred_check_branch
        %167 = sbr.rel (%p164) target = $region12
      $region11: #{contrastive_loss.1} parent=5 // pred_region
        %s168 = ssub.s32 %s18, 1
        // Predicated region
        $region13: #{contrastive_loss.1} parent=11 // pred_check
          %p169 = pneg %p51
        $region14: #{contrastive_loss.1} parent=11 // pred_check_branch
          %171 = sbr.rel (%p169) target = $region16
        $region15: #{contrastive_loss.1} parent=11 // pred_region
          _
        $region16: #{contrastive_loss.1} parent=11 // pred_fallthru
          _
        // Predicated region
        $region17: #{contrastive_loss.1} parent=11 // pred_check
          %p172 = pneg %p72
        $region18: #{contrastive_loss.1} parent=11 // pred_check_branch
          %174 = sbr.rel (%p172) target = $region20
        $region19: #{contrastive_loss.1} parent=11 // pred_region
          %s176 = ssub.s32 16, 16
          %177 = vsyncadd [#allocation8], %s176
          %s179 = sshll.u32 %s1, 4
          %s180 = int_to_ptr.vmem [resolvable:$true] %s179
          %182 = dma.vmem_to_smem %s180, 16, [#allocation6], [#allocation8]
        $region20: #{contrastive_loss.1} parent=11 // pred_fallthru
          _
      $region12: #{contrastive_loss.1} parent=5 // pred_fallthru
        _
      %p183 = scmp.lt.s32.totalorder %s18, 4
      // Predicated region
      $region21: #{contrastive_loss.1} parent=5 // pred_check
        %p184 = pneg %p183
      $region22: #{contrastive_loss.1} parent=5 // pred_check_branch
        %186 = sbr.rel (%p184) target = $region24
      $region23: #{contrastive_loss.1} parent=5 // pred_region
        // Predicated region
        $region25: #{contrastive_loss.1} parent=23 // pred_check
          %p187 = pneg %p94
        $region26: #{contrastive_loss.1} parent=23 // pred_check_branch
          %189 = sbr.rel (%p187) target = $region28
        $region27: #{contrastive_loss.1} parent=23 // pred_region
          %s190 = sand.u32 %s84, 1
          %s191 = scalar_lea.sflag [#allocation7], %s190
          %s192 = sand.u32 %s84, 1
          %s193 = smul.addr %s192, 128
          %s194 = scalar_lea.vmem [#allocation9], %s193
          %s195 = smul.u32 16, %s25
          %s197 = ssub.s32 2048, 2048
          %198 = vsyncadd %s191, %s197
          %s199 = smul.addr %s195, 2
          %s200 = sadd.s32 %s26, %s199
          %s201 = smul.addr %s200, 128
          %s202 = scalar_lea.hbm %s2, %s201
          %s203 = sshll.u32 %s194, 4
          %s204 = int_to_ptr.vmem [resolvable:$true] %s203
          %209 = dma.hbm_to_vmem [thread:$0]  %s202, 2048, %s204, %s191, 256, 128, 8
        $region28: #{contrastive_loss.1} parent=23 // pred_fallthru
          _
        // Predicated region
        $region29: #{contrastive_loss.1} parent=23 // pred_check
          %p210 = pneg %p122
        $region30: #{contrastive_loss.1} parent=23 // pred_check_branch
          %212 = sbr.rel (%p210) target = $region32
        $region31: #{contrastive_loss.1} parent=23 // pred_region
          %s213 = sand.u32 %s112, 1
          %s214 = scalar_lea.sflag [#allocation11], %s213
          %s215 = sand.u32 %s112, 1
          %s216 = smul.addr %s215, 128
          %s217 = scalar_lea.vmem [#allocation10], %s216
          %s218 = smul.u32 16, %s25
          %s220 = ssub.s32 2048, 2048
          %221 = vsyncadd %s214, %s220
          %s222 = smul.addr %s218, 2
          %s223 = sadd.s32 %s26, %s222
          %s224 = smul.addr %s223, 128
          %s225 = scalar_lea.hbm %s3, %s224
          %s226 = sshll.u32 %s217, 4
          %s227 = int_to_ptr.vmem [resolvable:$true] %s226
          %232 = dma.hbm_to_vmem [thread:$0]  %s225, 2048, %s227, %s214, 256, 128, 8
        $region32: #{contrastive_loss.1} parent=23 // pred_fallthru
          _
      $region24: #{contrastive_loss.1} parent=5 // pred_fallthru
        _
      %p233 = scmp.le.s32.totalorder 1, %s18
      %p234 = scmp.lt.s32.totalorder %s18, 5
      %p235 = pnand %p233, %p234
      %p236 = pneg %p235
      // Predicated region
      $region33: #{contrastive_loss.1} parent=5 // pred_check
        _
      $region34: #{contrastive_loss.1} parent=5 // pred_check_branch
        %238 = sbr.rel (%p235) target = $region36
      $region35: #{contrastive_loss.1} parent=5 // pred_region
        %s239 = ssub.s32 %s18, 1
        // Predicated region
        $region37: #{contrastive_loss.1} parent=35 // pred_check
          %p240 = pneg %p72
        $region38: #{contrastive_loss.1} parent=35 // pred_check_branch
          %242 = sbr.rel (%p240) target = $region40
        $region39: #{contrastive_loss.1} parent=35 // pred_region
          %243 = dma.done [#allocation8], 16
        $region40: #{contrastive_loss.1} parent=35 // pred_fallthru
          _
        %s244 = sand.u32 %s87, 1
        %s245 = scalar_lea.sflag [#allocation7], %s244
        %s246 = sand.u32 %s87, 1
        %s247 = smul.addr %s246, 128
        %s248 = scalar_lea.vmem [#allocation9], %s247
        // Predicated region
        $region41: #{contrastive_loss.1} parent=35 // pred_check
          %p249 = pneg %p100
        $region42: #{contrastive_loss.1} parent=35 // pred_check_branch
          %251 = sbr.rel (%p249) target = $region44
        $region43: #{contrastive_loss.1} parent=35 // pred_region
          %252 = dma.done %s245, 2048
        $region44: #{contrastive_loss.1} parent=35 // pred_fallthru
          _
        %s253 = sand.u32 %s115, 1
        %s254 = scalar_lea.sflag [#allocation11], %s253
        %s255 = sand.u32 %s115, 1
        %s256 = smul.addr %s255, 128
        %s257 = scalar_lea.vmem [#allocation10], %s256
        // Predicated region
        $region45: #{contrastive_loss.1} parent=35 // pred_check
          %p258 = pneg %p128
        $region46: #{contrastive_loss.1} parent=35 // pred_check_branch
          %260 = sbr.rel (%p258) target = $region48
        $region47: #{contrastive_loss.1} parent=35 // pred_region
          %261 = dma.done %s254, 2048
        $region48: #{contrastive_loss.1} parent=35 // pred_fallthru
          _
        %262 = sfence
        %p263 = pneg %p51
        %p264 = pneg %p48
        %p265 = pneg %p72
        %p266 = pneg %p69
        %s267 = sand.u32 %s87, 1
        %s268 = scalar_lea.sflag [#allocation7], %s267
        %s269 = sand.u32 %s87, 1
        %s270 = smul.addr %s269, 128
        %s271 = scalar_lea.vmem [#allocation9], %s270
        %p272 = pneg %p100
        %p273 = pneg %p97
        %s274 = sand.u32 %s115, 1
        %s275 = scalar_lea.sflag [#allocation11], %s274
        %s276 = sand.u32 %s115, 1
        %s277 = smul.addr %s276, 128
        %s278 = scalar_lea.vmem [#allocation10], %s277
        %p279 = pneg %p128
        %p280 = pneg %p125
        %p281 = pneg %p154
        %p282 = pneg %p151
        %p283 = scmp.lt.s32.totalorder %s27, 1
        %s284 = scalar_select %p283, %s27, 1
        %s285 = smul.addr %s284, 8
        %s286 = scalar_lea.vmem %s4, %s285
        %s287 = smul.u32 16, %s27
        %s288 = smul.u32 16, %s27
        %p289 = scmp.lt.s32.totalorder %s27, 1
        %s290 = scalar_select %p289, %s27, 1
        %s291 = smul.addr %s290, 8
        %s292 = scalar_lea.vmem %s4, %s291
        %s293 = sld [smem:[#allocation5]]
        %v294 = vstv %s293
        %v295 = vmul.f32 %v294, 1.442695
        %v296 = vpow.pop %v295
        %s297 = vtos %v296
        %s298 = smax.f32 %s297, 1.0
        %s299 = smin.f32 %s298, 100.0
        %s300 = sld [smem:[#allocation6]]
        %s301 = sld [smem:[#allocation6 + $0x1]]
        %s302 = sld [smem:[#allocation6 + $0x2]]
        %p303 = scmp.eq.s32.totalorder %s28, 0
        // Predicated region
        $region49: #{contrastive_loss.1} parent=35 // pred_check
          %p304 = pneg %p303
        $region50: #{contrastive_loss.1} parent=35 // pred_check_branch
          %306 = sbr.rel (%p304) target = $region52
        $region51: #{contrastive_loss.1} parent=35 // pred_region
          %vm307 = vcmask 7168
          %308 = vst.msk [vmem:[#allocation2] sm:$0xff] %vm307, -inf
          %309 = vst.msk [vmem:[#allocation2 + $0x8] sm:$0xff] %vm307, -inf
          %310 = vst.msk [vmem:[#allocation2 + $0x10] sm:$0xff] %vm307, -inf
          %311 = vst.msk [vmem:[#allocation2 + $0x18] sm:$0xff] %vm307, -inf
          %312 = vst.msk [vmem:[#allocation2 + $0x20] sm:$0xff] %vm307, -inf
          %313 = vst.msk [vmem:[#allocation2 + $0x28] sm:$0xff] %vm307, -inf
          %314 = vst.msk [vmem:[#allocation2 + $0x30] sm:$0xff] %vm307, -inf
          %315 = vst.msk [vmem:[#allocation2 + $0x38] sm:$0xff] %vm307, -inf
          %316 = vst.msk [vmem:[#allocation2 + $0x40] sm:$0xff] %vm307, -inf
          %317 = vst.msk [vmem:[#allocation2 + $0x48] sm:$0xff] %vm307, -inf
          %318 = vst.msk [vmem:[#allocation2 + $0x50] sm:$0xff] %vm307, -inf
          %319 = vst.msk [vmem:[#allocation2 + $0x58] sm:$0xff] %vm307, -inf
          %320 = vst.msk [vmem:[#allocation2 + $0x60] sm:$0xff] %vm307, -inf
          %321 = vst.msk [vmem:[#allocation2 + $0x68] sm:$0xff] %vm307, -inf
          %322 = vst.msk [vmem:[#allocation2 + $0x70] sm:$0xff] %vm307, -inf
          %323 = vst.msk [vmem:[#allocation2 + $0x78] sm:$0xff] %vm307, -inf
          %324 = vst.msk [vmem:[#allocation2 + $0x80] sm:$0xff] %vm307, -inf
          %325 = vst.msk [vmem:[#allocation2 + $0x88] sm:$0xff] %vm307, -inf
          %326 = vst.msk [vmem:[#allocation2 + $0x90] sm:$0xff] %vm307, -inf
          %327 = vst.msk [vmem:[#allocation2 + $0x98] sm:$0xff] %vm307, -inf
          %328 = vst.msk [vmem:[#allocation2 + $0xa0] sm:$0xff] %vm307, -inf
          %329 = vst.msk [vmem:[#allocation2 + $0xa8] sm:$0xff] %vm307, -inf
          %330 = vst.msk [vmem:[#allocation2 + $0xb0] sm:$0xff] %vm307, -inf
          %331 = vst.msk [vmem:[#allocation2 + $0xb8] sm:$0xff] %vm307, -inf
          %332 = vst.msk [vmem:[#allocation2 + $0xc0] sm:$0xff] %vm307, -inf
          %333 = vst.msk [vmem:[#allocation2 + $0xc8] sm:$0xff] %vm307, -inf
          %334 = vst.msk [vmem:[#allocation2 + $0xd0] sm:$0xff] %vm307, -inf
          %335 = vst.msk [vmem:[#allocation2 + $0xd8] sm:$0xff] %vm307, -inf
          %336 = vst.msk [vmem:[#allocation2 + $0xe0] sm:$0xff] %vm307, -inf
          %337 = vst.msk [vmem:[#allocation2 + $0xe8] sm:$0xff] %vm307, -inf
          %338 = vst.msk [vmem:[#allocation2 + $0xf0] sm:$0xff] %vm307, -inf
          %339 = vst.msk [vmem:[#allocation2 + $0xf8] sm:$0xff] %vm307, -inf
          %340 = vst.msk [vmem:[#allocation3] sm:$0xff] %vm307, 0.0
          %341 = vst.msk [vmem:[#allocation3 + $0x8] sm:$0xff] %vm307, 0.0
          %342 = vst.msk [vmem:[#allocation3 + $0x10] sm:$0xff] %vm307, 0.0
          %343 = vst.msk [vmem:[#allocation3 + $0x18] sm:$0xff] %vm307, 0.0
          %344 = vst.msk [vmem:[#allocation3 + $0x20] sm:$0xff] %vm307, 0.0
          %345 = vst.msk [vmem:[#allocation3 + $0x28] sm:$0xff] %vm307, 0.0
          %346 = vst.msk [vmem:[#allocation3 + $0x30] sm:$0xff] %vm307, 0.0
          %347 = vst.msk [vmem:[#allocation3 + $0x38] sm:$0xff] %vm307, 0.0
          %348 = vst.msk [vmem:[#allocation3 + $0x40] sm:$0xff] %vm307, 0.0
          %349 = vst.msk [vmem:[#allocation3 + $0x48] sm:$0xff] %vm307, 0.0
          %350 = vst.msk [vmem:[#allocation3 + $0x50] sm:$0xff] %vm307, 0.0
          %351 = vst.msk [vmem:[#allocation3 + $0x58] sm:$0xff] %vm307, 0.0
          %352 = vst.msk [vmem:[#allocation3 + $0x60] sm:$0xff] %vm307, 0.0
          %353 = vst.msk [vmem:[#allocation3 + $0x68] sm:$0xff] %vm307, 0.0
          %354 = vst.msk [vmem:[#allocation3 + $0x70] sm:$0xff] %vm307, 0.0
          %355 = vst.msk [vmem:[#allocation3 + $0x78] sm:$0xff] %vm307, 0.0
          %356 = vst.msk [vmem:[#allocation3 + $0x80] sm:$0xff] %vm307, 0.0
          %357 = vst.msk [vmem:[#allocation3 + $0x88] sm:$0xff] %vm307, 0.0
          %358 = vst.msk [vmem:[#allocation3 + $0x90] sm:$0xff] %vm307, 0.0
          %359 = vst.msk [vmem:[#allocation3 + $0x98] sm:$0xff] %vm307, 0.0
          %360 = vst.msk [vmem:[#allocation3 + $0xa0] sm:$0xff] %vm307, 0.0
          %361 = vst.msk [vmem:[#allocation3 + $0xa8] sm:$0xff] %vm307, 0.0
          %362 = vst.msk [vmem:[#allocation3 + $0xb0] sm:$0xff] %vm307, 0.0
          %363 = vst.msk [vmem:[#allocation3 + $0xb8] sm:$0xff] %vm307, 0.0
          %364 = vst.msk [vmem:[#allocation3 + $0xc0] sm:$0xff] %vm307, 0.0
          %365 = vst.msk [vmem:[#allocation3 + $0xc8] sm:$0xff] %vm307, 0.0
          %366 = vst.msk [vmem:[#allocation3 + $0xd0] sm:$0xff] %vm307, 0.0
          %367 = vst.msk [vmem:[#allocation3 + $0xd8] sm:$0xff] %vm307, 0.0
          %368 = vst.msk [vmem:[#allocation3 + $0xe0] sm:$0xff] %vm307, 0.0
          %369 = vst.msk [vmem:[#allocation3 + $0xe8] sm:$0xff] %vm307, 0.0
          %370 = vst.msk [vmem:[#allocation3 + $0xf0] sm:$0xff] %vm307, 0.0
          %371 = vst.msk [vmem:[#allocation3 + $0xf8] sm:$0xff] %vm307, 0.0
          %372 = vst.msk [vmem:[#allocation4] sm:$0xff] %vm307, 0.0
          %373 = vst.msk [vmem:[#allocation4 + $0x8] sm:$0xff] %vm307, 0.0
          %374 = vst.msk [vmem:[#allocation4 + $0x10] sm:$0xff] %vm307, 0.0
          %375 = vst.msk [vmem:[#allocation4 + $0x18] sm:$0xff] %vm307, 0.0
          %376 = vst.msk [vmem:[#allocation4 + $0x20] sm:$0xff] %vm307, 0.0
          %377 = vst.msk [vmem:[#allocation4 + $0x28] sm:$0xff] %vm307, 0.0
          %378 = vst.msk [vmem:[#allocation4 + $0x30] sm:$0xff] %vm307, 0.0
          %379 = vst.msk [vmem:[#allocation4 + $0x38] sm:$0xff] %vm307, 0.0
          %380 = vst.msk [vmem:[#allocation4 + $0x40] sm:$0xff] %vm307, 0.0
          %381 = vst.msk [vmem:[#allocation4 + $0x48] sm:$0xff] %vm307, 0.0
          %382 = vst.msk [vmem:[#allocation4 + $0x50] sm:$0xff] %vm307, 0.0
          %383 = vst.msk [vmem:[#allocation4 + $0x58] sm:$0xff] %vm307, 0.0
          %384 = vst.msk [vmem:[#allocation4 + $0x60] sm:$0xff] %vm307, 0.0
          %385 = vst.msk [vmem:[#allocation4 + $0x68] sm:$0xff] %vm307, 0.0
          %386 = vst.msk [vmem:[#allocation4 + $0x70] sm:$0xff] %vm307, 0.0
          %387 = vst.msk [vmem:[#allocation4 + $0x78] sm:$0xff] %vm307, 0.0
          %388 = vst.msk [vmem:[#allocation4 + $0x80] sm:$0xff] %vm307, 0.0
          %389 = vst.msk [vmem:[#allocation4 + $0x88] sm:$0xff] %vm307, 0.0
          %390 = vst.msk [vmem:[#allocation4 + $0x90] sm:$0xff] %vm307, 0.0
          %391 = vst.msk [vmem:[#allocation4 + $0x98] sm:$0xff] %vm307, 0.0
          %392 = vst.msk [vmem:[#allocation4 + $0xa0] sm:$0xff] %vm307, 0.0
          %393 = vst.msk [vmem:[#allocation4 + $0xa8] sm:$0xff] %vm307, 0.0
          %394 = vst.msk [vmem:[#allocation4 + $0xb0] sm:$0xff] %vm307, 0.0
          %395 = vst.msk [vmem:[#allocation4 + $0xb8] sm:$0xff] %vm307, 0.0
          %396 = vst.msk [vmem:[#allocation4 + $0xc0] sm:$0xff] %vm307, 0.0
          %397 = vst.msk [vmem:[#allocation4 + $0xc8] sm:$0xff] %vm307, 0.0
          %398 = vst.msk [vmem:[#allocation4 + $0xd0] sm:$0xff] %vm307, 0.0
          %399 = vst.msk [vmem:[#allocation4 + $0xd8] sm:$0xff] %vm307, 0.0
          %400 = vst.msk [vmem:[#allocation4 + $0xe0] sm:$0xff] %vm307, 0.0
          %401 = vst.msk [vmem:[#allocation4 + $0xe8] sm:$0xff] %vm307, 0.0
          %402 = vst.msk [vmem:[#allocation4 + $0xf0] sm:$0xff] %vm307, 0.0
          %403 = vst.msk [vmem:[#allocation4 + $0xf8] sm:$0xff] %vm307, 0.0
        $region52: #{contrastive_loss.1} parent=35 // pred_fallthru
          _
        %s404 = smul.u32 %s28, 128
        %s405 = sadd.s32 %s404, 128
        %p406 = scmp.gt.s32.totalorder %s405, %s302
        %s407 = smul.u32 %s27, 128
        %s408 = sadd.s32 %s407, %s300
        %s409 = sadd.s32 %s408, 128
        %p410 = scmp.lt.s32.totalorder %s408, %s405
        %p411 = scmp.gt.s32.totalorder %s409, %s404
        %p412 = pnand %p410, %p411
        %p413 = pneg %p412
        %v414 = vlaneseq
        %v415 = vand.u32 %v414, 127
        %v416 = vstv %s404
        %v417 = vadd.s32 %v416, %v415
        %v418 = vld [vmem:[%s248] sm:$0xff]
        %v419 = vld [vmem:[%s248 + $0x8] sm:$0xff]
        %v420 = vld [vmem:[%s248 + $0x10] sm:$0xff]
        %v421 = vld [vmem:[%s248 + $0x18] sm:$0xff]
        %v422 = vld [vmem:[%s248 + $0x20] sm:$0xff]
        %v423 = vld [vmem:[%s248 + $0x28] sm:$0xff]
        %v424 = vld [vmem:[%s248 + $0x30] sm:$0xff]
        %v425 = vld [vmem:[%s248 + $0x38] sm:$0xff]
        %v426 = vld [vmem:[%s248 + $0x40] sm:$0xff]
        %v427 = vld [vmem:[%s248 + $0x48] sm:$0xff]
        %v428 = vld [vmem:[%s248 + $0x50] sm:$0xff]
        %v429 = vld [vmem:[%s248 + $0x58] sm:$0xff]
        %v430 = vld [vmem:[%s248 + $0x60] sm:$0xff]
        %v431 = vld [vmem:[%s248 + $0x68] sm:$0xff]
        %v432 = vld [vmem:[%s248 + $0x70] sm:$0xff]
        %v433 = vld [vmem:[%s248 + $0x78] sm:$0xff]
        %v434 = vstv %s299
        %v435 = vmul.f32 %v418, %v434
        %v436 = vmul.f32 %v419, %v434
        %v437 = vmul.f32 %v420, %v434
        %v438 = vmul.f32 %v421, %v434
        %v439 = vmul.f32 %v422, %v434
        %v440 = vmul.f32 %v423, %v434
        %v441 = vmul.f32 %v424, %v434
        %v442 = vmul.f32 %v425, %v434
        %v443 = vmul.f32 %v426, %v434
        %v444 = vmul.f32 %v427, %v434
        %v445 = vmul.f32 %v428, %v434
        %v446 = vmul.f32 %v429, %v434
        %v447 = vmul.f32 %v430, %v434
        %v448 = vmul.f32 %v431, %v434
        %v449 = vmul.f32 %v432, %v434
        %v450 = vmul.f32 %v433, %v434
        // Predicated region
        $region53: #{contrastive_loss.1} parent=35 // pred_check
          %p451 = pneg %p406
        $region54: #{contrastive_loss.1} parent=35 // pred_check_branch
          %453 = sbr.rel (%p451) target = $region56
        $region55: #{contrastive_loss.1} parent=35 // pred_region
          %v454 = vstv %s302
          %vm455 = vcmp.lt.s32.totalorder %v417, %v454
          %v456 = vsel %vm455, 1, 0
          %vm457 = vcmp.eq.s32.totalorder %v456, 1
          %v458 = vsel %vm457, %v435, -inf
          %v459 = vsel %vm457, %v436, -inf
          %v460 = vsel %vm457, %v437, -inf
          %v461 = vsel %vm457, %v438, -inf
          %v462 = vsel %vm457, %v439, -inf
          %v463 = vsel %vm457, %v440, -inf
          %v464 = vsel %vm457, %v441, -inf
          %v465 = vsel %vm457, %v442, -inf
          %v466 = vsel %vm457, %v443, -inf
          %v467 = vsel %vm457, %v444, -inf
          %v468 = vsel %vm457, %v445, -inf
          %v469 = vsel %vm457, %v446, -inf
          %v470 = vsel %vm457, %v447, -inf
          %v471 = vsel %vm457, %v448, -inf
          %v472 = vsel %vm457, %v449, -inf
          %v473 = vsel %vm457, %v450, -inf
          %v474 = vld [vmem:[#allocation2] sm:$0xff]
          %v475 = vld [vmem:[#allocation2 + $0x8] sm:$0xff]
          %v476 = vld [vmem:[#allocation2 + $0x10] sm:$0xff]
          %v477 = vld [vmem:[#allocation2 + $0x18] sm:$0xff]
          %v478 = vld [vmem:[#allocation2 + $0x20] sm:$0xff]
          %v479 = vld [vmem:[#allocation2 + $0x28] sm:$0xff]
          %v480 = vld [vmem:[#allocation2 + $0x30] sm:$0xff]
          %v481 = vld [vmem:[#allocation2 + $0x38] sm:$0xff]
          %v482 = vld [vmem:[#allocation2 + $0x40] sm:$0xff]
          %v483 = vld [vmem:[#allocation2 + $0x48] sm:$0xff]
          %v484 = vld [vmem:[#allocation2 + $0x50] sm:$0xff]
          %v485 = vld [vmem:[#allocation2 + $0x58] sm:$0xff]
          %v486 = vld [vmem:[#allocation2 + $0x60] sm:$0xff]
          %v487 = vld [vmem:[#allocation2 + $0x68] sm:$0xff]
          %v488 = vld [vmem:[#allocation2 + $0x70] sm:$0xff]
          %v489 = vld [vmem:[#allocation2 + $0x78] sm:$0xff]
          %490 = vmax.xlane.f32.xlu0 %v458
          %v491 = vpop.xlane.xlu0 %490
          %492 = vmax.xlane.f32.xlu0 %v459
          %v493 = vpop.xlane.xlu0 %492
          %494 = vmax.xlane.f32.xlu0 %v460
          %v495 = vpop.xlane.xlu0 %494
          %496 = vmax.xlane.f32.xlu0 %v461
          %v497 = vpop.xlane.xlu0 %496
          %498 = vmax.xlane.f32.xlu0 %v462
          %v499 = vpop.xlane.xlu0 %498
          %500 = vmax.xlane.f32.xlu0 %v463
          %v501 = vpop.xlane.xlu0 %500
          %502 = vmax.xlane.f32.xlu0 %v464
          %v503 = vpop.xlane.xlu0 %502
          %504 = vmax.xlane.f32.xlu0 %v465
          %v505 = vpop.xlane.xlu0 %504
          %506 = vmax.xlane.f32.xlu0 %v466
          %v507 = vpop.xlane.xlu0 %506
          %508 = vmax.xlane.f32.xlu0 %v467
          %v509 = vpop.xlane.xlu0 %508
          %510 = vmax.xlane.f32.xlu0 %v468
          %v511 = vpop.xlane.xlu0 %510
          %512 = vmax.xlane.f32.xlu0 %v469
          %v513 = vpop.xlane.xlu0 %512
          %514 = vmax.xlane.f32.xlu0 %v470
          %v515 = vpop.xlane.xlu0 %514
          %516 = vmax.xlane.f32.xlu0 %v471
          %v517 = vpop.xlane.xlu0 %516
          %518 = vmax.xlane.f32.xlu0 %v472
          %v519 = vpop.xlane.xlu0 %518
          %520 = vmax.xlane.f32.xlu0 %v473
          %v521 = vpop.xlane.xlu0 %520
          %v522 = vmax.f32 %v474, %v491
          %v523 = vmax.f32 %v475, %v493
          %v524 = vmax.f32 %v476, %v495
          %v525 = vmax.f32 %v477, %v497
          %v526 = vmax.f32 %v478, %v499
          %v527 = vmax.f32 %v479, %v501
          %v528 = vmax.f32 %v480, %v503
          %v529 = vmax.f32 %v481, %v505
          %v530 = vmax.f32 %v482, %v507
          %v531 = vmax.f32 %v483, %v509
          %v532 = vmax.f32 %v484, %v511
          %v533 = vmax.f32 %v485, %v513
          %v534 = vmax.f32 %v486, %v515
          %v535 = vmax.f32 %v487, %v517
          %v536 = vmax.f32 %v488, %v519
          %v537 = vmax.f32 %v489, %v521
          %v538 = vsub.f32 %v474, %v522
          %v539 = vsub.f32 %v475, %v523
          %v540 = vsub.f32 %v476, %v524
          %v541 = vsub.f32 %v477, %v525
          %v542 = vsub.f32 %v478, %v526
          %v543 = vsub.f32 %v479, %v527
          %v544 = vsub.f32 %v480, %v528
          %v545 = vsub.f32 %v481, %v529
          %v546 = vsub.f32 %v482, %v530
          %v547 = vsub.f32 %v483, %v531
          %v548 = vsub.f32 %v484, %v532
          %v549 = vsub.f32 %v485, %v533
          %v550 = vsub.f32 %v486, %v534
          %v551 = vsub.f32 %v487, %v535
          %v552 = vsub.f32 %v488, %v536
          %v553 = vsub.f32 %v489, %v537
          %v554 = vmul.f32 %v538, 1.442695
          %v555 = vpow.pop %v554
          %v556 = vmul.f32 %v539, 1.442695
          %v557 = vpow.pop %v556
          %v558 = vmul.f32 %v540, 1.442695
          %v559 = vpow.pop %v558
          %v560 = vmul.f32 %v541, 1.442695
          %v561 = vpow.pop %v560
          %v562 = vmul.f32 %v542, 1.442695
          %v563 = vpow.pop %v562
          %v564 = vmul.f32 %v543, 1.442695
          %v565 = vpow.pop %v564
          %v566 = vmul.f32 %v544, 1.442695
          %v567 = vpow.pop %v566
          %v568 = vmul.f32 %v545, 1.442695
          %v569 = vpow.pop %v568
          %v570 = vmul.f32 %v546, 1.442695
          %v571 = vpow.pop %v570
          %v572 = vmul.f32 %v547, 1.442695
          %v573 = vpow.pop %v572
          %v574 = vmul.f32 %v548, 1.442695
          %v575 = vpow.pop %v574
          %v576 = vmul.f32 %v549, 1.442695
          %v577 = vpow.pop %v576
          %v578 = vmul.f32 %v550, 1.442695
          %v579 = vpow.pop %v578
          %v580 = vmul.f32 %v551, 1.442695
          %v581 = vpow.pop %v580
          %v582 = vmul.f32 %v552, 1.442695
          %v583 = vpow.pop %v582
          %v584 = vmul.f32 %v553, 1.442695
          %v585 = vpow.pop %v584
          %v586 = vld [vmem:[#allocation3] sm:$0xff]
          %v587 = vld [vmem:[#allocation3 + $0x8] sm:$0xff]
          %v588 = vld [vmem:[#allocation3 + $0x10] sm:$0xff]
          %v589 = vld [vmem:[#allocation3 + $0x18] sm:$0xff]
          %v590 = vld [vmem:[#allocation3 + $0x20] sm:$0xff]
          %v591 = vld [vmem:[#allocation3 + $0x28] sm:$0xff]
          %v592 = vld [vmem:[#allocation3 + $0x30] sm:$0xff]
          %v593 = vld [vmem:[#allocation3 + $0x38] sm:$0xff]
          %v594 = vld [vmem:[#allocation3 + $0x40] sm:$0xff]
          %v595 = vld [vmem:[#allocation3 + $0x48] sm:$0xff]
          %v596 = vld [vmem:[#allocation3 + $0x50] sm:$0xff]
          %v597 = vld [vmem:[#allocation3 + $0x58] sm:$0xff]
          %v598 = vld [vmem:[#allocation3 + $0x60] sm:$0xff]
          %v599 = vld [vmem:[#allocation3 + $0x68] sm:$0xff]
          %v600 = vld [vmem:[#allocation3 + $0x70] sm:$0xff]
          %v601 = vld [vmem:[#allocation3 + $0x78] sm:$0xff]
          %v602 = vmul.f32 %v555, %v586
          %v603 = vmul.f32 %v557, %v587
          %v604 = vmul.f32 %v559, %v588
          %v605 = vmul.f32 %v561, %v589
          %v606 = vmul.f32 %v563, %v590
          %v607 = vmul.f32 %v565, %v591
          %v608 = vmul.f32 %v567, %v592
          %v609 = vmul.f32 %v569, %v593
          %v610 = vmul.f32 %v571, %v594
          %v611 = vmul.f32 %v573, %v595
          %v612 = vmul.f32 %v575, %v596
          %v613 = vmul.f32 %v577, %v597
          %v614 = vmul.f32 %v579, %v598
          %v615 = vmul.f32 %v581, %v599
          %v616 = vmul.f32 %v583, %v600
          %v617 = vmul.f32 %v585, %v601
          %619 = vset.pattern.permute.xlu0 0
          %620 = vperm.xlu0 %619, %v522
          %v621 = vpop.permute.xlu0 %620
          %624 = vset.pattern.permute.xlu0 0
          %625 = vperm.xlu0 %624, %v523
          %v626 = vpop.permute.xlu0 %625
          %629 = vset.pattern.permute.xlu0 0
          %630 = vperm.xlu0 %629, %v524
          %v631 = vpop.permute.xlu0 %630
          %634 = vset.pattern.permute.xlu0 0
          %635 = vperm.xlu0 %634, %v525
          %v636 = vpop.permute.xlu0 %635
          %639 = vset.pattern.permute.xlu0 0
          %640 = vperm.xlu0 %639, %v526
          %v641 = vpop.permute.xlu0 %640
          %644 = vset.pattern.permute.xlu0 0
          %645 = vperm.xlu0 %644, %v527
          %v646 = vpop.permute.xlu0 %645
          %649 = vset.pattern.permute.xlu0 0
          %650 = vperm.xlu0 %649, %v528
          %v651 = vpop.permute.xlu0 %650
          %654 = vset.pattern.permute.xlu0 0
          %655 = vperm.xlu0 %654, %v529
          %v656 = vpop.permute.xlu0 %655
          %659 = vset.pattern.permute.xlu0 0
          %660 = vperm.xlu0 %659, %v530
          %v661 = vpop.permute.xlu0 %660
          %664 = vset.pattern.permute.xlu0 0
          %665 = vperm.xlu0 %664, %v531
          %v666 = vpop.permute.xlu0 %665
          %669 = vset.pattern.permute.xlu0 0
          %670 = vperm.xlu0 %669, %v532
          %v671 = vpop.permute.xlu0 %670
          %674 = vset.pattern.permute.xlu0 0
          %675 = vperm.xlu0 %674, %v533
          %v676 = vpop.permute.xlu0 %675
          %679 = vset.pattern.permute.xlu0 0
          %680 = vperm.xlu0 %679, %v534
          %v681 = vpop.permute.xlu0 %680
          %684 = vset.pattern.permute.xlu0 0
          %685 = vperm.xlu0 %684, %v535
          %v686 = vpop.permute.xlu0 %685
          %689 = vset.pattern.permute.xlu0 0
          %690 = vperm.xlu0 %689, %v536
          %v691 = vpop.permute.xlu0 %690
          %694 = vset.pattern.permute.xlu0 0
          %695 = vperm.xlu0 %694, %v537
          %v696 = vpop.permute.xlu0 %695
          %v698 = vsub.f32 %v458, %v621
          %v699 = vsub.f32 %v459, %v626
          %v700 = vsub.f32 %v460, %v631
          %v701 = vsub.f32 %v461, %v636
          %v702 = vsub.f32 %v462, %v641
          %v703 = vsub.f32 %v463, %v646
          %v704 = vsub.f32 %v464, %v651
          %v705 = vsub.f32 %v465, %v656
          %v706 = vsub.f32 %v466, %v661
          %v707 = vsub.f32 %v467, %v666
          %v708 = vsub.f32 %v468, %v671
          %v709 = vsub.f32 %v469, %v676
          %v710 = vsub.f32 %v470, %v681
          %v711 = vsub.f32 %v471, %v686
          %v712 = vsub.f32 %v472, %v691
          %v713 = vsub.f32 %v473, %v696
          %v714 = vmul.f32 %v698, 1.442695
          %v715 = vpow.pop %v714
          %v716 = vmul.f32 %v699, 1.442695
          %v717 = vpow.pop %v716
          %v718 = vmul.f32 %v700, 1.442695
          %v719 = vpow.pop %v718
          %v720 = vmul.f32 %v701, 1.442695
          %v721 = vpow.pop %v720
          %v722 = vmul.f32 %v702, 1.442695
          %v723 = vpow.pop %v722
          %v724 = vmul.f32 %v703, 1.442695
          %v725 = vpow.pop %v724
          %v726 = vmul.f32 %v704, 1.442695
          %v727 = vpow.pop %v726
          %v728 = vmul.f32 %v705, 1.442695
          %v729 = vpow.pop %v728
          %v730 = vmul.f32 %v706, 1.442695
          %v731 = vpow.pop %v730
          %v732 = vmul.f32 %v707, 1.442695
          %v733 = vpow.pop %v732
          %v734 = vmul.f32 %v708, 1.442695
          %v735 = vpow.pop %v734
          %v736 = vmul.f32 %v709, 1.442695
          %v737 = vpow.pop %v736
          %v738 = vmul.f32 %v710, 1.442695
          %v739 = vpow.pop %v738
          %v740 = vmul.f32 %v711, 1.442695
          %v741 = vpow.pop %v740
          %v742 = vmul.f32 %v712, 1.442695
          %v743 = vpow.pop %v742
          %v744 = vmul.f32 %v713, 1.442695
          %v745 = vpow.pop %v744
          %746 = vadd.xlane.f32.xlu0 %v715
          %v747 = vpop.xlane.xlu0 %746
          %748 = vadd.xlane.f32.xlu0 %v717
          %v749 = vpop.xlane.xlu0 %748
          %750 = vadd.xlane.f32.xlu0 %v719
          %v751 = vpop.xlane.xlu0 %750
          %752 = vadd.xlane.f32.xlu0 %v721
          %v753 = vpop.xlane.xlu0 %752
          %754 = vadd.xlane.f32.xlu0 %v723
          %v755 = vpop.xlane.xlu0 %754
          %756 = vadd.xlane.f32.xlu0 %v725
          %v757 = vpop.xlane.xlu0 %756
          %758 = vadd.xlane.f32.xlu0 %v727
          %v759 = vpop.xlane.xlu0 %758
          %760 = vadd.xlane.f32.xlu0 %v729
          %v761 = vpop.xlane.xlu0 %760
          %762 = vadd.xlane.f32.xlu0 %v731
          %v763 = vpop.xlane.xlu0 %762
          %764 = vadd.xlane.f32.xlu0 %v733
          %v765 = vpop.xlane.xlu0 %764
          %766 = vadd.xlane.f32.xlu0 %v735
          %v767 = vpop.xlane.xlu0 %766
          %768 = vadd.xlane.f32.xlu0 %v737
          %v769 = vpop.xlane.xlu0 %768
          %770 = vadd.xlane.f32.xlu0 %v739
          %v771 = vpop.xlane.xlu0 %770
          %772 = vadd.xlane.f32.xlu0 %v741
          %v773 = vpop.xlane.xlu0 %772
          %774 = vadd.xlane.f32.xlu0 %v743
          %v775 = vpop.xlane.xlu0 %774
          %776 = vadd.xlane.f32.xlu0 %v745
          %v777 = vpop.xlane.xlu0 %776
          %v778 = vadd.f32 %v602, %v747
          %v779 = vadd.f32 %v603, %v749
          %v780 = vadd.f32 %v604, %v751
          %v781 = vadd.f32 %v605, %v753
          %v782 = vadd.f32 %v606, %v755
          %v783 = vadd.f32 %v607, %v757
          %v784 = vadd.f32 %v608, %v759
          %v785 = vadd.f32 %v609, %v761
          %v786 = vadd.f32 %v610, %v763
          %v787 = vadd.f32 %v611, %v765
          %v788 = vadd.f32 %v612, %v767
          %v789 = vadd.f32 %v613, %v769
          %v790 = vadd.f32 %v614, %v771
          %v791 = vadd.f32 %v615, %v773
          %v792 = vadd.f32 %v616, %v775
          %v793 = vadd.f32 %v617, %v777
          %vm794 = vcmask 7168
          %795 = vst.msk [vmem:[#allocation3] sm:$0xff] %vm794, %v778
          %796 = vst.msk [vmem:[#allocation3 + $0x8] sm:$0xff] %vm794, %v779
          %797 = vst.msk [vmem:[#allocation3 + $0x10] sm:$0xff] %vm794, %v780
          %798 = vst.msk [vmem:[#allocation3 + $0x18] sm:$0xff] %vm794, %v781
          %799 = vst.msk [vmem:[#allocation3 + $0x20] sm:$0xff] %vm794, %v782
          %800 = vst.msk [vmem:[#allocation3 + $0x28] sm:$0xff] %vm794, %v783
          %801 = vst.msk [vmem:[#allocation3 + $0x30] sm:$0xff] %vm794, %v784
          %802 = vst.msk [vmem:[#allocation3 + $0x38] sm:$0xff] %vm794, %v785
          %803 = vst.msk [vmem:[#allocation3 + $0x40] sm:$0xff] %vm794, %v786
          %804 = vst.msk [vmem:[#allocation3 + $0x48] sm:$0xff] %vm794, %v787
          %805 = vst.msk [vmem:[#allocation3 + $0x50] sm:$0xff] %vm794, %v788
          %806 = vst.msk [vmem:[#allocation3 + $0x58] sm:$0xff] %vm794, %v789
          %807 = vst.msk [vmem:[#allocation3 + $0x60] sm:$0xff] %vm794, %v790
          %808 = vst.msk [vmem:[#allocation3 + $0x68] sm:$0xff] %vm794, %v791
          %809 = vst.msk [vmem:[#allocation3 + $0x70] sm:$0xff] %vm794, %v792
          %810 = vst.msk [vmem:[#allocation3 + $0x78] sm:$0xff] %vm794, %v793
          %811 = vst.msk [vmem:[#allocation2] sm:$0xff] %vm794, %v522
          %812 = vst.msk [vmem:[#allocation2 + $0x8] sm:$0xff] %vm794, %v523
          %813 = vst.msk [vmem:[#allocation2 + $0x10] sm:$0xff] %vm794, %v524
          %814 = vst.msk [vmem:[#allocation2 + $0x18] sm:$0xff] %vm794, %v525
          %815 = vst.msk [vmem:[#allocation2 + $0x20] sm:$0xff] %vm794, %v526
          %816 = vst.msk [vmem:[#allocation2 + $0x28] sm:$0xff] %vm794, %v527
          %817 = vst.msk [vmem:[#allocation2 + $0x30] sm:$0xff] %vm794, %v528
          %818 = vst.msk [vmem:[#allocation2 + $0x38] sm:$0xff] %vm794, %v529
          %819 = vst.msk [vmem:[#allocation2 + $0x40] sm:$0xff] %vm794, %v530
          %820 = vst.msk [vmem:[#allocation2 + $0x48] sm:$0xff] %vm794, %v531
          %821 = vst.msk [vmem:[#allocation2 + $0x50] sm:$0xff] %vm794, %v532
          %822 = vst.msk [vmem:[#allocation2 + $0x58] sm:$0xff] %vm794, %v533
          %823 = vst.msk [vmem:[#allocation2 + $0x60] sm:$0xff] %vm794, %v534
          %824 = vst.msk [vmem:[#allocation2 + $0x68] sm:$0xff] %vm794, %v535
          %825 = vst.msk [vmem:[#allocation2 + $0x70] sm:$0xff] %vm794, %v536
          %826 = vst.msk [vmem:[#allocation2 + $0x78] sm:$0xff] %vm794, %v537
          // Predicated region
          $region57: #{contrastive_loss.1} parent=55 // pred_check
            _
          $region58: #{contrastive_loss.1} parent=55 // pred_check_branch
            %828 = sbr.rel (%p412) target = $region60
          $region59: #{contrastive_loss.1} parent=55 // pred_region
            %v829 = vlaneseq
            %v830 = vshrl.u32 %v829, 7
            %v831 = vadd.s32 %v830, 8
            %v832 = vadd.s32 %v830, 16
            %v833 = vadd.s32 %v830, 24
            %v834 = vadd.s32 %v830, 32
            %v835 = vadd.s32 %v830, 40
            %v836 = vadd.s32 %v830, 48
            %v837 = vadd.s32 %v830, 56
            %v838 = vadd.s32 %v830, 64
            %v839 = vadd.s32 %v830, 72
            %v840 = vadd.s32 %v830, 80
            %v841 = vadd.s32 %v830, 88
            %v842 = vadd.s32 %v830, 96
            %v843 = vadd.s32 %v830, 104
            %v844 = vadd.s32 %v830, 112
            %v845 = vadd.s32 %v830, 120
            %v846 = vstv %s407
            %v847 = vadd.s32 %v846, %v830
            %v848 = vadd.s32 %v846, %v831
            %v849 = vadd.s32 %v846, %v832
            %v850 = vadd.s32 %v846, %v833
            %v851 = vadd.s32 %v846, %v834
            %v852 = vadd.s32 %v846, %v835
            %v853 = vadd.s32 %v846, %v836
            %v854 = vadd.s32 %v846, %v837
            %v855 = vadd.s32 %v846, %v838
            %v856 = vadd.s32 %v846, %v839
            %v857 = vadd.s32 %v846, %v840
            %v858 = vadd.s32 %v846, %v841
            %v859 = vadd.s32 %v846, %v842
            %v860 = vadd.s32 %v846, %v843
            %v861 = vadd.s32 %v846, %v844
            %v862 = vadd.s32 %v846, %v845
            %v863 = vstv %s300
            %v864 = vadd.s32 %v847, %v863
            %v865 = vadd.s32 %v848, %v863
            %v866 = vadd.s32 %v849, %v863
            %v867 = vadd.s32 %v850, %v863
            %v868 = vadd.s32 %v851, %v863
            %v869 = vadd.s32 %v852, %v863
            %v870 = vadd.s32 %v853, %v863
            %v871 = vadd.s32 %v854, %v863
            %v872 = vadd.s32 %v855, %v863
            %v873 = vadd.s32 %v856, %v863
            %v874 = vadd.s32 %v857, %v863
            %v875 = vadd.s32 %v858, %v863
            %v876 = vadd.s32 %v859, %v863
            %v877 = vadd.s32 %v860, %v863
            %v878 = vadd.s32 %v861, %v863
            %v879 = vadd.s32 %v862, %v863
            %vm880 = vcmp.eq.s32.totalorder %v417, %v864
            %vm881 = vcmp.eq.s32.totalorder %v417, %v865
            %vm882 = vcmp.eq.s32.totalorder %v417, %v866
            %vm883 = vcmp.eq.s32.totalorder %v417, %v867
            %vm884 = vcmp.eq.s32.totalorder %v417, %v868
            %vm885 = vcmp.eq.s32.totalorder %v417, %v869
            %vm886 = vcmp.eq.s32.totalorder %v417, %v870
            %vm887 = vcmp.eq.s32.totalorder %v417, %v871
            %vm888 = vcmp.eq.s32.totalorder %v417, %v872
            %vm889 = vcmp.eq.s32.totalorder %v417, %v873
            %vm890 = vcmp.eq.s32.totalorder %v417, %v874
            %vm891 = vcmp.eq.s32.totalorder %v417, %v875
            %vm892 = vcmp.eq.s32.totalorder %v417, %v876
            %vm893 = vcmp.eq.s32.totalorder %v417, %v877
            %vm894 = vcmp.eq.s32.totalorder %v417, %v878
            %vm895 = vcmp.eq.s32.totalorder %v417, %v879
            %v896 = vld [vmem:[#allocation4] sm:$0xff]
            %v897 = vld [vmem:[#allocation4 + $0x8] sm:$0xff]
            %v898 = vld [vmem:[#allocation4 + $0x10] sm:$0xff]
            %v899 = vld [vmem:[#allocation4 + $0x18] sm:$0xff]
            %v900 = vld [vmem:[#allocation4 + $0x20] sm:$0xff]
            %v901 = vld [vmem:[#allocation4 + $0x28] sm:$0xff]
            %v902 = vld [vmem:[#allocation4 + $0x30] sm:$0xff]
            %v903 = vld [vmem:[#allocation4 + $0x38] sm:$0xff]
            %v904 = vld [vmem:[#allocation4 + $0x40] sm:$0xff]
            %v905 = vld [vmem:[#allocation4 + $0x48] sm:$0xff]
            %v906 = vld [vmem:[#allocation4 + $0x50] sm:$0xff]
            %v907 = vld [vmem:[#allocation4 + $0x58] sm:$0xff]
            %v908 = vld [vmem:[#allocation4 + $0x60] sm:$0xff]
            %v909 = vld [vmem:[#allocation4 + $0x68] sm:$0xff]
            %v910 = vld [vmem:[#allocation4 + $0x70] sm:$0xff]
            %v911 = vld [vmem:[#allocation4 + $0x78] sm:$0xff]
            %v912 = vsel %vm880, %v458, 0.0
            %v913 = vsel %vm881, %v459, 0.0
            %v914 = vsel %vm882, %v460, 0.0
            %v915 = vsel %vm883, %v461, 0.0
            %v916 = vsel %vm884, %v462, 0.0
            %v917 = vsel %vm885, %v463, 0.0
            %v918 = vsel %vm886, %v464, 0.0
            %v919 = vsel %vm887, %v465, 0.0
            %v920 = vsel %vm888, %v466, 0.0
            %v921 = vsel %vm889, %v467, 0.0
            %v922 = vsel %vm890, %v468, 0.0
            %v923 = vsel %vm891, %v469, 0.0
            %v924 = vsel %vm892, %v470, 0.0
            %v925 = vsel %vm893, %v471, 0.0
            %v926 = vsel %vm894, %v472, 0.0
            %v927 = vsel %vm895, %v473, 0.0
            %928 = vadd.xlane.f32.xlu0 %v912
            %v929 = vpop.xlane.xlu0 %928
            %930 = vadd.xlane.f32.xlu0 %v913
            %v931 = vpop.xlane.xlu0 %930
            %932 = vadd.xlane.f32.xlu0 %v914
            %v933 = vpop.xlane.xlu0 %932
            %934 = vadd.xlane.f32.xlu0 %v915
            %v935 = vpop.xlane.xlu0 %934
            %936 = vadd.xlane.f32.xlu0 %v916
            %v937 = vpop.xlane.xlu0 %936
            %938 = vadd.xlane.f32.xlu0 %v917
            %v939 = vpop.xlane.xlu0 %938
            %940 = vadd.xlane.f32.xlu0 %v918
            %v941 = vpop.xlane.xlu0 %940
            %942 = vadd.xlane.f32.xlu0 %v919
            %v943 = vpop.xlane.xlu0 %942
            %944 = vadd.xlane.f32.xlu0 %v920
            %v945 = vpop.xlane.xlu0 %944
            %946 = vadd.xlane.f32.xlu0 %v921
            %v947 = vpop.xlane.xlu0 %946
            %948 = vadd.xlane.f32.xlu0 %v922
            %v949 = vpop.xlane.xlu0 %948
            %950 = vadd.xlane.f32.xlu0 %v923
            %v951 = vpop.xlane.xlu0 %950
            %952 = vadd.xlane.f32.xlu0 %v924
            %v953 = vpop.xlane.xlu0 %952
            %954 = vadd.xlane.f32.xlu0 %v925
            %v955 = vpop.xlane.xlu0 %954
            %956 = vadd.xlane.f32.xlu0 %v926
            %v957 = vpop.xlane.xlu0 %956
            %958 = vadd.xlane.f32.xlu0 %v927
            %v959 = vpop.xlane.xlu0 %958
            %v960 = vadd.f32 %v896, %v929
            %v961 = vadd.f32 %v897, %v931
            %v962 = vadd.f32 %v898, %v933
            %v963 = vadd.f32 %v899, %v935
            %v964 = vadd.f32 %v900, %v937
            %v965 = vadd.f32 %v901, %v939
            %v966 = vadd.f32 %v902, %v941
            %v967 = vadd.f32 %v903, %v943
            %v968 = vadd.f32 %v904, %v945
            %v969 = vadd.f32 %v905, %v947
            %v970 = vadd.f32 %v906, %v949
            %v971 = vadd.f32 %v907, %v951
            %v972 = vadd.f32 %v908, %v953
            %v973 = vadd.f32 %v909, %v955
            %v974 = vadd.f32 %v910, %v957
            %v975 = vadd.f32 %v911, %v959
            %976 = vst.msk [vmem:[#allocation4] sm:$0xff] %vm794, %v960
            %977 = vst.msk [vmem:[#allocation4 + $0x8] sm:$0xff] %vm794, %v961
            %978 = vst.msk [vmem:[#allocation4 + $0x10] sm:$0xff] %vm794, %v962
            %979 = vst.msk [vmem:[#allocation4 + $0x18] sm:$0xff] %vm794, %v963
            %980 = vst.msk [vmem:[#allocation4 + $0x20] sm:$0xff] %vm794, %v964
            %981 = vst.msk [vmem:[#allocation4 + $0x28] sm:$0xff] %vm794, %v965
            %982 = vst.msk [vmem:[#allocation4 + $0x30] sm:$0xff] %vm794, %v966
            %983 = vst.msk [vmem:[#allocation4 + $0x38] sm:$0xff] %vm794, %v967
            %984 = vst.msk [vmem:[#allocation4 + $0x40] sm:$0xff] %vm794, %v968
            %985 = vst.msk [vmem:[#allocation4 + $0x48] sm:$0xff] %vm794, %v969
            %986 = vst.msk [vmem:[#allocation4 + $0x50] sm:$0xff] %vm794, %v970
            %987 = vst.msk [vmem:[#allocation4 + $0x58] sm:$0xff] %vm794, %v971
            %988 = vst.msk [vmem:[#allocation4 + $0x60] sm:$0xff] %vm794, %v972
            %989 = vst.msk [vmem:[#allocation4 + $0x68] sm:$0xff] %vm794, %v973
            %990 = vst.msk [vmem:[#allocation4 + $0x70] sm:$0xff] %vm794, %v974
            %991 = vst.msk [vmem:[#allocation4 + $0x78] sm:$0xff] %vm794, %v975
          $region60: #{contrastive_loss.1} parent=55 // pred_fallthru
            _
        $region56: #{contrastive_loss.1} parent=35 // pred_fallthru
          _
        %p992 = scmp.le.s32.totalorder %s405, %s302
        // Predicated region
        $region61: #{contrastive_loss.1} parent=35 // pred_check
          %p993 = pneg %p992
        $region62: #{contrastive_loss.1} parent=35 // pred_check_branch
          %995 = sbr.rel (%p993) target = $region64
        $region63: #{contrastive_loss.1} parent=35 // pred_region
          %v996 = vld [vmem:[#allocation2] sm:$0xff]
          %v997 = vld [vmem:[#allocation2 + $0x8] sm:$0xff]
          %v998 = vld [vmem:[#allocation2 + $0x10] sm:$0xff]
          %v999 = vld [vmem:[#allocation2 + $0x18] sm:$0xff]
          %v1000 = vld [vmem:[#allocation2 + $0x20] sm:$0xff]
          %v1001 = vld [vmem:[#allocation2 + $0x28] sm:$0xff]
          %v1002 = vld [vmem:[#allocation2 + $0x30] sm:$0xff]
          %v1003 = vld [vmem:[#allocation2 + $0x38] sm:$0xff]
          %v1004 = vld [vmem:[#allocation2 + $0x40] sm:$0xff]
          %v1005 = vld [vmem:[#allocation2 + $0x48] sm:$0xff]
          %v1006 = vld [vmem:[#allocation2 + $0x50] sm:$0xff]
          %v1007 = vld [vmem:[#allocation2 + $0x58] sm:$0xff]
          %v1008 = vld [vmem:[#allocation2 + $0x60] sm:$0xff]
          %v1009 = vld [vmem:[#allocation2 + $0x68] sm:$0xff]
          %v1010 = vld [vmem:[#allocation2 + $0x70] sm:$0xff]
          %v1011 = vld [vmem:[#allocation2 + $0x78] sm:$0xff]
          %1012 = vmax.xlane.f32.xlu0 %v435
          %v1013 = vpop.xlane.xlu0 %1012
          %1014 = vmax.xlane.f32.xlu0 %v436
          %v1015 = vpop.xlane.xlu0 %1014
          %1016 = vmax.xlane.f32.xlu0 %v437
          %v1017 = vpop.xlane.xlu0 %1016
          %1018 = vmax.xlane.f32.xlu0 %v438
          %v1019 = vpop.xlane.xlu0 %1018
          %1020 = vmax.xlane.f32.xlu0 %v439
          %v1021 = vpop.xlane.xlu0 %1020
          %1022 = vmax.xlane.f32.xlu0 %v440
          %v1023 = vpop.xlane.xlu0 %1022
          %1024 = vmax.xlane.f32.xlu0 %v441
          %v1025 = vpop.xlane.xlu0 %1024
          %1026 = vmax.xlane.f32.xlu0 %v442
          %v1027 = vpop.xlane.xlu0 %1026
          %1028 = vmax.xlane.f32.xlu0 %v443
          %v1029 = vpop.xlane.xlu0 %1028
          %1030 = vmax.xlane.f32.xlu0 %v444
          %v1031 = vpop.xlane.xlu0 %1030
          %1032 = vmax.xlane.f32.xlu0 %v445
          %v1033 = vpop.xlane.xlu0 %1032
          %1034 = vmax.xlane.f32.xlu0 %v446
          %v1035 = vpop.xlane.xlu0 %1034
          %1036 = vmax.xlane.f32.xlu0 %v447
          %v1037 = vpop.xlane.xlu0 %1036
          %1038 = vmax.xlane.f32.xlu0 %v448
          %v1039 = vpop.xlane.xlu0 %1038
          %1040 = vmax.xlane.f32.xlu0 %v449
          %v1041 = vpop.xlane.xlu0 %1040
          %1042 = vmax.xlane.f32.xlu0 %v450
          %v1043 = vpop.xlane.xlu0 %1042
          %v1044 = vmax.f32 %v996, %v1013
          %v1045 = vmax.f32 %v997, %v1015
          %v1046 = vmax.f32 %v998, %v1017
          %v1047 = vmax.f32 %v999, %v1019
          %v1048 = vmax.f32 %v1000, %v1021
          %v1049 = vmax.f32 %v1001, %v1023
          %v1050 = vmax.f32 %v1002, %v1025
          %v1051 = vmax.f32 %v1003, %v1027
          %v1052 = vmax.f32 %v1004, %v1029
          %v1053 = vmax.f32 %v1005, %v1031
          %v1054 = vmax.f32 %v1006, %v1033
          %v1055 = vmax.f32 %v1007, %v1035
          %v1056 = vmax.f32 %v1008, %v1037
          %v1057 = vmax.f32 %v1009, %v1039
          %v1058 = vmax.f32 %v1010, %v1041
          %v1059 = vmax.f32 %v1011, %v1043
          %v1060 = vsub.f32 %v996, %v1044
          %v1061 = vsub.f32 %v997, %v1045
          %v1062 = vsub.f32 %v998, %v1046
          %v1063 = vsub.f32 %v999, %v1047
          %v1064 = vsub.f32 %v1000, %v1048
          %v1065 = vsub.f32 %v1001, %v1049
          %v1066 = vsub.f32 %v1002, %v1050
          %v1067 = vsub.f32 %v1003, %v1051
          %v1068 = vsub.f32 %v1004, %v1052
          %v1069 = vsub.f32 %v1005, %v1053
          %v1070 = vsub.f32 %v1006, %v1054
          %v1071 = vsub.f32 %v1007, %v1055
          %v1072 = vsub.f32 %v1008, %v1056
          %v1073 = vsub.f32 %v1009, %v1057
          %v1074 = vsub.f32 %v1010, %v1058
          %v1075 = vsub.f32 %v1011, %v1059
          %v1076 = vmul.f32 %v1060, 1.442695
          %v1077 = vpow.pop %v1076
          %v1078 = vmul.f32 %v1061, 1.442695
          %v1079 = vpow.pop %v1078
          %v1080 = vmul.f32 %v1062, 1.442695
          %v1081 = vpow.pop %v1080
          %v1082 = vmul.f32 %v1063, 1.442695
          %v1083 = vpow.pop %v1082
          %v1084 = vmul.f32 %v1064, 1.442695
          %v1085 = vpow.pop %v1084
          %v1086 = vmul.f32 %v1065, 1.442695
          %v1087 = vpow.pop %v1086
          %v1088 = vmul.f32 %v1066, 1.442695
          %v1089 = vpow.pop %v1088
          %v1090 = vmul.f32 %v1067, 1.442695
          %v1091 = vpow.pop %v1090
          %v1092 = vmul.f32 %v1068, 1.442695
          %v1093 = vpow.pop %v1092
          %v1094 = vmul.f32 %v1069, 1.442695
          %v1095 = vpow.pop %v1094
          %v1096 = vmul.f32 %v1070, 1.442695
          %v1097 = vpow.pop %v1096
          %v1098 = vmul.f32 %v1071, 1.442695
          %v1099 = vpow.pop %v1098
          %v1100 = vmul.f32 %v1072, 1.442695
          %v1101 = vpow.pop %v1100
          %v1102 = vmul.f32 %v1073, 1.442695
          %v1103 = vpow.pop %v1102
          %v1104 = vmul.f32 %v1074, 1.442695
          %v1105 = vpow.pop %v1104
          %v1106 = vmul.f32 %v1075, 1.442695
          %v1107 = vpow.pop %v1106
          %v1108 = vld [vmem:[#allocation3] sm:$0xff]
          %v1109 = vld [vmem:[#allocation3 + $0x8] sm:$0xff]
          %v1110 = vld [vmem:[#allocation3 + $0x10] sm:$0xff]
          %v1111 = vld [vmem:[#allocation3 + $0x18] sm:$0xff]
          %v1112 = vld [vmem:[#allocation3 + $0x20] sm:$0xff]
          %v1113 = vld [vmem:[#allocation3 + $0x28] sm:$0xff]
          %v1114 = vld [vmem:[#allocation3 + $0x30] sm:$0xff]
          %v1115 = vld [vmem:[#allocation3 + $0x38] sm:$0xff]
          %v1116 = vld [vmem:[#allocation3 + $0x40] sm:$0xff]
          %v1117 = vld [vmem:[#allocation3 + $0x48] sm:$0xff]
          %v1118 = vld [vmem:[#allocation3 + $0x50] sm:$0xff]
          %v1119 = vld [vmem:[#allocation3 + $0x58] sm:$0xff]
          %v1120 = vld [vmem:[#allocation3 + $0x60] sm:$0xff]
          %v1121 = vld [vmem:[#allocation3 + $0x68] sm:$0xff]
          %v1122 = vld [vmem:[#allocation3 + $0x70] sm:$0xff]
          %v1123 = vld [vmem:[#allocation3 + $0x78] sm:$0xff]
          %v1124 = vmul.f32 %v1077, %v1108
          %v1125 = vmul.f32 %v1079, %v1109
          %v1126 = vmul.f32 %v1081, %v1110
          %v1127 = vmul.f32 %v1083, %v1111
          %v1128 = vmul.f32 %v1085, %v1112
          %v1129 = vmul.f32 %v1087, %v1113
          %v1130 = vmul.f32 %v1089, %v1114
          %v1131 = vmul.f32 %v1091, %v1115
          %v1132 = vmul.f32 %v1093, %v1116
          %v1133 = vmul.f32 %v1095, %v1117
          %v1134 = vmul.f32 %v1097, %v1118
          %v1135 = vmul.f32 %v1099, %v1119
          %v1136 = vmul.f32 %v1101, %v1120
          %v1137 = vmul.f32 %v1103, %v1121
          %v1138 = vmul.f32 %v1105, %v1122
          %v1139 = vmul.f32 %v1107, %v1123
          %1141 = vset.pattern.permute.xlu0 0
          %1142 = vperm.xlu0 %1141, %v1044
          %v1143 = vpop.permute.xlu0 %1142
          %1146 = vset.pattern.permute.xlu0 0
          %1147 = vperm.xlu0 %1146, %v1045
          %v1148 = vpop.permute.xlu0 %1147
          %1151 = vset.pattern.permute.xlu0 0
          %1152 = vperm.xlu0 %1151, %v1046
          %v1153 = vpop.permute.xlu0 %1152
          %1156 = vset.pattern.permute.xlu0 0
          %1157 = vperm.xlu0 %1156, %v1047
          %v1158 = vpop.permute.xlu0 %1157
          %1161 = vset.pattern.permute.xlu0 0
          %1162 = vperm.xlu0 %1161, %v1048
          %v1163 = vpop.permute.xlu0 %1162
          %1166 = vset.pattern.permute.xlu0 0
          %1167 = vperm.xlu0 %1166, %v1049
          %v1168 = vpop.permute.xlu0 %1167
          %1171 = vset.pattern.permute.xlu0 0
          %1172 = vperm.xlu0 %1171, %v1050
          %v1173 = vpop.permute.xlu0 %1172
          %1176 = vset.pattern.permute.xlu0 0
          %1177 = vperm.xlu0 %1176, %v1051
          %v1178 = vpop.permute.xlu0 %1177
          %1181 = vset.pattern.permute.xlu0 0
          %1182 = vperm.xlu0 %1181, %v1052
          %v1183 = vpop.permute.xlu0 %1182
          %1186 = vset.pattern.permute.xlu0 0
          %1187 = vperm.xlu0 %1186, %v1053
          %v1188 = vpop.permute.xlu0 %1187
          %1191 = vset.pattern.permute.xlu0 0
          %1192 = vperm.xlu0 %1191, %v1054
          %v1193 = vpop.permute.xlu0 %1192
          %1196 = vset.pattern.permute.xlu0 0
          %1197 = vperm.xlu0 %1196, %v1055
          %v1198 = vpop.permute.xlu0 %1197
          %1201 = vset.pattern.permute.xlu0 0
          %1202 = vperm.xlu0 %1201, %v1056
          %v1203 = vpop.permute.xlu0 %1202
          %1206 = vset.pattern.permute.xlu0 0
          %1207 = vperm.xlu0 %1206, %v1057
          %v1208 = vpop.permute.xlu0 %1207
          %1211 = vset.pattern.permute.xlu0 0
          %1212 = vperm.xlu0 %1211, %v1058
          %v1213 = vpop.permute.xlu0 %1212
          %1216 = vset.pattern.permute.xlu0 0
          %1217 = vperm.xlu0 %1216, %v1059
          %v1218 = vpop.permute.xlu0 %1217
          %v1220 = vsub.f32 %v435, %v1143
          %v1221 = vsub.f32 %v436, %v1148
          %v1222 = vsub.f32 %v437, %v1153
          %v1223 = vsub.f32 %v438, %v1158
          %v1224 = vsub.f32 %v439, %v1163
          %v1225 = vsub.f32 %v440, %v1168
          %v1226 = vsub.f32 %v441, %v1173
          %v1227 = vsub.f32 %v442, %v1178
          %v1228 = vsub.f32 %v443, %v1183
          %v1229 = vsub.f32 %v444, %v1188
          %v1230 = vsub.f32 %v445, %v1193
          %v1231 = vsub.f32 %v446, %v1198
          %v1232 = vsub.f32 %v447, %v1203
          %v1233 = vsub.f32 %v448, %v1208
          %v1234 = vsub.f32 %v449, %v1213
          %v1235 = vsub.f32 %v450, %v1218
          %v1236 = vmul.f32 %v1220, 1.442695
          %v1237 = vpow.pop %v1236
          %v1238 = vmul.f32 %v1221, 1.442695
          %v1239 = vpow.pop %v1238
          %v1240 = vmul.f32 %v1222, 1.442695
          %v1241 = vpow.pop %v1240
          %v1242 = vmul.f32 %v1223, 1.442695
          %v1243 = vpow.pop %v1242
          %v1244 = vmul.f32 %v1224, 1.442695
          %v1245 = vpow.pop %v1244
          %v1246 = vmul.f32 %v1225, 1.442695
          %v1247 = vpow.pop %v1246
          %v1248 = vmul.f32 %v1226, 1.442695
          %v1249 = vpow.pop %v1248
          %v1250 = vmul.f32 %v1227, 1.442695
          %v1251 = vpow.pop %v1250
          %v1252 = vmul.f32 %v1228, 1.442695
          %v1253 = vpow.pop %v1252
          %v1254 = vmul.f32 %v1229, 1.442695
          %v1255 = vpow.pop %v1254
          %v1256 = vmul.f32 %v1230, 1.442695
          %v1257 = vpow.pop %v1256
          %v1258 = vmul.f32 %v1231, 1.442695
          %v1259 = vpow.pop %v1258
          %v1260 = vmul.f32 %v1232, 1.442695
          %v1261 = vpow.pop %v1260
          %v1262 = vmul.f32 %v1233, 1.442695
          %v1263 = vpow.pop %v1262
          %v1264 = vmul.f32 %v1234, 1.442695
          %v1265 = vpow.pop %v1264
          %v1266 = vmul.f32 %v1235, 1.442695
          %v1267 = vpow.pop %v1266
          %1268 = vadd.xlane.f32.xlu0 %v1237
          %v1269 = vpop.xlane.xlu0 %1268
          %1270 = vadd.xlane.f32.xlu0 %v1239
          %v1271 = vpop.xlane.xlu0 %1270
          %1272 = vadd.xlane.f32.xlu0 %v1241
          %v1273 = vpop.xlane.xlu0 %1272
          %1274 = vadd.xlane.f32.xlu0 %v1243
          %v1275 = vpop.xlane.xlu0 %1274
          %1276 = vadd.xlane.f32.xlu0 %v1245
          %v1277 = vpop.xlane.xlu0 %1276
          %1278 = vadd.xlane.f32.xlu0 %v1247
          %v1279 = vpop.xlane.xlu0 %1278
          %1280 = vadd.xlane.f32.xlu0 %v1249
          %v1281 = vpop.xlane.xlu0 %1280
          %1282 = vadd.xlane.f32.xlu0 %v1251
          %v1283 = vpop.xlane.xlu0 %1282
          %1284 = vadd.xlane.f32.xlu0 %v1253
          %v1285 = vpop.xlane.xlu0 %1284
          %1286 = vadd.xlane.f32.xlu0 %v1255
          %v1287 = vpop.xlane.xlu0 %1286
          %1288 = vadd.xlane.f32.xlu0 %v1257
          %v1289 = vpop.xlane.xlu0 %1288
          %1290 = vadd.xlane.f32.xlu0 %v1259
          %v1291 = vpop.xlane.xlu0 %1290
          %1292 = vadd.xlane.f32.xlu0 %v1261
          %v1293 = vpop.xlane.xlu0 %1292
          %1294 = vadd.xlane.f32.xlu0 %v1263
          %v1295 = vpop.xlane.xlu0 %1294
          %1296 = vadd.xlane.f32.xlu0 %v1265
          %v1297 = vpop.xlane.xlu0 %1296
          %1298 = vadd.xlane.f32.xlu0 %v1267
          %v1299 = vpop.xlane.xlu0 %1298
          %v1300 = vadd.f32 %v1124, %v1269
          %v1301 = vadd.f32 %v1125, %v1271
          %v1302 = vadd.f32 %v1126, %v1273
          %v1303 = vadd.f32 %v1127, %v1275
          %v1304 = vadd.f32 %v1128, %v1277
          %v1305 = vadd.f32 %v1129, %v1279
          %v1306 = vadd.f32 %v1130, %v1281
          %v1307 = vadd.f32 %v1131, %v1283
          %v1308 = vadd.f32 %v1132, %v1285
          %v1309 = vadd.f32 %v1133, %v1287
          %v1310 = vadd.f32 %v1134, %v1289
          %v1311 = vadd.f32 %v1135, %v1291
          %v1312 = vadd.f32 %v1136, %v1293
          %v1313 = vadd.f32 %v1137, %v1295
          %v1314 = vadd.f32 %v1138, %v1297
          %v1315 = vadd.f32 %v1139, %v1299
          %vm1316 = vcmask 7168
          %1317 = vst.msk [vmem:[#allocation3] sm:$0xff] %vm1316, %v1300
          %1318 = vst.msk [vmem:[#allocation3 + $0x8] sm:$0xff] %vm1316, %v1301
          %1319 = vst.msk [vmem:[#allocation3 + $0x10] sm:$0xff] %vm1316, %v1302
          %1320 = vst.msk [vmem:[#allocation3 + $0x18] sm:$0xff] %vm1316, %v1303
          %1321 = vst.msk [vmem:[#allocation3 + $0x20] sm:$0xff] %vm1316, %v1304
          %1322 = vst.msk [vmem:[#allocation3 + $0x28] sm:$0xff] %vm1316, %v1305
          %1323 = vst.msk [vmem:[#allocation3 + $0x30] sm:$0xff] %vm1316, %v1306
          %1324 = vst.msk [vmem:[#allocation3 + $0x38] sm:$0xff] %vm1316, %v1307
          %1325 = vst.msk [vmem:[#allocation3 + $0x40] sm:$0xff] %vm1316, %v1308
          %1326 = vst.msk [vmem:[#allocation3 + $0x48] sm:$0xff] %vm1316, %v1309
          %1327 = vst.msk [vmem:[#allocation3 + $0x50] sm:$0xff] %vm1316, %v1310
          %1328 = vst.msk [vmem:[#allocation3 + $0x58] sm:$0xff] %vm1316, %v1311
          %1329 = vst.msk [vmem:[#allocation3 + $0x60] sm:$0xff] %vm1316, %v1312
          %1330 = vst.msk [vmem:[#allocation3 + $0x68] sm:$0xff] %vm1316, %v1313
          %1331 = vst.msk [vmem:[#allocation3 + $0x70] sm:$0xff] %vm1316, %v1314
          %1332 = vst.msk [vmem:[#allocation3 + $0x78] sm:$0xff] %vm1316, %v1315
          %1333 = vst.msk [vmem:[#allocation2] sm:$0xff] %vm1316, %v1044
          %1334 = vst.msk [vmem:[#allocation2 + $0x8] sm:$0xff] %vm1316, %v1045
          %1335 = vst.msk [vmem:[#allocation2 + $0x10] sm:$0xff] %vm1316, %v1046
          %1336 = vst.msk [vmem:[#allocation2 + $0x18] sm:$0xff] %vm1316, %v1047
          %1337 = vst.msk [vmem:[#allocation2 + $0x20] sm:$0xff] %vm1316, %v1048
          %1338 = vst.msk [vmem:[#allocation2 + $0x28] sm:$0xff] %vm1316, %v1049
          %1339 = vst.msk [vmem:[#allocation2 + $0x30] sm:$0xff] %vm1316, %v1050
          %1340 = vst.msk [vmem:[#allocation2 + $0x38] sm:$0xff] %vm1316, %v1051
          %1341 = vst.msk [vmem:[#allocation2 + $0x40] sm:$0xff] %vm1316, %v1052
          %1342 = vst.msk [vmem:[#allocation2 + $0x48] sm:$0xff] %vm1316, %v1053
          %1343 = vst.msk [vmem:[#allocation2 + $0x50] sm:$0xff] %vm1316, %v1054
          %1344 = vst.msk [vmem:[#allocation2 + $0x58] sm:$0xff] %vm1316, %v1055
          %1345 = vst.msk [vmem:[#allocation2 + $0x60] sm:$0xff] %vm1316, %v1056
          %1346 = vst.msk [vmem:[#allocation2 + $0x68] sm:$0xff] %vm1316, %v1057
          %1347 = vst.msk [vmem:[#allocation2 + $0x70] sm:$0xff] %vm1316, %v1058
          %1348 = vst.msk [vmem:[#allocation2 + $0x78] sm:$0xff] %vm1316, %v1059
          // Predicated region
          $region65: #{contrastive_loss.1} parent=63 // pred_check
            _
          $region66: #{contrastive_loss.1} parent=63 // pred_check_branch
            %1350 = sbr.rel (%p412) target = $region68
          $region67: #{contrastive_loss.1} parent=63 // pred_region
            %v1351 = vlaneseq
            %v1352 = vshrl.u32 %v1351, 7
            %v1353 = vadd.s32 %v1352, 8
            %v1354 = vadd.s32 %v1352, 16
            %v1355 = vadd.s32 %v1352, 24
            %v1356 = vadd.s32 %v1352, 32
            %v1357 = vadd.s32 %v1352, 40
            %v1358 = vadd.s32 %v1352, 48
            %v1359 = vadd.s32 %v1352, 56
            %v1360 = vadd.s32 %v1352, 64
            %v1361 = vadd.s32 %v1352, 72
            %v1362 = vadd.s32 %v1352, 80
            %v1363 = vadd.s32 %v1352, 88
            %v1364 = vadd.s32 %v1352, 96
            %v1365 = vadd.s32 %v1352, 104
            %v1366 = vadd.s32 %v1352, 112
            %v1367 = vadd.s32 %v1352, 120
            %v1368 = vstv %s407
            %v1369 = vadd.s32 %v1368, %v1352
            %v1370 = vadd.s32 %v1368, %v1353
            %v1371 = vadd.s32 %v1368, %v1354
            %v1372 = vadd.s32 %v1368, %v1355
            %v1373 = vadd.s32 %v1368, %v1356
            %v1374 = vadd.s32 %v1368, %v1357
            %v1375 = vadd.s32 %v1368, %v1358
            %v1376 = vadd.s32 %v1368, %v1359
            %v1377 = vadd.s32 %v1368, %v1360
            %v1378 = vadd.s32 %v1368, %v1361
            %v1379 = vadd.s32 %v1368, %v1362
            %v1380 = vadd.s32 %v1368, %v1363
            %v1381 = vadd.s32 %v1368, %v1364
            %v1382 = vadd.s32 %v1368, %v1365
            %v1383 = vadd.s32 %v1368, %v1366
            %v1384 = vadd.s32 %v1368, %v1367
            %v1385 = vstv %s300
            %v1386 = vadd.s32 %v1369, %v1385
            %v1387 = vadd.s32 %v1370, %v1385
            %v1388 = vadd.s32 %v1371, %v1385
            %v1389 = vadd.s32 %v1372, %v1385
            %v1390 = vadd.s32 %v1373, %v1385
            %v1391 = vadd.s32 %v1374, %v1385
            %v1392 = vadd.s32 %v1375, %v1385
            %v1393 = vadd.s32 %v1376, %v1385
            %v1394 = vadd.s32 %v1377, %v1385
            %v1395 = vadd.s32 %v1378, %v1385
            %v1396 = vadd.s32 %v1379, %v1385
            %v1397 = vadd.s32 %v1380, %v1385
            %v1398 = vadd.s32 %v1381, %v1385
            %v1399 = vadd.s32 %v1382, %v1385
            %v1400 = vadd.s32 %v1383, %v1385
            %v1401 = vadd.s32 %v1384, %v1385
            %vm1402 = vcmp.eq.s32.totalorder %v417, %v1386
            %vm1403 = vcmp.eq.s32.totalorder %v417, %v1387
            %vm1404 = vcmp.eq.s32.totalorder %v417, %v1388
            %vm1405 = vcmp.eq.s32.totalorder %v417, %v1389
            %vm1406 = vcmp.eq.s32.totalorder %v417, %v1390
            %vm1407 = vcmp.eq.s32.totalorder %v417, %v1391
            %vm1408 = vcmp.eq.s32.totalorder %v417, %v1392
            %vm1409 = vcmp.eq.s32.totalorder %v417, %v1393
            %vm1410 = vcmp.eq.s32.totalorder %v417, %v1394
            %vm1411 = vcmp.eq.s32.totalorder %v417, %v1395
            %vm1412 = vcmp.eq.s32.totalorder %v417, %v1396
            %vm1413 = vcmp.eq.s32.totalorder %v417, %v1397
            %vm1414 = vcmp.eq.s32.totalorder %v417, %v1398
            %vm1415 = vcmp.eq.s32.totalorder %v417, %v1399
            %vm1416 = vcmp.eq.s32.totalorder %v417, %v1400
            %vm1417 = vcmp.eq.s32.totalorder %v417, %v1401
            %v1418 = vld [vmem:[#allocation4] sm:$0xff]
            %v1419 = vld [vmem:[#allocation4 + $0x8] sm:$0xff]
            %v1420 = vld [vmem:[#allocation4 + $0x10] sm:$0xff]
            %v1421 = vld [vmem:[#allocation4 + $0x18] sm:$0xff]
            %v1422 = vld [vmem:[#allocation4 + $0x20] sm:$0xff]
            %v1423 = vld [vmem:[#allocation4 + $0x28] sm:$0xff]
            %v1424 = vld [vmem:[#allocation4 + $0x30] sm:$0xff]
            %v1425 = vld [vmem:[#allocation4 + $0x38] sm:$0xff]
            %v1426 = vld [vmem:[#allocation4 + $0x40] sm:$0xff]
            %v1427 = vld [vmem:[#allocation4 + $0x48] sm:$0xff]
            %v1428 = vld [vmem:[#allocation4 + $0x50] sm:$0xff]
            %v1429 = vld [vmem:[#allocation4 + $0x58] sm:$0xff]
            %v1430 = vld [vmem:[#allocation4 + $0x60] sm:$0xff]
            %v1431 = vld [vmem:[#allocation4 + $0x68] sm:$0xff]
            %v1432 = vld [vmem:[#allocation4 + $0x70] sm:$0xff]
            %v1433 = vld [vmem:[#allocation4 + $0x78] sm:$0xff]
            %v1434 = vsel %vm1402, %v435, 0.0
            %v1435 = vsel %vm1403, %v436, 0.0
            %v1436 = vsel %vm1404, %v437, 0.0
            %v1437 = vsel %vm1405, %v438, 0.0
            %v1438 = vsel %vm1406, %v439, 0.0
            %v1439 = vsel %vm1407, %v440, 0.0
            %v1440 = vsel %vm1408, %v441, 0.0
            %v1441 = vsel %vm1409, %v442, 0.0
            %v1442 = vsel %vm1410, %v443, 0.0
            %v1443 = vsel %vm1411, %v444, 0.0
            %v1444 = vsel %vm1412, %v445, 0.0
            %v1445 = vsel %vm1413, %v446, 0.0
            %v1446 = vsel %vm1414, %v447, 0.0
            %v1447 = vsel %vm1415, %v448, 0.0
            %v1448 = vsel %vm1416, %v449, 0.0
            %v1449 = vsel %vm1417, %v450, 0.0
            %1450 = vadd.xlane.f32.xlu0 %v1434
            %v1451 = vpop.xlane.xlu0 %1450
            %1452 = vadd.xlane.f32.xlu0 %v1435
            %v1453 = vpop.xlane.xlu0 %1452
            %1454 = vadd.xlane.f32.xlu0 %v1436
            %v1455 = vpop.xlane.xlu0 %1454
            %1456 = vadd.xlane.f32.xlu0 %v1437
            %v1457 = vpop.xlane.xlu0 %1456
            %1458 = vadd.xlane.f32.xlu0 %v1438
            %v1459 = vpop.xlane.xlu0 %1458
            %1460 = vadd.xlane.f32.xlu0 %v1439
            %v1461 = vpop.xlane.xlu0 %1460
            %1462 = vadd.xlane.f32.xlu0 %v1440
            %v1463 = vpop.xlane.xlu0 %1462
            %1464 = vadd.xlane.f32.xlu0 %v1441
            %v1465 = vpop.xlane.xlu0 %1464
            %1466 = vadd.xlane.f32.xlu0 %v1442
            %v1467 = vpop.xlane.xlu0 %1466
            %1468 = vadd.xlane.f32.xlu0 %v1443
            %v1469 = vpop.xlane.xlu0 %1468
            %1470 = vadd.xlane.f32.xlu0 %v1444
            %v1471 = vpop.xlane.xlu0 %1470
            %1472 = vadd.xlane.f32.xlu0 %v1445
            %v1473 = vpop.xlane.xlu0 %1472
            %1474 = vadd.xlane.f32.xlu0 %v1446
            %v1475 = vpop.xlane.xlu0 %1474
            %1476 = vadd.xlane.f32.xlu0 %v1447
            %v1477 = vpop.xlane.xlu0 %1476
            %1478 = vadd.xlane.f32.xlu0 %v1448
            %v1479 = vpop.xlane.xlu0 %1478
            %1480 = vadd.xlane.f32.xlu0 %v1449
            %v1481 = vpop.xlane.xlu0 %1480
            %v1482 = vadd.f32 %v1418, %v1451
            %v1483 = vadd.f32 %v1419, %v1453
            %v1484 = vadd.f32 %v1420, %v1455
            %v1485 = vadd.f32 %v1421, %v1457
            %v1486 = vadd.f32 %v1422, %v1459
            %v1487 = vadd.f32 %v1423, %v1461
            %v1488 = vadd.f32 %v1424, %v1463
            %v1489 = vadd.f32 %v1425, %v1465
            %v1490 = vadd.f32 %v1426, %v1467
            %v1491 = vadd.f32 %v1427, %v1469
            %v1492 = vadd.f32 %v1428, %v1471
            %v1493 = vadd.f32 %v1429, %v1473
            %v1494 = vadd.f32 %v1430, %v1475
            %v1495 = vadd.f32 %v1431, %v1477
            %v1496 = vadd.f32 %v1432, %v1479
            %v1497 = vadd.f32 %v1433, %v1481
            %1498 = vst.msk [vmem:[#allocation4] sm:$0xff] %vm1316, %v1482
            %1499 = vst.msk [vmem:[#allocation4 + $0x8] sm:$0xff] %vm1316, %v1483
            %1500 = vst.msk [vmem:[#allocation4 + $0x10] sm:$0xff] %vm1316, %v1484
            %1501 = vst.msk [vmem:[#allocation4 + $0x18] sm:$0xff] %vm1316, %v1485
            %1502 = vst.msk [vmem:[#allocation4 + $0x20] sm:$0xff] %vm1316, %v1486
            %1503 = vst.msk [vmem:[#allocation4 + $0x28] sm:$0xff] %vm1316, %v1487
            %1504 = vst.msk [vmem:[#allocation4 + $0x30] sm:$0xff] %vm1316, %v1488
            %1505 = vst.msk [vmem:[#allocation4 + $0x38] sm:$0xff] %vm1316, %v1489
            %1506 = vst.msk [vmem:[#allocation4 + $0x40] sm:$0xff] %vm1316, %v1490
            %1507 = vst.msk [vmem:[#allocation4 + $0x48] sm:$0xff] %vm1316, %v1491
            %1508 = vst.msk [vmem:[#allocation4 + $0x50] sm:$0xff] %vm1316, %v1492
            %1509 = vst.msk [vmem:[#allocation4 + $0x58] sm:$0xff] %vm1316, %v1493
            %1510 = vst.msk [vmem:[#allocation4 + $0x60] sm:$0xff] %vm1316, %v1494
            %1511 = vst.msk [vmem:[#allocation4 + $0x68] sm:$0xff] %vm1316, %v1495
            %1512 = vst.msk [vmem:[#allocation4 + $0x70] sm:$0xff] %vm1316, %v1496
            %1513 = vst.msk [vmem:[#allocation4 + $0x78] sm:$0xff] %vm1316, %v1497
          $region68: #{contrastive_loss.1} parent=63 // pred_fallthru
            _
        $region64: #{contrastive_loss.1} parent=35 // pred_fallthru
          _
        %v1514 = vld [vmem:[%s257] sm:$0xff]
        %v1515 = vld [vmem:[%s257 + $0x8] sm:$0xff]
        %v1516 = vld [vmem:[%s257 + $0x10] sm:$0xff]
        %v1517 = vld [vmem:[%s257 + $0x18] sm:$0xff]
        %v1518 = vld [vmem:[%s257 + $0x20] sm:$0xff]
        %v1519 = vld [vmem:[%s257 + $0x28] sm:$0xff]
        %v1520 = vld [vmem:[%s257 + $0x30] sm:$0xff]
        %v1521 = vld [vmem:[%s257 + $0x38] sm:$0xff]
        %v1522 = vld [vmem:[%s257 + $0x40] sm:$0xff]
        %v1523 = vld [vmem:[%s257 + $0x48] sm:$0xff]
        %v1524 = vld [vmem:[%s257 + $0x50] sm:$0xff]
        %v1525 = vld [vmem:[%s257 + $0x58] sm:$0xff]
        %v1526 = vld [vmem:[%s257 + $0x60] sm:$0xff]
        %v1527 = vld [vmem:[%s257 + $0x68] sm:$0xff]
        %v1528 = vld [vmem:[%s257 + $0x70] sm:$0xff]
        %v1529 = vld [vmem:[%s257 + $0x78] sm:$0xff]
        %v1530 = vmul.f32 %v1514, %v434
        %v1531 = vmul.f32 %v1515, %v434
        %v1532 = vmul.f32 %v1516, %v434
        %v1533 = vmul.f32 %v1517, %v434
        %v1534 = vmul.f32 %v1518, %v434
        %v1535 = vmul.f32 %v1519, %v434
        %v1536 = vmul.f32 %v1520, %v434
        %v1537 = vmul.f32 %v1521, %v434
        %v1538 = vmul.f32 %v1522, %v434
        %v1539 = vmul.f32 %v1523, %v434
        %v1540 = vmul.f32 %v1524, %v434
        %v1541 = vmul.f32 %v1525, %v434
        %v1542 = vmul.f32 %v1526, %v434
        %v1543 = vmul.f32 %v1527, %v434
        %v1544 = vmul.f32 %v1528, %v434
        %v1545 = vmul.f32 %v1529, %v434
        // Predicated region
        $region69: #{contrastive_loss.1} parent=35 // pred_check
          %p1546 = pneg %p406
        $region70: #{contrastive_loss.1} parent=35 // pred_check_branch
          %1548 = sbr.rel (%p1546) target = $region72
        $region71: #{contrastive_loss.1} parent=35 // pred_region
          %v1549 = vstv %s302
          %vm1550 = vcmp.lt.s32.totalorder %v417, %v1549
          %v1551 = vsel %vm1550, 1, 0
          %vm1552 = vcmp.eq.s32.totalorder %v1551, 1
          %v1553 = vsel %vm1552, %v1530, -inf
          %v1554 = vsel %vm1552, %v1531, -inf
          %v1555 = vsel %vm1552, %v1532, -inf
          %v1556 = vsel %vm1552, %v1533, -inf
          %v1557 = vsel %vm1552, %v1534, -inf
          %v1558 = vsel %vm1552, %v1535, -inf
          %v1559 = vsel %vm1552, %v1536, -inf
          %v1560 = vsel %vm1552, %v1537, -inf
          %v1561 = vsel %vm1552, %v1538, -inf
          %v1562 = vsel %vm1552, %v1539, -inf
          %v1563 = vsel %vm1552, %v1540, -inf
          %v1564 = vsel %vm1552, %v1541, -inf
          %v1565 = vsel %vm1552, %v1542, -inf
          %v1566 = vsel %vm1552, %v1543, -inf
          %v1567 = vsel %vm1552, %v1544, -inf
          %v1568 = vsel %vm1552, %v1545, -inf
          %s1569 = scalar_lea.vmem [#allocation2], 128
          %v1570 = vld [vmem:[%s1569] sm:$0xff]
          %v1571 = vld [vmem:[%s1569 + $0x8] sm:$0xff]
          %v1572 = vld [vmem:[%s1569 + $0x10] sm:$0xff]
          %v1573 = vld [vmem:[%s1569 + $0x18] sm:$0xff]
          %v1574 = vld [vmem:[%s1569 + $0x20] sm:$0xff]
          %v1575 = vld [vmem:[%s1569 + $0x28] sm:$0xff]
          %v1576 = vld [vmem:[%s1569 + $0x30] sm:$0xff]
          %v1577 = vld [vmem:[%s1569 + $0x38] sm:$0xff]
          %v1578 = vld [vmem:[%s1569 + $0x40] sm:$0xff]
          %v1579 = vld [vmem:[%s1569 + $0x48] sm:$0xff]
          %v1580 = vld [vmem:[%s1569 + $0x50] sm:$0xff]
          %v1581 = vld [vmem:[%s1569 + $0x58] sm:$0xff]
          %v1582 = vld [vmem:[%s1569 + $0x60] sm:$0xff]
          %v1583 = vld [vmem:[%s1569 + $0x68] sm:$0xff]
          %v1584 = vld [vmem:[%s1569 + $0x70] sm:$0xff]
          %v1585 = vld [vmem:[%s1569 + $0x78] sm:$0xff]
          %1586 = vmax.xlane.f32.xlu0 %v1553
          %v1587 = vpop.xlane.xlu0 %1586
          %1588 = vmax.xlane.f32.xlu0 %v1554
          %v1589 = vpop.xlane.xlu0 %1588
          %1590 = vmax.xlane.f32.xlu0 %v1555
          %v1591 = vpop.xlane.xlu0 %1590
          %1592 = vmax.xlane.f32.xlu0 %v1556
          %v1593 = vpop.xlane.xlu0 %1592
          %1594 = vmax.xlane.f32.xlu0 %v1557
          %v1595 = vpop.xlane.xlu0 %1594
          %1596 = vmax.xlane.f32.xlu0 %v1558
          %v1597 = vpop.xlane.xlu0 %1596
          %1598 = vmax.xlane.f32.xlu0 %v1559
          %v1599 = vpop.xlane.xlu0 %1598
          %1600 = vmax.xlane.f32.xlu0 %v1560
          %v1601 = vpop.xlane.xlu0 %1600
          %1602 = vmax.xlane.f32.xlu0 %v1561
          %v1603 = vpop.xlane.xlu0 %1602
          %1604 = vmax.xlane.f32.xlu0 %v1562
          %v1605 = vpop.xlane.xlu0 %1604
          %1606 = vmax.xlane.f32.xlu0 %v1563
          %v1607 = vpop.xlane.xlu0 %1606
          %1608 = vmax.xlane.f32.xlu0 %v1564
          %v1609 = vpop.xlane.xlu0 %1608
          %1610 = vmax.xlane.f32.xlu0 %v1565
          %v1611 = vpop.xlane.xlu0 %1610
          %1612 = vmax.xlane.f32.xlu0 %v1566
          %v1613 = vpop.xlane.xlu0 %1612
          %1614 = vmax.xlane.f32.xlu0 %v1567
          %v1615 = vpop.xlane.xlu0 %1614
          %1616 = vmax.xlane.f32.xlu0 %v1568
          %v1617 = vpop.xlane.xlu0 %1616
          %v1618 = vmax.f32 %v1570, %v1587
          %v1619 = vmax.f32 %v1571, %v1589
          %v1620 = vmax.f32 %v1572, %v1591
          %v1621 = vmax.f32 %v1573, %v1593
          %v1622 = vmax.f32 %v1574, %v1595
          %v1623 = vmax.f32 %v1575, %v1597
          %v1624 = vmax.f32 %v1576, %v1599
          %v1625 = vmax.f32 %v1577, %v1601
          %v1626 = vmax.f32 %v1578, %v1603
          %v1627 = vmax.f32 %v1579, %v1605
          %v1628 = vmax.f32 %v1580, %v1607
          %v1629 = vmax.f32 %v1581, %v1609
          %v1630 = vmax.f32 %v1582, %v1611
          %v1631 = vmax.f32 %v1583, %v1613
          %v1632 = vmax.f32 %v1584, %v1615
          %v1633 = vmax.f32 %v1585, %v1617
          %v1634 = vsub.f32 %v1570, %v1618
          %v1635 = vsub.f32 %v1571, %v1619
          %v1636 = vsub.f32 %v1572, %v1620
          %v1637 = vsub.f32 %v1573, %v1621
          %v1638 = vsub.f32 %v1574, %v1622
          %v1639 = vsub.f32 %v1575, %v1623
          %v1640 = vsub.f32 %v1576, %v1624
          %v1641 = vsub.f32 %v1577, %v1625
          %v1642 = vsub.f32 %v1578, %v1626
          %v1643 = vsub.f32 %v1579, %v1627
          %v1644 = vsub.f32 %v1580, %v1628
          %v1645 = vsub.f32 %v1581, %v1629
          %v1646 = vsub.f32 %v1582, %v1630
          %v1647 = vsub.f32 %v1583, %v1631
          %v1648 = vsub.f32 %v1584, %v1632
          %v1649 = vsub.f32 %v1585, %v1633
          %v1650 = vmul.f32 %v1634, 1.442695
          %v1651 = vpow.pop %v1650
          %v1652 = vmul.f32 %v1635, 1.442695
          %v1653 = vpow.pop %v1652
          %v1654 = vmul.f32 %v1636, 1.442695
          %v1655 = vpow.pop %v1654
          %v1656 = vmul.f32 %v1637, 1.442695
          %v1657 = vpow.pop %v1656
          %v1658 = vmul.f32 %v1638, 1.442695
          %v1659 = vpow.pop %v1658
          %v1660 = vmul.f32 %v1639, 1.442695
          %v1661 = vpow.pop %v1660
          %v1662 = vmul.f32 %v1640, 1.442695
          %v1663 = vpow.pop %v1662
          %v1664 = vmul.f32 %v1641, 1.442695
          %v1665 = vpow.pop %v1664
          %v1666 = vmul.f32 %v1642, 1.442695
          %v1667 = vpow.pop %v1666
          %v1668 = vmul.f32 %v1643, 1.442695
          %v1669 = vpow.pop %v1668
          %v1670 = vmul.f32 %v1644, 1.442695
          %v1671 = vpow.pop %v1670
          %v1672 = vmul.f32 %v1645, 1.442695
          %v1673 = vpow.pop %v1672
          %v1674 = vmul.f32 %v1646, 1.442695
          %v1675 = vpow.pop %v1674
          %v1676 = vmul.f32 %v1647, 1.442695
          %v1677 = vpow.pop %v1676
          %v1678 = vmul.f32 %v1648, 1.442695
          %v1679 = vpow.pop %v1678
          %v1680 = vmul.f32 %v1649, 1.442695
          %v1681 = vpow.pop %v1680
          %s1682 = scalar_lea.vmem [#allocation3], 128
          %v1683 = vld [vmem:[%s1682] sm:$0xff]
          %v1684 = vld [vmem:[%s1682 + $0x8] sm:$0xff]
          %v1685 = vld [vmem:[%s1682 + $0x10] sm:$0xff]
          %v1686 = vld [vmem:[%s1682 + $0x18] sm:$0xff]
          %v1687 = vld [vmem:[%s1682 + $0x20] sm:$0xff]
          %v1688 = vld [vmem:[%s1682 + $0x28] sm:$0xff]
          %v1689 = vld [vmem:[%s1682 + $0x30] sm:$0xff]
          %v1690 = vld [vmem:[%s1682 + $0x38] sm:$0xff]
          %v1691 = vld [vmem:[%s1682 + $0x40] sm:$0xff]
          %v1692 = vld [vmem:[%s1682 + $0x48] sm:$0xff]
          %v1693 = vld [vmem:[%s1682 + $0x50] sm:$0xff]
          %v1694 = vld [vmem:[%s1682 + $0x58] sm:$0xff]
          %v1695 = vld [vmem:[%s1682 + $0x60] sm:$0xff]
          %v1696 = vld [vmem:[%s1682 + $0x68] sm:$0xff]
          %v1697 = vld [vmem:[%s1682 + $0x70] sm:$0xff]
          %v1698 = vld [vmem:[%s1682 + $0x78] sm:$0xff]
          %v1699 = vmul.f32 %v1651, %v1683
          %v1700 = vmul.f32 %v1653, %v1684
          %v1701 = vmul.f32 %v1655, %v1685
          %v1702 = vmul.f32 %v1657, %v1686
          %v1703 = vmul.f32 %v1659, %v1687
          %v1704 = vmul.f32 %v1661, %v1688
          %v1705 = vmul.f32 %v1663, %v1689
          %v1706 = vmul.f32 %v1665, %v1690
          %v1707 = vmul.f32 %v1667, %v1691
          %v1708 = vmul.f32 %v1669, %v1692
          %v1709 = vmul.f32 %v1671, %v1693
          %v1710 = vmul.f32 %v1673, %v1694
          %v1711 = vmul.f32 %v1675, %v1695
          %v1712 = vmul.f32 %v1677, %v1696
          %v1713 = vmul.f32 %v1679, %v1697
          %v1714 = vmul.f32 %v1681, %v1698
          %1716 = vset.pattern.permute.xlu0 0
          %1717 = vperm.xlu0 %1716, %v1618
          %v1718 = vpop.permute.xlu0 %1717
          %1721 = vset.pattern.permute.xlu0 0
          %1722 = vperm.xlu0 %1721, %v1619
          %v1723 = vpop.permute.xlu0 %1722
          %1726 = vset.pattern.permute.xlu0 0
          %1727 = vperm.xlu0 %1726, %v1620
          %v1728 = vpop.permute.xlu0 %1727
          %1731 = vset.pattern.permute.xlu0 0
          %1732 = vperm.xlu0 %1731, %v1621
          %v1733 = vpop.permute.xlu0 %1732
          %1736 = vset.pattern.permute.xlu0 0
          %1737 = vperm.xlu0 %1736, %v1622
          %v1738 = vpop.permute.xlu0 %1737
          %1741 = vset.pattern.permute.xlu0 0
          %1742 = vperm.xlu0 %1741, %v1623
          %v1743 = vpop.permute.xlu0 %1742
          %1746 = vset.pattern.permute.xlu0 0
          %1747 = vperm.xlu0 %1746, %v1624
          %v1748 = vpop.permute.xlu0 %1747
          %1751 = vset.pattern.permute.xlu0 0
          %1752 = vperm.xlu0 %1751, %v1625
          %v1753 = vpop.permute.xlu0 %1752
          %1756 = vset.pattern.permute.xlu0 0
          %1757 = vperm.xlu0 %1756, %v1626
          %v1758 = vpop.permute.xlu0 %1757
          %1761 = vset.pattern.permute.xlu0 0
          %1762 = vperm.xlu0 %1761, %v1627
          %v1763 = vpop.permute.xlu0 %1762
          %1766 = vset.pattern.permute.xlu0 0
          %1767 = vperm.xlu0 %1766, %v1628
          %v1768 = vpop.permute.xlu0 %1767
          %1771 = vset.pattern.permute.xlu0 0
          %1772 = vperm.xlu0 %1771, %v1629
          %v1773 = vpop.permute.xlu0 %1772
          %1776 = vset.pattern.permute.xlu0 0
          %1777 = vperm.xlu0 %1776, %v1630
          %v1778 = vpop.permute.xlu0 %1777
          %1781 = vset.pattern.permute.xlu0 0
          %1782 = vperm.xlu0 %1781, %v1631
          %v1783 = vpop.permute.xlu0 %1782
          %1786 = vset.pattern.permute.xlu0 0
          %1787 = vperm.xlu0 %1786, %v1632
          %v1788 = vpop.permute.xlu0 %1787
          %1791 = vset.pattern.permute.xlu0 0
          %1792 = vperm.xlu0 %1791, %v1633
          %v1793 = vpop.permute.xlu0 %1792
          %v1795 = vsub.f32 %v1553, %v1718
          %v1796 = vsub.f32 %v1554, %v1723
          %v1797 = vsub.f32 %v1555, %v1728
          %v1798 = vsub.f32 %v1556, %v1733
          %v1799 = vsub.f32 %v1557, %v1738
          %v1800 = vsub.f32 %v1558, %v1743
          %v1801 = vsub.f32 %v1559, %v1748
          %v1802 = vsub.f32 %v1560, %v1753
          %v1803 = vsub.f32 %v1561, %v1758
          %v1804 = vsub.f32 %v1562, %v1763
          %v1805 = vsub.f32 %v1563, %v1768
          %v1806 = vsub.f32 %v1564, %v1773
          %v1807 = vsub.f32 %v1565, %v1778
          %v1808 = vsub.f32 %v1566, %v1783
          %v1809 = vsub.f32 %v1567, %v1788
          %v1810 = vsub.f32 %v1568, %v1793
          %v1811 = vmul.f32 %v1795, 1.442695
          %v1812 = vpow.pop %v1811
          %v1813 = vmul.f32 %v1796, 1.442695
          %v1814 = vpow.pop %v1813
          %v1815 = vmul.f32 %v1797, 1.442695
          %v1816 = vpow.pop %v1815
          %v1817 = vmul.f32 %v1798, 1.442695
          %v1818 = vpow.pop %v1817
          %v1819 = vmul.f32 %v1799, 1.442695
          %v1820 = vpow.pop %v1819
          %v1821 = vmul.f32 %v1800, 1.442695
          %v1822 = vpow.pop %v1821
          %v1823 = vmul.f32 %v1801, 1.442695
          %v1824 = vpow.pop %v1823
          %v1825 = vmul.f32 %v1802, 1.442695
          %v1826 = vpow.pop %v1825
          %v1827 = vmul.f32 %v1803, 1.442695
          %v1828 = vpow.pop %v1827
          %v1829 = vmul.f32 %v1804, 1.442695
          %v1830 = vpow.pop %v1829
          %v1831 = vmul.f32 %v1805, 1.442695
          %v1832 = vpow.pop %v1831
          %v1833 = vmul.f32 %v1806, 1.442695
          %v1834 = vpow.pop %v1833
          %v1835 = vmul.f32 %v1807, 1.442695
          %v1836 = vpow.pop %v1835
          %v1837 = vmul.f32 %v1808, 1.442695
          %v1838 = vpow.pop %v1837
          %v1839 = vmul.f32 %v1809, 1.442695
          %v1840 = vpow.pop %v1839
          %v1841 = vmul.f32 %v1810, 1.442695
          %v1842 = vpow.pop %v1841
          %1843 = vadd.xlane.f32.xlu0 %v1812
          %v1844 = vpop.xlane.xlu0 %1843
          %1845 = vadd.xlane.f32.xlu0 %v1814
          %v1846 = vpop.xlane.xlu0 %1845
          %1847 = vadd.xlane.f32.xlu0 %v1816
          %v1848 = vpop.xlane.xlu0 %1847
          %1849 = vadd.xlane.f32.xlu0 %v1818
          %v1850 = vpop.xlane.xlu0 %1849
          %1851 = vadd.xlane.f32.xlu0 %v1820
          %v1852 = vpop.xlane.xlu0 %1851
          %1853 = vadd.xlane.f32.xlu0 %v1822
          %v1854 = vpop.xlane.xlu0 %1853
          %1855 = vadd.xlane.f32.xlu0 %v1824
          %v1856 = vpop.xlane.xlu0 %1855
          %1857 = vadd.xlane.f32.xlu0 %v1826
          %v1858 = vpop.xlane.xlu0 %1857
          %1859 = vadd.xlane.f32.xlu0 %v1828
          %v1860 = vpop.xlane.xlu0 %1859
          %1861 = vadd.xlane.f32.xlu0 %v1830
          %v1862 = vpop.xlane.xlu0 %1861
          %1863 = vadd.xlane.f32.xlu0 %v1832
          %v1864 = vpop.xlane.xlu0 %1863
          %1865 = vadd.xlane.f32.xlu0 %v1834
          %v1866 = vpop.xlane.xlu0 %1865
          %1867 = vadd.xlane.f32.xlu0 %v1836
          %v1868 = vpop.xlane.xlu0 %1867
          %1869 = vadd.xlane.f32.xlu0 %v1838
          %v1870 = vpop.xlane.xlu0 %1869
          %1871 = vadd.xlane.f32.xlu0 %v1840
          %v1872 = vpop.xlane.xlu0 %1871
          %1873 = vadd.xlane.f32.xlu0 %v1842
          %v1874 = vpop.xlane.xlu0 %1873
          %v1875 = vadd.f32 %v1699, %v1844
          %v1876 = vadd.f32 %v1700, %v1846
          %v1877 = vadd.f32 %v1701, %v1848
          %v1878 = vadd.f32 %v1702, %v1850
          %v1879 = vadd.f32 %v1703, %v1852
          %v1880 = vadd.f32 %v1704, %v1854
          %v1881 = vadd.f32 %v1705, %v1856
          %v1882 = vadd.f32 %v1706, %v1858
          %v1883 = vadd.f32 %v1707, %v1860
          %v1884 = vadd.f32 %v1708, %v1862
          %v1885 = vadd.f32 %v1709, %v1864
          %v1886 = vadd.f32 %v1710, %v1866
          %v1887 = vadd.f32 %v1711, %v1868
          %v1888 = vadd.f32 %v1712, %v1870
          %v1889 = vadd.f32 %v1713, %v1872
          %v1890 = vadd.f32 %v1714, %v1874
          %vm1891 = vcmask 7168
          %1892 = vst.msk [vmem:[%s1682] sm:$0xff] %vm1891, %v1875
          %1893 = vst.msk [vmem:[%s1682 + $0x8] sm:$0xff] %vm1891, %v1876
          %1894 = vst.msk [vmem:[%s1682 + $0x10] sm:$0xff] %vm1891, %v1877
          %1895 = vst.msk [vmem:[%s1682 + $0x18] sm:$0xff] %vm1891, %v1878
          %1896 = vst.msk [vmem:[%s1682 + $0x20] sm:$0xff] %vm1891, %v1879
          %1897 = vst.msk [vmem:[%s1682 + $0x28] sm:$0xff] %vm1891, %v1880
          %1898 = vst.msk [vmem:[%s1682 + $0x30] sm:$0xff] %vm1891, %v1881
          %1899 = vst.msk [vmem:[%s1682 + $0x38] sm:$0xff] %vm1891, %v1882
          %1900 = vst.msk [vmem:[%s1682 + $0x40] sm:$0xff] %vm1891, %v1883
          %1901 = vst.msk [vmem:[%s1682 + $0x48] sm:$0xff] %vm1891, %v1884
          %1902 = vst.msk [vmem:[%s1682 + $0x50] sm:$0xff] %vm1891, %v1885
          %1903 = vst.msk [vmem:[%s1682 + $0x58] sm:$0xff] %vm1891, %v1886
          %1904 = vst.msk [vmem:[%s1682 + $0x60] sm:$0xff] %vm1891, %v1887
          %1905 = vst.msk [vmem:[%s1682 + $0x68] sm:$0xff] %vm1891, %v1888
          %1906 = vst.msk [vmem:[%s1682 + $0x70] sm:$0xff] %vm1891, %v1889
          %1907 = vst.msk [vmem:[%s1682 + $0x78] sm:$0xff] %vm1891, %v1890
          %1908 = vst.msk [vmem:[%s1569] sm:$0xff] %vm1891, %v1618
          %1909 = vst.msk [vmem:[%s1569 + $0x8] sm:$0xff] %vm1891, %v1619
          %1910 = vst.msk [vmem:[%s1569 + $0x10] sm:$0xff] %vm1891, %v1620
          %1911 = vst.msk [vmem:[%s1569 + $0x18] sm:$0xff] %vm1891, %v1621
          %1912 = vst.msk [vmem:[%s1569 + $0x20] sm:$0xff] %vm1891, %v1622
          %1913 = vst.msk [vmem:[%s1569 + $0x28] sm:$0xff] %vm1891, %v1623
          %1914 = vst.msk [vmem:[%s1569 + $0x30] sm:$0xff] %vm1891, %v1624
          %1915 = vst.msk [vmem:[%s1569 + $0x38] sm:$0xff] %vm1891, %v1625
          %1916 = vst.msk [vmem:[%s1569 + $0x40] sm:$0xff] %vm1891, %v1626
          %1917 = vst.msk [vmem:[%s1569 + $0x48] sm:$0xff] %vm1891, %v1627
          %1918 = vst.msk [vmem:[%s1569 + $0x50] sm:$0xff] %vm1891, %v1628
          %1919 = vst.msk [vmem:[%s1569 + $0x58] sm:$0xff] %vm1891, %v1629
          %1920 = vst.msk [vmem:[%s1569 + $0x60] sm:$0xff] %vm1891, %v1630
          %1921 = vst.msk [vmem:[%s1569 + $0x68] sm:$0xff] %vm1891, %v1631
          %1922 = vst.msk [vmem:[%s1569 + $0x70] sm:$0xff] %vm1891, %v1632
          %1923 = vst.msk [vmem:[%s1569 + $0x78] sm:$0xff] %vm1891, %v1633
          // Predicated region
          $region73: #{contrastive_loss.1} parent=71 // pred_check
            _
          $region74: #{contrastive_loss.1} parent=71 // pred_check_branch
            %1925 = sbr.rel (%p412) target = $region76
          $region75: #{contrastive_loss.1} parent=71 // pred_region
            %v1926 = vlaneseq
            %v1927 = vshrl.u32 %v1926, 7
            %v1928 = vadd.s32 %v1927, 8
            %v1929 = vadd.s32 %v1927, 16
            %v1930 = vadd.s32 %v1927, 24
            %v1931 = vadd.s32 %v1927, 32
            %v1932 = vadd.s32 %v1927, 40
            %v1933 = vadd.s32 %v1927, 48
            %v1934 = vadd.s32 %v1927, 56
            %v1935 = vadd.s32 %v1927, 64
            %v1936 = vadd.s32 %v1927, 72
            %v1937 = vadd.s32 %v1927, 80
            %v1938 = vadd.s32 %v1927, 88
            %v1939 = vadd.s32 %v1927, 96
            %v1940 = vadd.s32 %v1927, 104
            %v1941 = vadd.s32 %v1927, 112
            %v1942 = vadd.s32 %v1927, 120
            %v1943 = vstv %s407
            %v1944 = vadd.s32 %v1943, %v1927
            %v1945 = vadd.s32 %v1943, %v1928
            %v1946 = vadd.s32 %v1943, %v1929
            %v1947 = vadd.s32 %v1943, %v1930
            %v1948 = vadd.s32 %v1943, %v1931
            %v1949 = vadd.s32 %v1943, %v1932
            %v1950 = vadd.s32 %v1943, %v1933
            %v1951 = vadd.s32 %v1943, %v1934
            %v1952 = vadd.s32 %v1943, %v1935
            %v1953 = vadd.s32 %v1943, %v1936
            %v1954 = vadd.s32 %v1943, %v1937
            %v1955 = vadd.s32 %v1943, %v1938
            %v1956 = vadd.s32 %v1943, %v1939
            %v1957 = vadd.s32 %v1943, %v1940
            %v1958 = vadd.s32 %v1943, %v1941
            %v1959 = vadd.s32 %v1943, %v1942
            %v1960 = vstv %s300
            %v1961 = vadd.s32 %v1944, %v1960
            %v1962 = vadd.s32 %v1945, %v1960
            %v1963 = vadd.s32 %v1946, %v1960
            %v1964 = vadd.s32 %v1947, %v1960
            %v1965 = vadd.s32 %v1948, %v1960
            %v1966 = vadd.s32 %v1949, %v1960
            %v1967 = vadd.s32 %v1950, %v1960
            %v1968 = vadd.s32 %v1951, %v1960
            %v1969 = vadd.s32 %v1952, %v1960
            %v1970 = vadd.s32 %v1953, %v1960
            %v1971 = vadd.s32 %v1954, %v1960
            %v1972 = vadd.s32 %v1955, %v1960
            %v1973 = vadd.s32 %v1956, %v1960
            %v1974 = vadd.s32 %v1957, %v1960
            %v1975 = vadd.s32 %v1958, %v1960
            %v1976 = vadd.s32 %v1959, %v1960
            %vm1977 = vcmp.eq.s32.totalorder %v417, %v1961
            %vm1978 = vcmp.eq.s32.totalorder %v417, %v1962
            %vm1979 = vcmp.eq.s32.totalorder %v417, %v1963
            %vm1980 = vcmp.eq.s32.totalorder %v417, %v1964
            %vm1981 = vcmp.eq.s32.totalorder %v417, %v1965
            %vm1982 = vcmp.eq.s32.totalorder %v417, %v1966
            %vm1983 = vcmp.eq.s32.totalorder %v417, %v1967
            %vm1984 = vcmp.eq.s32.totalorder %v417, %v1968
            %vm1985 = vcmp.eq.s32.totalorder %v417, %v1969
            %vm1986 = vcmp.eq.s32.totalorder %v417, %v1970
            %vm1987 = vcmp.eq.s32.totalorder %v417, %v1971
            %vm1988 = vcmp.eq.s32.totalorder %v417, %v1972
            %vm1989 = vcmp.eq.s32.totalorder %v417, %v1973
            %vm1990 = vcmp.eq.s32.totalorder %v417, %v1974
            %vm1991 = vcmp.eq.s32.totalorder %v417, %v1975
            %vm1992 = vcmp.eq.s32.totalorder %v417, %v1976
            %s1993 = scalar_lea.vmem [#allocation4], 128
            %v1994 = vld [vmem:[%s1993] sm:$0xff]
            %v1995 = vld [vmem:[%s1993 + $0x8] sm:$0xff]
            %v1996 = vld [vmem:[%s1993 + $0x10] sm:$0xff]
            %v1997 = vld [vmem:[%s1993 + $0x18] sm:$0xff]
            %v1998 = vld [vmem:[%s1993 + $0x20] sm:$0xff]
            %v1999 = vld [vmem:[%s1993 + $0x28] sm:$0xff]
            %v2000 = vld [vmem:[%s1993 + $0x30] sm:$0xff]
            %v2001 = vld [vmem:[%s1993 + $0x38] sm:$0xff]
            %v2002 = vld [vmem:[%s1993 + $0x40] sm:$0xff]
            %v2003 = vld [vmem:[%s1993 + $0x48] sm:$0xff]
            %v2004 = vld [vmem:[%s1993 + $0x50] sm:$0xff]
            %v2005 = vld [vmem:[%s1993 + $0x58] sm:$0xff]
            %v2006 = vld [vmem:[%s1993 + $0x60] sm:$0xff]
            %v2007 = vld [vmem:[%s1993 + $0x68] sm:$0xff]
            %v2008 = vld [vmem:[%s1993 + $0x70] sm:$0xff]
            %v2009 = vld [vmem:[%s1993 + $0x78] sm:$0xff]
            %v2010 = vsel %vm1977, %v1553, 0.0
            %v2011 = vsel %vm1978, %v1554, 0.0
            %v2012 = vsel %vm1979, %v1555, 0.0
            %v2013 = vsel %vm1980, %v1556, 0.0
            %v2014 = vsel %vm1981, %v1557, 0.0
            %v2015 = vsel %vm1982, %v1558, 0.0
            %v2016 = vsel %vm1983, %v1559, 0.0
            %v2017 = vsel %vm1984, %v1560, 0.0
            %v2018 = vsel %vm1985, %v1561, 0.0
            %v2019 = vsel %vm1986, %v1562, 0.0
            %v2020 = vsel %vm1987, %v1563, 0.0
            %v2021 = vsel %vm1988, %v1564, 0.0
            %v2022 = vsel %vm1989, %v1565, 0.0
            %v2023 = vsel %vm1990, %v1566, 0.0
            %v2024 = vsel %vm1991, %v1567, 0.0
            %v2025 = vsel %vm1992, %v1568, 0.0
            %2026 = vadd.xlane.f32.xlu0 %v2010
            %v2027 = vpop.xlane.xlu0 %2026
            %2028 = vadd.xlane.f32.xlu0 %v2011
            %v2029 = vpop.xlane.xlu0 %2028
            %2030 = vadd.xlane.f32.xlu0 %v2012
            %v2031 = vpop.xlane.xlu0 %2030
            %2032 = vadd.xlane.f32.xlu0 %v2013
            %v2033 = vpop.xlane.xlu0 %2032
            %2034 = vadd.xlane.f32.xlu0 %v2014
            %v2035 = vpop.xlane.xlu0 %2034
            %2036 = vadd.xlane.f32.xlu0 %v2015
            %v2037 = vpop.xlane.xlu0 %2036
            %2038 = vadd.xlane.f32.xlu0 %v2016
            %v2039 = vpop.xlane.xlu0 %2038
            %2040 = vadd.xlane.f32.xlu0 %v2017
            %v2041 = vpop.xlane.xlu0 %2040
            %2042 = vadd.xlane.f32.xlu0 %v2018
            %v2043 = vpop.xlane.xlu0 %2042
            %2044 = vadd.xlane.f32.xlu0 %v2019
            %v2045 = vpop.xlane.xlu0 %2044
            %2046 = vadd.xlane.f32.xlu0 %v2020
            %v2047 = vpop.xlane.xlu0 %2046
            %2048 = vadd.xlane.f32.xlu0 %v2021
            %v2049 = vpop.xlane.xlu0 %2048
            %2050 = vadd.xlane.f32.xlu0 %v2022
            %v2051 = vpop.xlane.xlu0 %2050
            %2052 = vadd.xlane.f32.xlu0 %v2023
            %v2053 = vpop.xlane.xlu0 %2052
            %2054 = vadd.xlane.f32.xlu0 %v2024
            %v2055 = vpop.xlane.xlu0 %2054
            %2056 = vadd.xlane.f32.xlu0 %v2025
            %v2057 = vpop.xlane.xlu0 %2056
            %v2058 = vadd.f32 %v1994, %v2027
            %v2059 = vadd.f32 %v1995, %v2029
            %v2060 = vadd.f32 %v1996, %v2031
            %v2061 = vadd.f32 %v1997, %v2033
            %v2062 = vadd.f32 %v1998, %v2035
            %v2063 = vadd.f32 %v1999, %v2037
            %v2064 = vadd.f32 %v2000, %v2039
            %v2065 = vadd.f32 %v2001, %v2041
            %v2066 = vadd.f32 %v2002, %v2043
            %v2067 = vadd.f32 %v2003, %v2045
            %v2068 = vadd.f32 %v2004, %v2047
            %v2069 = vadd.f32 %v2005, %v2049
            %v2070 = vadd.f32 %v2006, %v2051
            %v2071 = vadd.f32 %v2007, %v2053
            %v2072 = vadd.f32 %v2008, %v2055
            %v2073 = vadd.f32 %v2009, %v2057
            %2074 = vst.msk [vmem:[%s1993] sm:$0xff] %vm1891, %v2058
            %2075 = vst.msk [vmem:[%s1993 + $0x8] sm:$0xff] %vm1891, %v2059
            %2076 = vst.msk [vmem:[%s1993 + $0x10] sm:$0xff] %vm1891, %v2060
            %2077 = vst.msk [vmem:[%s1993 + $0x18] sm:$0xff] %vm1891, %v2061
            %2078 = vst.msk [vmem:[%s1993 + $0x20] sm:$0xff] %vm1891, %v2062
            %2079 = vst.msk [vmem:[%s1993 + $0x28] sm:$0xff] %vm1891, %v2063
            %2080 = vst.msk [vmem:[%s1993 + $0x30] sm:$0xff] %vm1891, %v2064
            %2081 = vst.msk [vmem:[%s1993 + $0x38] sm:$0xff] %vm1891, %v2065
            %2082 = vst.msk [vmem:[%s1993 + $0x40] sm:$0xff] %vm1891, %v2066
            %2083 = vst.msk [vmem:[%s1993 + $0x48] sm:$0xff] %vm1891, %v2067
            %2084 = vst.msk [vmem:[%s1993 + $0x50] sm:$0xff] %vm1891, %v2068
            %2085 = vst.msk [vmem:[%s1993 + $0x58] sm:$0xff] %vm1891, %v2069
            %2086 = vst.msk [vmem:[%s1993 + $0x60] sm:$0xff] %vm1891, %v2070
            %2087 = vst.msk [vmem:[%s1993 + $0x68] sm:$0xff] %vm1891, %v2071
            %2088 = vst.msk [vmem:[%s1993 + $0x70] sm:$0xff] %vm1891, %v2072
            %2089 = vst.msk [vmem:[%s1993 + $0x78] sm:$0xff] %vm1891, %v2073
          $region76: #{contrastive_loss.1} parent=71 // pred_fallthru
            _
        $region72: #{contrastive_loss.1} parent=35 // pred_fallthru
          _
        // Predicated region
        $region77: #{contrastive_loss.1} parent=35 // pred_check
          %p2090 = pneg %p992
        $region78: #{contrastive_loss.1} parent=35 // pred_check_branch
          %2092 = sbr.rel (%p2090) target = $region80
        $region79: #{contrastive_loss.1} parent=35 // pred_region
          %s2093 = scalar_lea.vmem [#allocation2], 128
          %v2094 = vld [vmem:[%s2093] sm:$0xff]
          %v2095 = vld [vmem:[%s2093 + $0x8] sm:$0xff]
          %v2096 = vld [vmem:[%s2093 + $0x10] sm:$0xff]
          %v2097 = vld [vmem:[%s2093 + $0x18] sm:$0xff]
          %v2098 = vld [vmem:[%s2093 + $0x20] sm:$0xff]
          %v2099 = vld [vmem:[%s2093 + $0x28] sm:$0xff]
          %v2100 = vld [vmem:[%s2093 + $0x30] sm:$0xff]
          %v2101 = vld [vmem:[%s2093 + $0x38] sm:$0xff]
          %v2102 = vld [vmem:[%s2093 + $0x40] sm:$0xff]
          %v2103 = vld [vmem:[%s2093 + $0x48] sm:$0xff]
          %v2104 = vld [vmem:[%s2093 + $0x50] sm:$0xff]
          %v2105 = vld [vmem:[%s2093 + $0x58] sm:$0xff]
          %v2106 = vld [vmem:[%s2093 + $0x60] sm:$0xff]
          %v2107 = vld [vmem:[%s2093 + $0x68] sm:$0xff]
          %v2108 = vld [vmem:[%s2093 + $0x70] sm:$0xff]
          %v2109 = vld [vmem:[%s2093 + $0x78] sm:$0xff]
          %2110 = vmax.xlane.f32.xlu0 %v1530
          %v2111 = vpop.xlane.xlu0 %2110
          %2112 = vmax.xlane.f32.xlu0 %v1531
          %v2113 = vpop.xlane.xlu0 %2112
          %2114 = vmax.xlane.f32.xlu0 %v1532
          %v2115 = vpop.xlane.xlu0 %2114
          %2116 = vmax.xlane.f32.xlu0 %v1533
          %v2117 = vpop.xlane.xlu0 %2116
          %2118 = vmax.xlane.f32.xlu0 %v1534
          %v2119 = vpop.xlane.xlu0 %2118
          %2120 = vmax.xlane.f32.xlu0 %v1535
          %v2121 = vpop.xlane.xlu0 %2120
          %2122 = vmax.xlane.f32.xlu0 %v1536
          %v2123 = vpop.xlane.xlu0 %2122
          %2124 = vmax.xlane.f32.xlu0 %v1537
          %v2125 = vpop.xlane.xlu0 %2124
          %2126 = vmax.xlane.f32.xlu0 %v1538
          %v2127 = vpop.xlane.xlu0 %2126
          %2128 = vmax.xlane.f32.xlu0 %v1539
          %v2129 = vpop.xlane.xlu0 %2128
          %2130 = vmax.xlane.f32.xlu0 %v1540
          %v2131 = vpop.xlane.xlu0 %2130
          %2132 = vmax.xlane.f32.xlu0 %v1541
          %v2133 = vpop.xlane.xlu0 %2132
          %2134 = vmax.xlane.f32.xlu0 %v1542
          %v2135 = vpop.xlane.xlu0 %2134
          %2136 = vmax.xlane.f32.xlu0 %v1543
          %v2137 = vpop.xlane.xlu0 %2136
          %2138 = vmax.xlane.f32.xlu0 %v1544
          %v2139 = vpop.xlane.xlu0 %2138
          %2140 = vmax.xlane.f32.xlu0 %v1545
          %v2141 = vpop.xlane.xlu0 %2140
          %v2142 = vmax.f32 %v2094, %v2111
          %v2143 = vmax.f32 %v2095, %v2113
          %v2144 = vmax.f32 %v2096, %v2115
          %v2145 = vmax.f32 %v2097, %v2117
          %v2146 = vmax.f32 %v2098, %v2119
          %v2147 = vmax.f32 %v2099, %v2121
          %v2148 = vmax.f32 %v2100, %v2123
          %v2149 = vmax.f32 %v2101, %v2125
          %v2150 = vmax.f32 %v2102, %v2127
          %v2151 = vmax.f32 %v2103, %v2129
          %v2152 = vmax.f32 %v2104, %v2131
          %v2153 = vmax.f32 %v2105, %v2133
          %v2154 = vmax.f32 %v2106, %v2135
          %v2155 = vmax.f32 %v2107, %v2137
          %v2156 = vmax.f32 %v2108, %v2139
          %v2157 = vmax.f32 %v2109, %v2141
          %v2158 = vsub.f32 %v2094, %v2142
          %v2159 = vsub.f32 %v2095, %v2143
          %v2160 = vsub.f32 %v2096, %v2144
          %v2161 = vsub.f32 %v2097, %v2145
          %v2162 = vsub.f32 %v2098, %v2146
          %v2163 = vsub.f32 %v2099, %v2147
          %v2164 = vsub.f32 %v2100, %v2148
          %v2165 = vsub.f32 %v2101, %v2149
          %v2166 = vsub.f32 %v2102, %v2150
          %v2167 = vsub.f32 %v2103, %v2151
          %v2168 = vsub.f32 %v2104, %v2152
          %v2169 = vsub.f32 %v2105, %v2153
          %v2170 = vsub.f32 %v2106, %v2154
          %v2171 = vsub.f32 %v2107, %v2155
          %v2172 = vsub.f32 %v2108, %v2156
          %v2173 = vsub.f32 %v2109, %v2157
          %v2174 = vmul.f32 %v2158, 1.442695
          %v2175 = vpow.pop %v2174
          %v2176 = vmul.f32 %v2159, 1.442695
          %v2177 = vpow.pop %v2176
          %v2178 = vmul.f32 %v2160, 1.442695
          %v2179 = vpow.pop %v2178
          %v2180 = vmul.f32 %v2161, 1.442695
          %v2181 = vpow.pop %v2180
          %v2182 = vmul.f32 %v2162, 1.442695
          %v2183 = vpow.pop %v2182
          %v2184 = vmul.f32 %v2163, 1.442695
          %v2185 = vpow.pop %v2184
          %v2186 = vmul.f32 %v2164, 1.442695
          %v2187 = vpow.pop %v2186
          %v2188 = vmul.f32 %v2165, 1.442695
          %v2189 = vpow.pop %v2188
          %v2190 = vmul.f32 %v2166, 1.442695
          %v2191 = vpow.pop %v2190
          %v2192 = vmul.f32 %v2167, 1.442695
          %v2193 = vpow.pop %v2192
          %v2194 = vmul.f32 %v2168, 1.442695
          %v2195 = vpow.pop %v2194
          %v2196 = vmul.f32 %v2169, 1.442695
          %v2197 = vpow.pop %v2196
          %v2198 = vmul.f32 %v2170, 1.442695
          %v2199 = vpow.pop %v2198
          %v2200 = vmul.f32 %v2171, 1.442695
          %v2201 = vpow.pop %v2200
          %v2202 = vmul.f32 %v2172, 1.442695
          %v2203 = vpow.pop %v2202
          %v2204 = vmul.f32 %v2173, 1.442695
          %v2205 = vpow.pop %v2204
          %s2206 = scalar_lea.vmem [#allocation3], 128
          %v2207 = vld [vmem:[%s2206] sm:$0xff]
          %v2208 = vld [vmem:[%s2206 + $0x8] sm:$0xff]
          %v2209 = vld [vmem:[%s2206 + $0x10] sm:$0xff]
          %v2210 = vld [vmem:[%s2206 + $0x18] sm:$0xff]
          %v2211 = vld [vmem:[%s2206 + $0x20] sm:$0xff]
          %v2212 = vld [vmem:[%s2206 + $0x28] sm:$0xff]
          %v2213 = vld [vmem:[%s2206 + $0x30] sm:$0xff]
          %v2214 = vld [vmem:[%s2206 + $0x38] sm:$0xff]
          %v2215 = vld [vmem:[%s2206 + $0x40] sm:$0xff]
          %v2216 = vld [vmem:[%s2206 + $0x48] sm:$0xff]
          %v2217 = vld [vmem:[%s2206 + $0x50] sm:$0xff]
          %v2218 = vld [vmem:[%s2206 + $0x58] sm:$0xff]
          %v2219 = vld [vmem:[%s2206 + $0x60] sm:$0xff]
          %v2220 = vld [vmem:[%s2206 + $0x68] sm:$0xff]
          %v2221 = vld [vmem:[%s2206 + $0x70] sm:$0xff]
          %v2222 = vld [vmem:[%s2206 + $0x78] sm:$0xff]
          %v2223 = vmul.f32 %v2175, %v2207
          %v2224 = vmul.f32 %v2177, %v2208
          %v2225 = vmul.f32 %v2179, %v2209
          %v2226 = vmul.f32 %v2181, %v2210
          %v2227 = vmul.f32 %v2183, %v2211
          %v2228 = vmul.f32 %v2185, %v2212
          %v2229 = vmul.f32 %v2187, %v2213
          %v2230 = vmul.f32 %v2189, %v2214
          %v2231 = vmul.f32 %v2191, %v2215
          %v2232 = vmul.f32 %v2193, %v2216
          %v2233 = vmul.f32 %v2195, %v2217
          %v2234 = vmul.f32 %v2197, %v2218
          %v2235 = vmul.f32 %v2199, %v2219
          %v2236 = vmul.f32 %v2201, %v2220
          %v2237 = vmul.f32 %v2203, %v2221
          %v2238 = vmul.f32 %v2205, %v2222
          %2240 = vset.pattern.permute.xlu0 0
          %2241 = vperm.xlu0 %2240, %v2142
          %v2242 = vpop.permute.xlu0 %2241
          %2245 = vset.pattern.permute.xlu0 0
          %2246 = vperm.xlu0 %2245, %v2143
          %v2247 = vpop.permute.xlu0 %2246
          %2250 = vset.pattern.permute.xlu0 0
          %2251 = vperm.xlu0 %2250, %v2144
          %v2252 = vpop.permute.xlu0 %2251
          %2255 = vset.pattern.permute.xlu0 0
          %2256 = vperm.xlu0 %2255, %v2145
          %v2257 = vpop.permute.xlu0 %2256
          %2260 = vset.pattern.permute.xlu0 0
          %2261 = vperm.xlu0 %2260, %v2146
          %v2262 = vpop.permute.xlu0 %2261
          %2265 = vset.pattern.permute.xlu0 0
          %2266 = vperm.xlu0 %2265, %v2147
          %v2267 = vpop.permute.xlu0 %2266
          %2270 = vset.pattern.permute.xlu0 0
          %2271 = vperm.xlu0 %2270, %v2148
          %v2272 = vpop.permute.xlu0 %2271
          %2275 = vset.pattern.permute.xlu0 0
          %2276 = vperm.xlu0 %2275, %v2149
          %v2277 = vpop.permute.xlu0 %2276
          %2280 = vset.pattern.permute.xlu0 0
          %2281 = vperm.xlu0 %2280, %v2150
          %v2282 = vpop.permute.xlu0 %2281
          %2285 = vset.pattern.permute.xlu0 0
          %2286 = vperm.xlu0 %2285, %v2151
          %v2287 = vpop.permute.xlu0 %2286
          %2290 = vset.pattern.permute.xlu0 0
          %2291 = vperm.xlu0 %2290, %v2152
          %v2292 = vpop.permute.xlu0 %2291
          %2295 = vset.pattern.permute.xlu0 0
          %2296 = vperm.xlu0 %2295, %v2153
          %v2297 = vpop.permute.xlu0 %2296
          %2300 = vset.pattern.permute.xlu0 0
          %2301 = vperm.xlu0 %2300, %v2154
          %v2302 = vpop.permute.xlu0 %2301
          %2305 = vset.pattern.permute.xlu0 0
          %2306 = vperm.xlu0 %2305, %v2155
          %v2307 = vpop.permute.xlu0 %2306
          %2310 = vset.pattern.permute.xlu0 0
          %2311 = vperm.xlu0 %2310, %v2156
          %v2312 = vpop.permute.xlu0 %2311
          %2315 = vset.pattern.permute.xlu0 0
          %2316 = vperm.xlu0 %2315, %v2157
          %v2317 = vpop.permute.xlu0 %2316
          %v2319 = vsub.f32 %v1530, %v2242
          %v2320 = vsub.f32 %v1531, %v2247
          %v2321 = vsub.f32 %v1532, %v2252
          %v2322 = vsub.f32 %v1533, %v2257
          %v2323 = vsub.f32 %v1534, %v2262
          %v2324 = vsub.f32 %v1535, %v2267
          %v2325 = vsub.f32 %v1536, %v2272
          %v2326 = vsub.f32 %v1537, %v2277
          %v2327 = vsub.f32 %v1538, %v2282
          %v2328 = vsub.f32 %v1539, %v2287
          %v2329 = vsub.f32 %v1540, %v2292
          %v2330 = vsub.f32 %v1541, %v2297
          %v2331 = vsub.f32 %v1542, %v2302
          %v2332 = vsub.f32 %v1543, %v2307
          %v2333 = vsub.f32 %v1544, %v2312
          %v2334 = vsub.f32 %v1545, %v2317
          %v2335 = vmul.f32 %v2319, 1.442695
          %v2336 = vpow.pop %v2335
          %v2337 = vmul.f32 %v2320, 1.442695
          %v2338 = vpow.pop %v2337
          %v2339 = vmul.f32 %v2321, 1.442695
          %v2340 = vpow.pop %v2339
          %v2341 = vmul.f32 %v2322, 1.442695
          %v2342 = vpow.pop %v2341
          %v2343 = vmul.f32 %v2323, 1.442695
          %v2344 = vpow.pop %v2343
          %v2345 = vmul.f32 %v2324, 1.442695
          %v2346 = vpow.pop %v2345
          %v2347 = vmul.f32 %v2325, 1.442695
          %v2348 = vpow.pop %v2347
          %v2349 = vmul.f32 %v2326, 1.442695
          %v2350 = vpow.pop %v2349
          %v2351 = vmul.f32 %v2327, 1.442695
          %v2352 = vpow.pop %v2351
          %v2353 = vmul.f32 %v2328, 1.442695
          %v2354 = vpow.pop %v2353
          %v2355 = vmul.f32 %v2329, 1.442695
          %v2356 = vpow.pop %v2355
          %v2357 = vmul.f32 %v2330, 1.442695
          %v2358 = vpow.pop %v2357
          %v2359 = vmul.f32 %v2331, 1.442695
          %v2360 = vpow.pop %v2359
          %v2361 = vmul.f32 %v2332, 1.442695
          %v2362 = vpow.pop %v2361
          %v2363 = vmul.f32 %v2333, 1.442695
          %v2364 = vpow.pop %v2363
          %v2365 = vmul.f32 %v2334, 1.442695
          %v2366 = vpow.pop %v2365
          %2367 = vadd.xlane.f32.xlu0 %v2336
          %v2368 = vpop.xlane.xlu0 %2367
          %2369 = vadd.xlane.f32.xlu0 %v2338
          %v2370 = vpop.xlane.xlu0 %2369
          %2371 = vadd.xlane.f32.xlu0 %v2340
          %v2372 = vpop.xlane.xlu0 %2371
          %2373 = vadd.xlane.f32.xlu0 %v2342
          %v2374 = vpop.xlane.xlu0 %2373
          %2375 = vadd.xlane.f32.xlu0 %v2344
          %v2376 = vpop.xlane.xlu0 %2375
          %2377 = vadd.xlane.f32.xlu0 %v2346
          %v2378 = vpop.xlane.xlu0 %2377
          %2379 = vadd.xlane.f32.xlu0 %v2348
          %v2380 = vpop.xlane.xlu0 %2379
          %2381 = vadd.xlane.f32.xlu0 %v2350
          %v2382 = vpop.xlane.xlu0 %2381
          %2383 = vadd.xlane.f32.xlu0 %v2352
          %v2384 = vpop.xlane.xlu0 %2383
          %2385 = vadd.xlane.f32.xlu0 %v2354
          %v2386 = vpop.xlane.xlu0 %2385
          %2387 = vadd.xlane.f32.xlu0 %v2356
          %v2388 = vpop.xlane.xlu0 %2387
          %2389 = vadd.xlane.f32.xlu0 %v2358
          %v2390 = vpop.xlane.xlu0 %2389
          %2391 = vadd.xlane.f32.xlu0 %v2360
          %v2392 = vpop.xlane.xlu0 %2391
          %2393 = vadd.xlane.f32.xlu0 %v2362
          %v2394 = vpop.xlane.xlu0 %2393
          %2395 = vadd.xlane.f32.xlu0 %v2364
          %v2396 = vpop.xlane.xlu0 %2395
          %2397 = vadd.xlane.f32.xlu0 %v2366
          %v2398 = vpop.xlane.xlu0 %2397
          %v2399 = vadd.f32 %v2223, %v2368
          %v2400 = vadd.f32 %v2224, %v2370
          %v2401 = vadd.f32 %v2225, %v2372
          %v2402 = vadd.f32 %v2226, %v2374
          %v2403 = vadd.f32 %v2227, %v2376
          %v2404 = vadd.f32 %v2228, %v2378
          %v2405 = vadd.f32 %v2229, %v2380
          %v2406 = vadd.f32 %v2230, %v2382
          %v2407 = vadd.f32 %v2231, %v2384
          %v2408 = vadd.f32 %v2232, %v2386
          %v2409 = vadd.f32 %v2233, %v2388
          %v2410 = vadd.f32 %v2234, %v2390
          %v2411 = vadd.f32 %v2235, %v2392
          %v2412 = vadd.f32 %v2236, %v2394
          %v2413 = vadd.f32 %v2237, %v2396
          %v2414 = vadd.f32 %v2238, %v2398
          %vm2415 = vcmask 7168
          %2416 = vst.msk [vmem:[%s2206] sm:$0xff] %vm2415, %v2399
          %2417 = vst.msk [vmem:[%s2206 + $0x8] sm:$0xff] %vm2415, %v2400
          %2418 = vst.msk [vmem:[%s2206 + $0x10] sm:$0xff] %vm2415, %v2401
          %2419 = vst.msk [vmem:[%s2206 + $0x18] sm:$0xff] %vm2415, %v2402
          %2420 = vst.msk [vmem:[%s2206 + $0x20] sm:$0xff] %vm2415, %v2403
          %2421 = vst.msk [vmem:[%s2206 + $0x28] sm:$0xff] %vm2415, %v2404
          %2422 = vst.msk [vmem:[%s2206 + $0x30] sm:$0xff] %vm2415, %v2405
          %2423 = vst.msk [vmem:[%s2206 + $0x38] sm:$0xff] %vm2415, %v2406
          %2424 = vst.msk [vmem:[%s2206 + $0x40] sm:$0xff] %vm2415, %v2407
          %2425 = vst.msk [vmem:[%s2206 + $0x48] sm:$0xff] %vm2415, %v2408
          %2426 = vst.msk [vmem:[%s2206 + $0x50] sm:$0xff] %vm2415, %v2409
          %2427 = vst.msk [vmem:[%s2206 + $0x58] sm:$0xff] %vm2415, %v2410
          %2428 = vst.msk [vmem:[%s2206 + $0x60] sm:$0xff] %vm2415, %v2411
          %2429 = vst.msk [vmem:[%s2206 + $0x68] sm:$0xff] %vm2415, %v2412
          %2430 = vst.msk [vmem:[%s2206 + $0x70] sm:$0xff] %vm2415, %v2413
          %2431 = vst.msk [vmem:[%s2206 + $0x78] sm:$0xff] %vm2415, %v2414
          %2432 = vst.msk [vmem:[%s2093] sm:$0xff] %vm2415, %v2142
          %2433 = vst.msk [vmem:[%s2093 + $0x8] sm:$0xff] %vm2415, %v2143
          %2434 = vst.msk [vmem:[%s2093 + $0x10] sm:$0xff] %vm2415, %v2144
          %2435 = vst.msk [vmem:[%s2093 + $0x18] sm:$0xff] %vm2415, %v2145
          %2436 = vst.msk [vmem:[%s2093 + $0x20] sm:$0xff] %vm2415, %v2146
          %2437 = vst.msk [vmem:[%s2093 + $0x28] sm:$0xff] %vm2415, %v2147
          %2438 = vst.msk [vmem:[%s2093 + $0x30] sm:$0xff] %vm2415, %v2148
          %2439 = vst.msk [vmem:[%s2093 + $0x38] sm:$0xff] %vm2415, %v2149
          %2440 = vst.msk [vmem:[%s2093 + $0x40] sm:$0xff] %vm2415, %v2150
          %2441 = vst.msk [vmem:[%s2093 + $0x48] sm:$0xff] %vm2415, %v2151
          %2442 = vst.msk [vmem:[%s2093 + $0x50] sm:$0xff] %vm2415, %v2152
          %2443 = vst.msk [vmem:[%s2093 + $0x58] sm:$0xff] %vm2415, %v2153
          %2444 = vst.msk [vmem:[%s2093 + $0x60] sm:$0xff] %vm2415, %v2154
          %2445 = vst.msk [vmem:[%s2093 + $0x68] sm:$0xff] %vm2415, %v2155
          %2446 = vst.msk [vmem:[%s2093 + $0x70] sm:$0xff] %vm2415, %v2156
          %2447 = vst.msk [vmem:[%s2093 + $0x78] sm:$0xff] %vm2415, %v2157
          // Predicated region
          $region81: #{contrastive_loss.1} parent=79 // pred_check
            _
          $region82: #{contrastive_loss.1} parent=79 // pred_check_branch
            %2449 = sbr.rel (%p412) target = $region84
          $region83: #{contrastive_loss.1} parent=79 // pred_region
            %v2450 = vlaneseq
            %v2451 = vshrl.u32 %v2450, 7
            %v2452 = vadd.s32 %v2451, 8
            %v2453 = vadd.s32 %v2451, 16
            %v2454 = vadd.s32 %v2451, 24
            %v2455 = vadd.s32 %v2451, 32
            %v2456 = vadd.s32 %v2451, 40
            %v2457 = vadd.s32 %v2451, 48
            %v2458 = vadd.s32 %v2451, 56
            %v2459 = vadd.s32 %v2451, 64
            %v2460 = vadd.s32 %v2451, 72
            %v2461 = vadd.s32 %v2451, 80
            %v2462 = vadd.s32 %v2451, 88
            %v2463 = vadd.s32 %v2451, 96
            %v2464 = vadd.s32 %v2451, 104
            %v2465 = vadd.s32 %v2451, 112
            %v2466 = vadd.s32 %v2451, 120
            %v2467 = vstv %s407
            %v2468 = vadd.s32 %v2467, %v2451
            %v2469 = vadd.s32 %v2467, %v2452
            %v2470 = vadd.s32 %v2467, %v2453
            %v2471 = vadd.s32 %v2467, %v2454
            %v2472 = vadd.s32 %v2467, %v2455
            %v2473 = vadd.s32 %v2467, %v2456
            %v2474 = vadd.s32 %v2467, %v2457
            %v2475 = vadd.s32 %v2467, %v2458
            %v2476 = vadd.s32 %v2467, %v2459
            %v2477 = vadd.s32 %v2467, %v2460
            %v2478 = vadd.s32 %v2467, %v2461
            %v2479 = vadd.s32 %v2467, %v2462
            %v2480 = vadd.s32 %v2467, %v2463
            %v2481 = vadd.s32 %v2467, %v2464
            %v2482 = vadd.s32 %v2467, %v2465
            %v2483 = vadd.s32 %v2467, %v2466
            %v2484 = vstv %s300
            %v2485 = vadd.s32 %v2468, %v2484
            %v2486 = vadd.s32 %v2469, %v2484
            %v2487 = vadd.s32 %v2470, %v2484
            %v2488 = vadd.s32 %v2471, %v2484
            %v2489 = vadd.s32 %v2472, %v2484
            %v2490 = vadd.s32 %v2473, %v2484
            %v2491 = vadd.s32 %v2474, %v2484
            %v2492 = vadd.s32 %v2475, %v2484
            %v2493 = vadd.s32 %v2476, %v2484
            %v2494 = vadd.s32 %v2477, %v2484
            %v2495 = vadd.s32 %v2478, %v2484
            %v2496 = vadd.s32 %v2479, %v2484
            %v2497 = vadd.s32 %v2480, %v2484
            %v2498 = vadd.s32 %v2481, %v2484
            %v2499 = vadd.s32 %v2482, %v2484
            %v2500 = vadd.s32 %v2483, %v2484
            %vm2501 = vcmp.eq.s32.totalorder %v417, %v2485
            %vm2502 = vcmp.eq.s32.totalorder %v417, %v2486
            %vm2503 = vcmp.eq.s32.totalorder %v417, %v2487
            %vm2504 = vcmp.eq.s32.totalorder %v417, %v2488
            %vm2505 = vcmp.eq.s32.totalorder %v417, %v2489
            %vm2506 = vcmp.eq.s32.totalorder %v417, %v2490
            %vm2507 = vcmp.eq.s32.totalorder %v417, %v2491
            %vm2508 = vcmp.eq.s32.totalorder %v417, %v2492
            %vm2509 = vcmp.eq.s32.totalorder %v417, %v2493
            %vm2510 = vcmp.eq.s32.totalorder %v417, %v2494
            %vm2511 = vcmp.eq.s32.totalorder %v417, %v2495
            %vm2512 = vcmp.eq.s32.totalorder %v417, %v2496
            %vm2513 = vcmp.eq.s32.totalorder %v417, %v2497
            %vm2514 = vcmp.eq.s32.totalorder %v417, %v2498
            %vm2515 = vcmp.eq.s32.totalorder %v417, %v2499
            %vm2516 = vcmp.eq.s32.totalorder %v417, %v2500
            %s2517 = scalar_lea.vmem [#allocation4], 128
            %v2518 = vld [vmem:[%s2517] sm:$0xff]
            %v2519 = vld [vmem:[%s2517 + $0x8] sm:$0xff]
            %v2520 = vld [vmem:[%s2517 + $0x10] sm:$0xff]
            %v2521 = vld [vmem:[%s2517 + $0x18] sm:$0xff]
            %v2522 = vld [vmem:[%s2517 + $0x20] sm:$0xff]
            %v2523 = vld [vmem:[%s2517 + $0x28] sm:$0xff]
            %v2524 = vld [vmem:[%s2517 + $0x30] sm:$0xff]
            %v2525 = vld [vmem:[%s2517 + $0x38] sm:$0xff]
            %v2526 = vld [vmem:[%s2517 + $0x40] sm:$0xff]
            %v2527 = vld [vmem:[%s2517 + $0x48] sm:$0xff]
            %v2528 = vld [vmem:[%s2517 + $0x50] sm:$0xff]
            %v2529 = vld [vmem:[%s2517 + $0x58] sm:$0xff]
            %v2530 = vld [vmem:[%s2517 + $0x60] sm:$0xff]
            %v2531 = vld [vmem:[%s2517 + $0x68] sm:$0xff]
            %v2532 = vld [vmem:[%s2517 + $0x70] sm:$0xff]
            %v2533 = vld [vmem:[%s2517 + $0x78] sm:$0xff]
            %v2534 = vsel %vm2501, %v1530, 0.0
            %v2535 = vsel %vm2502, %v1531, 0.0
            %v2536 = vsel %vm2503, %v1532, 0.0
            %v2537 = vsel %vm2504, %v1533, 0.0
            %v2538 = vsel %vm2505, %v1534, 0.0
            %v2539 = vsel %vm2506, %v1535, 0.0
            %v2540 = vsel %vm2507, %v1536, 0.0
            %v2541 = vsel %vm2508, %v1537, 0.0
            %v2542 = vsel %vm2509, %v1538, 0.0
            %v2543 = vsel %vm2510, %v1539, 0.0
            %v2544 = vsel %vm2511, %v1540, 0.0
            %v2545 = vsel %vm2512, %v1541, 0.0
            %v2546 = vsel %vm2513, %v1542, 0.0
            %v2547 = vsel %vm2514, %v1543, 0.0
            %v2548 = vsel %vm2515, %v1544, 0.0
            %v2549 = vsel %vm2516, %v1545, 0.0
            %2550 = vadd.xlane.f32.xlu0 %v2534
            %v2551 = vpop.xlane.xlu0 %2550
            %2552 = vadd.xlane.f32.xlu0 %v2535
            %v2553 = vpop.xlane.xlu0 %2552
            %2554 = vadd.xlane.f32.xlu0 %v2536
            %v2555 = vpop.xlane.xlu0 %2554
            %2556 = vadd.xlane.f32.xlu0 %v2537
            %v2557 = vpop.xlane.xlu0 %2556
            %2558 = vadd.xlane.f32.xlu0 %v2538
            %v2559 = vpop.xlane.xlu0 %2558
            %2560 = vadd.xlane.f32.xlu0 %v2539
            %v2561 = vpop.xlane.xlu0 %2560
            %2562 = vadd.xlane.f32.xlu0 %v2540
            %v2563 = vpop.xlane.xlu0 %2562
            %2564 = vadd.xlane.f32.xlu0 %v2541
            %v2565 = vpop.xlane.xlu0 %2564
            %2566 = vadd.xlane.f32.xlu0 %v2542
            %v2567 = vpop.xlane.xlu0 %2566
            %2568 = vadd.xlane.f32.xlu0 %v2543
            %v2569 = vpop.xlane.xlu0 %2568
            %2570 = vadd.xlane.f32.xlu0 %v2544
            %v2571 = vpop.xlane.xlu0 %2570
            %2572 = vadd.xlane.f32.xlu0 %v2545
            %v2573 = vpop.xlane.xlu0 %2572
            %2574 = vadd.xlane.f32.xlu0 %v2546
            %v2575 = vpop.xlane.xlu0 %2574
            %2576 = vadd.xlane.f32.xlu0 %v2547
            %v2577 = vpop.xlane.xlu0 %2576
            %2578 = vadd.xlane.f32.xlu0 %v2548
            %v2579 = vpop.xlane.xlu0 %2578
            %2580 = vadd.xlane.f32.xlu0 %v2549
            %v2581 = vpop.xlane.xlu0 %2580
            %v2582 = vadd.f32 %v2518, %v2551
            %v2583 = vadd.f32 %v2519, %v2553
            %v2584 = vadd.f32 %v2520, %v2555
            %v2585 = vadd.f32 %v2521, %v2557
            %v2586 = vadd.f32 %v2522, %v2559
            %v2587 = vadd.f32 %v2523, %v2561
            %v2588 = vadd.f32 %v2524, %v2563
            %v2589 = vadd.f32 %v2525, %v2565
            %v2590 = vadd.f32 %v2526, %v2567
            %v2591 = vadd.f32 %v2527, %v2569
            %v2592 = vadd.f32 %v2528, %v2571
            %v2593 = vadd.f32 %v2529, %v2573
            %v2594 = vadd.f32 %v2530, %v2575
            %v2595 = vadd.f32 %v2531, %v2577
            %v2596 = vadd.f32 %v2532, %v2579
            %v2597 = vadd.f32 %v2533, %v2581
            %2598 = vst.msk [vmem:[%s2517] sm:$0xff] %vm2415, %v2582
            %2599 = vst.msk [vmem:[%s2517 + $0x8] sm:$0xff] %vm2415, %v2583
            %2600 = vst.msk [vmem:[%s2517 + $0x10] sm:$0xff] %vm2415, %v2584
            %2601 = vst.msk [vmem:[%s2517 + $0x18] sm:$0xff] %vm2415, %v2585
            %2602 = vst.msk [vmem:[%s2517 + $0x20] sm:$0xff] %vm2415, %v2586
            %2603 = vst.msk [vmem:[%s2517 + $0x28] sm:$0xff] %vm2415, %v2587
            %2604 = vst.msk [vmem:[%s2517 + $0x30] sm:$0xff] %vm2415, %v2588
            %2605 = vst.msk [vmem:[%s2517 + $0x38] sm:$0xff] %vm2415, %v2589
            %2606 = vst.msk [vmem:[%s2517 + $0x40] sm:$0xff] %vm2415, %v2590
            %2607 = vst.msk [vmem:[%s2517 + $0x48] sm:$0xff] %vm2415, %v2591
            %2608 = vst.msk [vmem:[%s2517 + $0x50] sm:$0xff] %vm2415, %v2592
            %2609 = vst.msk [vmem:[%s2517 + $0x58] sm:$0xff] %vm2415, %v2593
            %2610 = vst.msk [vmem:[%s2517 + $0x60] sm:$0xff] %vm2415, %v2594
            %2611 = vst.msk [vmem:[%s2517 + $0x68] sm:$0xff] %vm2415, %v2595
            %2612 = vst.msk [vmem:[%s2517 + $0x70] sm:$0xff] %vm2415, %v2596
            %2613 = vst.msk [vmem:[%s2517 + $0x78] sm:$0xff] %vm2415, %v2597
          $region84: #{contrastive_loss.1} parent=79 // pred_fallthru
            _
        $region80: #{contrastive_loss.1} parent=35 // pred_fallthru
          _
        %p2614 = scmp.eq.s32.totalorder %s28, 1
        // Predicated region
        $region85: #{contrastive_loss.1} parent=35 // pred_check
          %p2615 = pneg %p2614
        $region86: #{contrastive_loss.1} parent=35 // pred_check_branch
          %2617 = sbr.rel (%p2615) target = $region88
        $region87: #{contrastive_loss.1} parent=35 // pred_region
          %v2618 = vld [vmem:[#allocation2] sm:$0xff]
          %v2619 = vld [vmem:[#allocation2 + $0x8] sm:$0xff]
          %v2620 = vld [vmem:[#allocation2 + $0x10] sm:$0xff]
          %v2621 = vld [vmem:[#allocation2 + $0x18] sm:$0xff]
          %v2622 = vld [vmem:[#allocation2 + $0x20] sm:$0xff]
          %v2623 = vld [vmem:[#allocation2 + $0x28] sm:$0xff]
          %v2624 = vld [vmem:[#allocation2 + $0x30] sm:$0xff]
          %v2625 = vld [vmem:[#allocation2 + $0x38] sm:$0xff]
          %v2626 = vld [vmem:[#allocation2 + $0x40] sm:$0xff]
          %v2627 = vld [vmem:[#allocation2 + $0x48] sm:$0xff]
          %v2628 = vld [vmem:[#allocation2 + $0x50] sm:$0xff]
          %v2629 = vld [vmem:[#allocation2 + $0x58] sm:$0xff]
          %v2630 = vld [vmem:[#allocation2 + $0x60] sm:$0xff]
          %v2631 = vld [vmem:[#allocation2 + $0x68] sm:$0xff]
          %v2632 = vld [vmem:[#allocation2 + $0x70] sm:$0xff]
          %v2633 = vld [vmem:[#allocation2 + $0x78] sm:$0xff]
          %v2634 = vld [vmem:[#allocation3] sm:$0xff]
          %v2635 = vld [vmem:[#allocation3 + $0x8] sm:$0xff]
          %v2636 = vld [vmem:[#allocation3 + $0x10] sm:$0xff]
          %v2637 = vld [vmem:[#allocation3 + $0x18] sm:$0xff]
          %v2638 = vld [vmem:[#allocation3 + $0x20] sm:$0xff]
          %v2639 = vld [vmem:[#allocation3 + $0x28] sm:$0xff]
          %v2640 = vld [vmem:[#allocation3 + $0x30] sm:$0xff]
          %v2641 = vld [vmem:[#allocation3 + $0x38] sm:$0xff]
          %v2642 = vld [vmem:[#allocation3 + $0x40] sm:$0xff]
          %v2643 = vld [vmem:[#allocation3 + $0x48] sm:$0xff]
          %v2644 = vld [vmem:[#allocation3 + $0x50] sm:$0xff]
          %v2645 = vld [vmem:[#allocation3 + $0x58] sm:$0xff]
          %v2646 = vld [vmem:[#allocation3 + $0x60] sm:$0xff]
          %v2647 = vld [vmem:[#allocation3 + $0x68] sm:$0xff]
          %v2648 = vld [vmem:[#allocation3 + $0x70] sm:$0xff]
          %v2649 = vld [vmem:[#allocation3 + $0x78] sm:$0xff]
          %v2650 = vlog2.pop %v2634
          %v2651 = vmul.f32 %v2650, 0.6931472
          %v2652 = vlog2.pop %v2635
          %v2653 = vmul.f32 %v2652, 0.6931472
          %v2654 = vlog2.pop %v2636
          %v2655 = vmul.f32 %v2654, 0.6931472
          %v2656 = vlog2.pop %v2637
          %v2657 = vmul.f32 %v2656, 0.6931472
          %v2658 = vlog2.pop %v2638
          %v2659 = vmul.f32 %v2658, 0.6931472
          %v2660 = vlog2.pop %v2639
          %v2661 = vmul.f32 %v2660, 0.6931472
          %v2662 = vlog2.pop %v2640
          %v2663 = vmul.f32 %v2662, 0.6931472
          %v2664 = vlog2.pop %v2641
          %v2665 = vmul.f32 %v2664, 0.6931472
          %v2666 = vlog2.pop %v2642
          %v2667 = vmul.f32 %v2666, 0.6931472
          %v2668 = vlog2.pop %v2643
          %v2669 = vmul.f32 %v2668, 0.6931472
          %v2670 = vlog2.pop %v2644
          %v2671 = vmul.f32 %v2670, 0.6931472
          %v2672 = vlog2.pop %v2645
          %v2673 = vmul.f32 %v2672, 0.6931472
          %v2674 = vlog2.pop %v2646
          %v2675 = vmul.f32 %v2674, 0.6931472
          %v2676 = vlog2.pop %v2647
          %v2677 = vmul.f32 %v2676, 0.6931472
          %v2678 = vlog2.pop %v2648
          %v2679 = vmul.f32 %v2678, 0.6931472
          %v2680 = vlog2.pop %v2649
          %v2681 = vmul.f32 %v2680, 0.6931472
          %v2682 = vadd.f32 %v2618, %v2651
          %v2683 = vadd.f32 %v2619, %v2653
          %v2684 = vadd.f32 %v2620, %v2655
          %v2685 = vadd.f32 %v2621, %v2657
          %v2686 = vadd.f32 %v2622, %v2659
          %v2687 = vadd.f32 %v2623, %v2661
          %v2688 = vadd.f32 %v2624, %v2663
          %v2689 = vadd.f32 %v2625, %v2665
          %v2690 = vadd.f32 %v2626, %v2667
          %v2691 = vadd.f32 %v2627, %v2669
          %v2692 = vadd.f32 %v2628, %v2671
          %v2693 = vadd.f32 %v2629, %v2673
          %v2694 = vadd.f32 %v2630, %v2675
          %v2695 = vadd.f32 %v2631, %v2677
          %v2696 = vadd.f32 %v2632, %v2679
          %v2697 = vadd.f32 %v2633, %v2681
          %s2698 = scalar_lea.vmem [#allocation2], 128
          %v2699 = vld [vmem:[%s2698] sm:$0xff]
          %v2700 = vld [vmem:[%s2698 + $0x8] sm:$0xff]
          %v2701 = vld [vmem:[%s2698 + $0x10] sm:$0xff]
          %v2702 = vld [vmem:[%s2698 + $0x18] sm:$0xff]
          %v2703 = vld [vmem:[%s2698 + $0x20] sm:$0xff]
          %v2704 = vld [vmem:[%s2698 + $0x28] sm:$0xff]
          %v2705 = vld [vmem:[%s2698 + $0x30] sm:$0xff]
          %v2706 = vld [vmem:[%s2698 + $0x38] sm:$0xff]
          %v2707 = vld [vmem:[%s2698 + $0x40] sm:$0xff]
          %v2708 = vld [vmem:[%s2698 + $0x48] sm:$0xff]
          %v2709 = vld [vmem:[%s2698 + $0x50] sm:$0xff]
          %v2710 = vld [vmem:[%s2698 + $0x58] sm:$0xff]
          %v2711 = vld [vmem:[%s2698 + $0x60] sm:$0xff]
          %v2712 = vld [vmem:[%s2698 + $0x68] sm:$0xff]
          %v2713 = vld [vmem:[%s2698 + $0x70] sm:$0xff]
          %v2714 = vld [vmem:[%s2698 + $0x78] sm:$0xff]
          %s2715 = scalar_lea.vmem [#allocation3], 128
          %v2716 = vld [vmem:[%s2715] sm:$0xff]
          %v2717 = vld [vmem:[%s2715 + $0x8] sm:$0xff]
          %v2718 = vld [vmem:[%s2715 + $0x10] sm:$0xff]
          %v2719 = vld [vmem:[%s2715 + $0x18] sm:$0xff]
          %v2720 = vld [vmem:[%s2715 + $0x20] sm:$0xff]
          %v2721 = vld [vmem:[%s2715 + $0x28] sm:$0xff]
          %v2722 = vld [vmem:[%s2715 + $0x30] sm:$0xff]
          %v2723 = vld [vmem:[%s2715 + $0x38] sm:$0xff]
          %v2724 = vld [vmem:[%s2715 + $0x40] sm:$0xff]
          %v2725 = vld [vmem:[%s2715 + $0x48] sm:$0xff]
          %v2726 = vld [vmem:[%s2715 + $0x50] sm:$0xff]
          %v2727 = vld [vmem:[%s2715 + $0x58] sm:$0xff]
          %v2728 = vld [vmem:[%s2715 + $0x60] sm:$0xff]
          %v2729 = vld [vmem:[%s2715 + $0x68] sm:$0xff]
          %v2730 = vld [vmem:[%s2715 + $0x70] sm:$0xff]
          %v2731 = vld [vmem:[%s2715 + $0x78] sm:$0xff]
          %v2732 = vlog2.pop %v2716
          %v2733 = vmul.f32 %v2732, 0.6931472
          %v2734 = vlog2.pop %v2717
          %v2735 = vmul.f32 %v2734, 0.6931472
          %v2736 = vlog2.pop %v2718
          %v2737 = vmul.f32 %v2736, 0.6931472
          %v2738 = vlog2.pop %v2719
          %v2739 = vmul.f32 %v2738, 0.6931472
          %v2740 = vlog2.pop %v2720
          %v2741 = vmul.f32 %v2740, 0.6931472
          %v2742 = vlog2.pop %v2721
          %v2743 = vmul.f32 %v2742, 0.6931472
          %v2744 = vlog2.pop %v2722
          %v2745 = vmul.f32 %v2744, 0.6931472
          %v2746 = vlog2.pop %v2723
          %v2747 = vmul.f32 %v2746, 0.6931472
          %v2748 = vlog2.pop %v2724
          %v2749 = vmul.f32 %v2748, 0.6931472
          %v2750 = vlog2.pop %v2725
          %v2751 = vmul.f32 %v2750, 0.6931472
          %v2752 = vlog2.pop %v2726
          %v2753 = vmul.f32 %v2752, 0.6931472
          %v2754 = vlog2.pop %v2727
          %v2755 = vmul.f32 %v2754, 0.6931472
          %v2756 = vlog2.pop %v2728
          %v2757 = vmul.f32 %v2756, 0.6931472
          %v2758 = vlog2.pop %v2729
          %v2759 = vmul.f32 %v2758, 0.6931472
          %v2760 = vlog2.pop %v2730
          %v2761 = vmul.f32 %v2760, 0.6931472
          %v2762 = vlog2.pop %v2731
          %v2763 = vmul.f32 %v2762, 0.6931472
          %v2764 = vadd.f32 %v2699, %v2733
          %v2765 = vadd.f32 %v2700, %v2735
          %v2766 = vadd.f32 %v2701, %v2737
          %v2767 = vadd.f32 %v2702, %v2739
          %v2768 = vadd.f32 %v2703, %v2741
          %v2769 = vadd.f32 %v2704, %v2743
          %v2770 = vadd.f32 %v2705, %v2745
          %v2771 = vadd.f32 %v2706, %v2747
          %v2772 = vadd.f32 %v2707, %v2749
          %v2773 = vadd.f32 %v2708, %v2751
          %v2774 = vadd.f32 %v2709, %v2753
          %v2775 = vadd.f32 %v2710, %v2755
          %v2776 = vadd.f32 %v2711, %v2757
          %v2777 = vadd.f32 %v2712, %v2759
          %v2778 = vadd.f32 %v2713, %v2761
          %v2779 = vadd.f32 %v2714, %v2763
          %v2780 = vld [vmem:[#allocation4] sm:$0xff]
          %v2781 = vld [vmem:[#allocation4 + $0x8] sm:$0xff]
          %v2782 = vld [vmem:[#allocation4 + $0x10] sm:$0xff]
          %v2783 = vld [vmem:[#allocation4 + $0x18] sm:$0xff]
          %v2784 = vld [vmem:[#allocation4 + $0x20] sm:$0xff]
          %v2785 = vld [vmem:[#allocation4 + $0x28] sm:$0xff]
          %v2786 = vld [vmem:[#allocation4 + $0x30] sm:$0xff]
          %v2787 = vld [vmem:[#allocation4 + $0x38] sm:$0xff]
          %v2788 = vld [vmem:[#allocation4 + $0x40] sm:$0xff]
          %v2789 = vld [vmem:[#allocation4 + $0x48] sm:$0xff]
          %v2790 = vld [vmem:[#allocation4 + $0x50] sm:$0xff]
          %v2791 = vld [vmem:[#allocation4 + $0x58] sm:$0xff]
          %v2792 = vld [vmem:[#allocation4 + $0x60] sm:$0xff]
          %v2793 = vld [vmem:[#allocation4 + $0x68] sm:$0xff]
          %v2794 = vld [vmem:[#allocation4 + $0x70] sm:$0xff]
          %v2795 = vld [vmem:[#allocation4 + $0x78] sm:$0xff]
          %v2796 = vsub.f32 %v2682, %v2780
          %v2797 = vsub.f32 %v2683, %v2781
          %v2798 = vsub.f32 %v2684, %v2782
          %v2799 = vsub.f32 %v2685, %v2783
          %v2800 = vsub.f32 %v2686, %v2784
          %v2801 = vsub.f32 %v2687, %v2785
          %v2802 = vsub.f32 %v2688, %v2786
          %v2803 = vsub.f32 %v2689, %v2787
          %v2804 = vsub.f32 %v2690, %v2788
          %v2805 = vsub.f32 %v2691, %v2789
          %v2806 = vsub.f32 %v2692, %v2790
          %v2807 = vsub.f32 %v2693, %v2791
          %v2808 = vsub.f32 %v2694, %v2792
          %v2809 = vsub.f32 %v2695, %v2793
          %v2810 = vsub.f32 %v2696, %v2794
          %v2811 = vsub.f32 %v2697, %v2795
          %s2812 = scalar_lea.vmem [#allocation4], 128
          %v2813 = vld [vmem:[%s2812] sm:$0xff]
          %v2814 = vld [vmem:[%s2812 + $0x8] sm:$0xff]
          %v2815 = vld [vmem:[%s2812 + $0x10] sm:$0xff]
          %v2816 = vld [vmem:[%s2812 + $0x18] sm:$0xff]
          %v2817 = vld [vmem:[%s2812 + $0x20] sm:$0xff]
          %v2818 = vld [vmem:[%s2812 + $0x28] sm:$0xff]
          %v2819 = vld [vmem:[%s2812 + $0x30] sm:$0xff]
          %v2820 = vld [vmem:[%s2812 + $0x38] sm:$0xff]
          %v2821 = vld [vmem:[%s2812 + $0x40] sm:$0xff]
          %v2822 = vld [vmem:[%s2812 + $0x48] sm:$0xff]
          %v2823 = vld [vmem:[%s2812 + $0x50] sm:$0xff]
          %v2824 = vld [vmem:[%s2812 + $0x58] sm:$0xff]
          %v2825 = vld [vmem:[%s2812 + $0x60] sm:$0xff]
          %v2826 = vld [vmem:[%s2812 + $0x68] sm:$0xff]
          %v2827 = vld [vmem:[%s2812 + $0x70] sm:$0xff]
          %v2828 = vld [vmem:[%s2812 + $0x78] sm:$0xff]
          %v2829 = vsub.f32 %v2764, %v2813
          %v2830 = vsub.f32 %v2765, %v2814
          %v2831 = vsub.f32 %v2766, %v2815
          %v2832 = vsub.f32 %v2767, %v2816
          %v2833 = vsub.f32 %v2768, %v2817
          %v2834 = vsub.f32 %v2769, %v2818
          %v2835 = vsub.f32 %v2770, %v2819
          %v2836 = vsub.f32 %v2771, %v2820
          %v2837 = vsub.f32 %v2772, %v2821
          %v2838 = vsub.f32 %v2773, %v2822
          %v2839 = vsub.f32 %v2774, %v2823
          %v2840 = vsub.f32 %v2775, %v2824
          %v2841 = vsub.f32 %v2776, %v2825
          %v2842 = vsub.f32 %v2777, %v2826
          %v2843 = vsub.f32 %v2778, %v2827
          %v2844 = vsub.f32 %v2779, %v2828
          %v2845 = vadd.f32 %v2796, %v2829
          %v2846 = vadd.f32 %v2797, %v2830
          %v2847 = vadd.f32 %v2798, %v2831
          %v2848 = vadd.f32 %v2799, %v2832
          %v2849 = vadd.f32 %v2800, %v2833
          %v2850 = vadd.f32 %v2801, %v2834
          %v2851 = vadd.f32 %v2802, %v2835
          %v2852 = vadd.f32 %v2803, %v2836
          %v2853 = vadd.f32 %v2804, %v2837
          %v2854 = vadd.f32 %v2805, %v2838
          %v2855 = vadd.f32 %v2806, %v2839
          %v2856 = vadd.f32 %v2807, %v2840
          %v2857 = vadd.f32 %v2808, %v2841
          %v2858 = vadd.f32 %v2809, %v2842
          %v2859 = vadd.f32 %v2810, %v2843
          %v2860 = vadd.f32 %v2811, %v2844
          %v2861 = vlaneseq
          %v2862 = vshrl.u32 %v2861, 7
          %v2863 = vadd.s32 %v2862, 8
          %v2864 = vadd.s32 %v2862, 16
          %v2865 = vadd.s32 %v2862, 24
          %v2866 = vadd.s32 %v2862, 32
          %v2867 = vadd.s32 %v2862, 40
          %v2868 = vadd.s32 %v2862, 48
          %v2869 = vadd.s32 %v2862, 56
          %v2870 = vadd.s32 %v2862, 64
          %v2871 = vadd.s32 %v2862, 72
          %v2872 = vadd.s32 %v2862, 80
          %v2873 = vadd.s32 %v2862, 88
          %v2874 = vadd.s32 %v2862, 96
          %v2875 = vadd.s32 %v2862, 104
          %v2876 = vadd.s32 %v2862, 112
          %v2877 = vadd.s32 %v2862, 120
          %v2878 = vstv %s407
          %v2879 = vadd.s32 %v2878, %v2862
          %v2880 = vadd.s32 %v2878, %v2863
          %v2881 = vadd.s32 %v2878, %v2864
          %v2882 = vadd.s32 %v2878, %v2865
          %v2883 = vadd.s32 %v2878, %v2866
          %v2884 = vadd.s32 %v2878, %v2867
          %v2885 = vadd.s32 %v2878, %v2868
          %v2886 = vadd.s32 %v2878, %v2869
          %v2887 = vadd.s32 %v2878, %v2870
          %v2888 = vadd.s32 %v2878, %v2871
          %v2889 = vadd.s32 %v2878, %v2872
          %v2890 = vadd.s32 %v2878, %v2873
          %v2891 = vadd.s32 %v2878, %v2874
          %v2892 = vadd.s32 %v2878, %v2875
          %v2893 = vadd.s32 %v2878, %v2876
          %v2894 = vadd.s32 %v2878, %v2877
          %v2895 = vstv %s301
          %vm2896 = vcmp.lt.s32.totalorder %v2879, %v2895
          %vm2897 = vcmp.lt.s32.totalorder %v2880, %v2895
          %vm2898 = vcmp.lt.s32.totalorder %v2881, %v2895
          %vm2899 = vcmp.lt.s32.totalorder %v2882, %v2895
          %vm2900 = vcmp.lt.s32.totalorder %v2883, %v2895
          %vm2901 = vcmp.lt.s32.totalorder %v2884, %v2895
          %vm2902 = vcmp.lt.s32.totalorder %v2885, %v2895
          %vm2903 = vcmp.lt.s32.totalorder %v2886, %v2895
          %vm2904 = vcmp.lt.s32.totalorder %v2887, %v2895
          %vm2905 = vcmp.lt.s32.totalorder %v2888, %v2895
          %vm2906 = vcmp.lt.s32.totalorder %v2889, %v2895
          %vm2907 = vcmp.lt.s32.totalorder %v2890, %v2895
          %vm2908 = vcmp.lt.s32.totalorder %v2891, %v2895
          %vm2909 = vcmp.lt.s32.totalorder %v2892, %v2895
          %vm2910 = vcmp.lt.s32.totalorder %v2893, %v2895
          %vm2911 = vcmp.lt.s32.totalorder %v2894, %v2895
          %v2912 = vsel %vm2896, %v2845, 0.0
          %v2913 = vsel %vm2897, %v2846, 0.0
          %v2914 = vsel %vm2898, %v2847, 0.0
          %v2915 = vsel %vm2899, %v2848, 0.0
          %v2916 = vsel %vm2900, %v2849, 0.0
          %v2917 = vsel %vm2901, %v2850, 0.0
          %v2918 = vsel %vm2902, %v2851, 0.0
          %v2919 = vsel %vm2903, %v2852, 0.0
          %v2920 = vsel %vm2904, %v2853, 0.0
          %v2921 = vsel %vm2905, %v2854, 0.0
          %v2922 = vsel %vm2906, %v2855, 0.0
          %v2923 = vsel %vm2907, %v2856, 0.0
          %v2924 = vsel %vm2908, %v2857, 0.0
          %v2925 = vsel %vm2909, %v2858, 0.0
          %v2926 = vsel %vm2910, %v2859, 0.0
          %v2927 = vsel %vm2911, %v2860, 0.0
          %vm2928 = vcmask 7168
          %v2929 = vsel %vm2928, %v2912, 0.0
          %v2930 = vsel %vm2928, %v2913, 0.0
          %v2931 = vadd.f32 %v2929, %v2930
          %v2932 = vsel %vm2928, %v2914, 0.0
          %v2933 = vadd.f32 %v2931, %v2932
          %v2934 = vsel %vm2928, %v2915, 0.0
          %v2935 = vadd.f32 %v2933, %v2934
          %v2936 = vsel %vm2928, %v2916, 0.0
          %v2937 = vadd.f32 %v2935, %v2936
          %v2938 = vsel %vm2928, %v2917, 0.0
          %v2939 = vadd.f32 %v2937, %v2938
          %v2940 = vsel %vm2928, %v2918, 0.0
          %v2941 = vadd.f32 %v2939, %v2940
          %v2942 = vsel %vm2928, %v2919, 0.0
          %v2943 = vadd.f32 %v2941, %v2942
          %v2944 = vsel %vm2928, %v2920, 0.0
          %v2945 = vadd.f32 %v2943, %v2944
          %v2946 = vsel %vm2928, %v2921, 0.0
          %v2947 = vadd.f32 %v2945, %v2946
          %v2948 = vsel %vm2928, %v2922, 0.0
          %v2949 = vadd.f32 %v2947, %v2948
          %v2950 = vsel %vm2928, %v2923, 0.0
          %v2951 = vadd.f32 %v2949, %v2950
          %v2952 = vsel %vm2928, %v2924, 0.0
          %v2953 = vadd.f32 %v2951, %v2952
          %v2954 = vsel %vm2928, %v2925, 0.0
          %v2955 = vadd.f32 %v2953, %v2954
          %v2956 = vsel %vm2928, %v2926, 0.0
          %v2957 = vadd.f32 %v2955, %v2956
          %v2958 = vsel %vm2928, %v2927, 0.0
          %v2959 = vadd.f32 %v2957, %v2958
          %2960 = vadd.xlane.f32.xlu0 %v2959
          %v2961 = vpop.xlane.xlu0 %2960
          %v2962 = vrot.slane %v2961, 4
          %v2963 = vadd.f32 %v2961, %v2962
          %v2964 = vrot.slane %v2963, 2
          %v2965 = vadd.f32 %v2963, %v2964
          %v2966 = vrot.slane %v2965, 1
          %v2967 = vadd.f32 %v2965, %v2966
          %s2968 = vtos %v2967
          %v2969 = vstv %s2968
          %v2970 = vadd.f32 %v2969, 0.0
          %2971 = vst [vmem:[%s292] sm:$0xff] %v2970
        $region88: #{contrastive_loss.1} parent=35 // pred_fallthru
          _
        %p2972 = scmp.lt.s32.totalorder %s27, 1
        %s2973 = scalar_select %p2972, %s27, 1
        %s2974 = smul.addr %s2973, 8
        %s2975 = scalar_lea.vmem %s4, %s2974
        // Predicated region
        $region89: #{contrastive_loss.1} parent=35 // pred_check
          %p2976 = pneg %p151
        $region90: #{contrastive_loss.1} parent=35 // pred_check_branch
          %2978 = sbr.rel (%p2976) target = $region92
        $region91: #{contrastive_loss.1} parent=35 // pred_region
          _
        $region92: #{contrastive_loss.1} parent=35 // pred_fallthru
          _
      $region36: #{contrastive_loss.1} parent=5 // pred_fallthru
        _
      %p2979 = scmp.le.s32.totalorder 2, %s18
      // Predicated region
      $region93: #{contrastive_loss.1} parent=5 // pred_check
        %p2980 = pneg %p2979
      $region94: #{contrastive_loss.1} parent=5 // pred_check_branch
        %2982 = sbr.rel (%p2980) target = $region96
      $region95: #{contrastive_loss.1} parent=5 // pred_region
        %s2983 = ssub.s32 %s18, 2
        // Predicated region
        $region97: #{contrastive_loss.1} parent=95 // pred_check
          %p2984 = pneg %p157
        $region98: #{contrastive_loss.1} parent=95 // pred_check_branch
          %2986 = sbr.rel (%p2984) target = $region100
        $region99: #{contrastive_loss.1} parent=95 // pred_region
          %p2987 = scmp.lt.s32.totalorder %s29, 1
          %s2988 = scalar_select %p2987, %s29, 1
          %s2989 = smul.addr %s2988, 8
          %s2990 = scalar_lea.vmem %s4, %s2989
        $region100: #{contrastive_loss.1} parent=95 // pred_fallthru
          _
      $region96: #{contrastive_loss.1} parent=5 // pred_fallthru
        _
    $region6: #{contrastive_loss.1} parent=1 // loop_footer
      %s22 = sadd.s32 1, %s18
    $region7: #{contrastive_loss.1} parent=1 // loop_footer_branch
      %17 = sbr.rel target = $region3
    $region8: #{contrastive_loss.1} parent=1 // loop_exit
      _
    %2991 = vsyncpa [#allocation7], 1
    %s2992 = scalar_lea.sflag [#allocation7], 1
    %2993 = vsyncpa %s2992, 1
    %2994 = vsyncpa [#allocation11], 1
    %s2995 = scalar_lea.sflag [#allocation11], 1
    %2996 = vsyncpa %s2995, 1
    %2997 = vsyncpa [#allocation8], 1
    %s2998 = scalar_lea.sflag [#allocation8], 1
    %2999 = vsyncpa %s2998, 1

</llo_original>
